<compile_context>
chip_gen: v5e
topology: v5e:2x2
jax: 0.10.0
libtpu: 0.0.40
codegen_flags: <defaults>
</compile_context>

<pallas_src>
import functools

import jax
import jax.numpy as jnp
from jax.experimental import pallas as pl
from jax.experimental.pallas import tpu as pltpu


# ---------------------------------------------------------------------------
# Conv 3x3 (stride 1, padding 1) + bias (+ optional fused ReLU)
# ---------------------------------------------------------------------------
def _conv_tap_kernel(x_ref, w_ref, b_ref, o_ref, acc_ref, *, fuse_relu):
    t = pl.program_id(0)

    @pl.when(t == 0)
    def _():
        acc_ref[...] = jnp.zeros_like(acc_ref)

    # (M, Cin) @ (Cin, Cout) on the MXU, f32 accumulate.
    acc_ref[...] += jnp.dot(x_ref[0], w_ref[0],
                            preferred_element_type=jnp.float32)

    @pl.when(t == pl.num_programs(0) - 1)
    def _():
        r = acc_ref[...] + b_ref[...]
        if fuse_relu:
            r = jnp.maximum(r, 0.0)
        o_ref[...] = r.astype(o_ref.dtype)


def conv3x3_bias(x_nhwc, w_hwio, b, *, fuse_relu=False):
    """3x3 conv, stride 1, padding 1, + bias, optional fused ReLU (NHWC)."""
    n, h, w, cin = x_nhwc.shape
    kh, kw, cin_w, cout = w_hwio.shape
    assert (kh, kw) == (3, 3) and cin_w == cin

    # Pad the contraction dim to a sublane multiple (only hits the 3-ch input
    # conv); padded input channels and weight rows are zero -> result exact.
    if cin % 8:
        pad_c = 8 - cin % 8
        x_nhwc = jnp.pad(x_nhwc, ((0, 0), (0, 0), (0, 0), (0, pad_c)))
        w_hwio = jnp.pad(w_hwio, ((0, 0), (0, 0), (0, pad_c), (0, 0)))
        cin += pad_c

    xp = jnp.pad(x_nhwc, ((0, 0), (1, 1), (1, 1), (0, 0)))
    m = n * h * w
    taps = [xp[:, dy:dy + h, dx:dx + w, :].reshape(m, cin)
            for dy in range(3) for dx in range(3)]
    x_taps = jnp.stack(taps, axis=0).astype(jnp.float32)      # (9, M, Cin)
    w_taps = w_hwio.reshape(9, cin, cout).astype(jnp.float32)  # (9, Cin, Cout)
    b2 = b.reshape(1, cout).astype(jnp.float32)

    out = pl.pallas_call(
        functools.partial(_conv_tap_kernel, fuse_relu=fuse_relu),
        out_shape=jax.ShapeDtypeStruct((m, cout), jnp.float32),
        grid_spec=pltpu.PrefetchScalarGridSpec(
            num_scalar_prefetch=0,
            grid=(9,),  # reduction over the 9 kernel taps
            in_specs=[
                pl.BlockSpec((1, m, cin), lambda t: (t, 0, 0)),
                pl.BlockSpec((1, cin, cout), lambda t: (t, 0, 0)),
                pl.BlockSpec((1, cout), lambda t: (0, 0)),
            ],
            out_specs=pl.BlockSpec((m, cout), lambda t: (0, 0)),
            scratch_shapes=[pltpu.VMEM((m, cout), jnp.float32)],
        ),
        compiler_params=pltpu.CompilerParams(
            dimension_semantics=("arbitrary",)),
    )(x_taps, w_taps, b2)
    return out.reshape(n, h, w, cout)


# ---------------------------------------------------------------------------
# Fused ReLU + 2x2 stride-2 max pool (VGG layers 3-4 and 8-9)
# ---------------------------------------------------------------------------
def _relu_maxpool_kernel(x_ref, o_ref):
    m01 = jnp.maximum(x_ref[0], x_ref[1])
    m23 = jnp.maximum(x_ref[2], x_ref[3])
    o_ref[...] = jnp.maximum(jnp.maximum(m01, m23), 0.0)


def relu_maxpool_2x2(x_nhwc):
    n, h, w, c = x_nhwc.shape
    ho, wo = h // 2, w // 2
    mo = n * ho * wo
    xr = x_nhwc.reshape(n, ho, 2, wo, 2, c)
    taps = [xr[:, :, a, :, b, :].reshape(mo, c)
            for a in range(2) for b in range(2)]
    x_taps = jnp.stack(taps, axis=0).astype(jnp.float32)       # (4, Mo, C)

    out = pl.pallas_call(
        _relu_maxpool_kernel,
        out_shape=jax.ShapeDtypeStruct((mo, c), jnp.float32),
        grid_spec=pltpu.PrefetchScalarGridSpec(
            num_scalar_prefetch=0,
            grid=(1,),
            in_specs=[pl.BlockSpec((4, mo, c), lambda i: (0, 0, 0))],
            out_specs=pl.BlockSpec((mo, c), lambda i: (0, 0)),
        ),
        compiler_params=pltpu.CompilerParams(
            dimension_semantics=("arbitrary",)),
    )(x_taps)
    return out.reshape(n, ho, wo, c)


# ---------------------------------------------------------------------------
# FeatureExtractor forward
# ---------------------------------------------------------------------------
class FeatureExtractor:
    """Pallas port of the VGG19-prefix FeatureExtractor (layers [2, 7, 12])."""

    # (Cin, Cout) of VGG19 conv layers at indices 0, 2, 5, 7, 10, 12.
    _CONV_CHANNELS = [(3, 64), (64, 64), (64, 128),
                      (128, 128), (128, 256), (256, 256)]

    def __init__(self, key):
        # TODO(synk): torchvision pretrained weights unavailable in-script;
        # deterministic He-style random init with identical shapes instead.
        self.params = []
        for cin, cout in self._CONV_CHANNELS:
            key, kw, kb = jax.random.split(key, 3)
            std = (2.0 / (9 * cin)) ** 0.5
            w = std * jax.random.normal(kw, (3, 3, cin, cout), jnp.float32)
            b = 0.05 * jax.random.normal(kb, (cout,), jnp.float32)
            self.params.append((w, b))

    def __call__(self, x_nchw):
        x = jnp.transpose(x_nchw.astype(jnp.float32), (0, 2, 3, 1))   # NHWC
        p = self.params
        x = conv3x3_bias(x, *p[0], fuse_relu=True)     # layers 0 + 1
        f0 = conv3x3_bias(x, *p[1], fuse_relu=False)   # layer 2   -> feature
        x = relu_maxpool_2x2(f0)                       # layers 3 + 4
        x = conv3x3_bias(x, *p[2], fuse_relu=True)     # layers 5 + 6
        f1 = conv3x3_bias(x, *p[3], fuse_relu=False)   # layer 7   -> feature
        x = relu_maxpool_2x2(f1)                       # layers 8 + 9
        x = conv3x3_bias(x, *p[4], fuse_relu=True)     # layers 10 + 11
        f2 = conv3x3_bias(x, *p[5], fuse_relu=False)   # layer 12  -> feature
        # Return NCHW like the PyTorch module.
        return [jnp.transpose(f, (0, 3, 1, 2)) for f in (f0, f1, f2)]


# ---------------------------------------------------------------------------
# Pure-JAX reference (XLA conv / reduce_window) for correctness checking
# ---------------------------------------------------------------------------
def _ref_forward(x_nchw, params):
    def conv(x, w, b):
        y = jax.lax.conv_general_dilated(
            x, w, window_strides=(1, 1), padding=((1, 1), (1, 1)),
            dimension_numbers=("NCHW", "HWIO", "NCHW"),
            precision=jax.lax.Precision.HIGHEST)
        return y + b.reshape(1, -1, 1, 1)

    def relu_pool(x):
        x = jnp.maximum(x, 0.0)
        return jax.lax.reduce_window(x, -jnp.inf, jax.lax.max,
                                     (1, 1, 2, 2), (1, 1, 2, 2), "VALID")

    x = jnp.maximum(conv(x_nchw, *params[0]), 0.0)
    f0 = conv(x, *params[1])
    x = relu_pool(f0)
    x = jnp.maximum(conv(x, *params[2]), 0.0)
    f1 = conv(x, *params[3])
    x = relu_pool(f1)
    x = jnp.maximum(conv(x, *params[4]), 0.0)
    f2 = conv(x, *params[5])
    return [f0, f1, f2]


if __name__ == "__main__":
    key = jax.random.PRNGKey(0)
    k_params, k_x = jax.random.split(key)

    model = FeatureExtractor(k_params)
    x = jax.random.normal(k_x, (2, 3, 16, 16), jnp.float32)

    forward = jax.jit(lambda inp: model(inp))
    feats = jax.block_until_ready(forward(x))

    refs = _ref_forward(x, model.params)
    expected_shapes = [(2, 64, 16, 16), (2, 128, 8, 8), (2, 256, 4, 4)]
    for i, (f, r, s) in enumerate(zip(feats, refs, expected_shapes)):
        assert f.shape == s, (i, f.shape, s)
        err = float(jnp.max(jnp.abs(f - r)))
        assert jnp.allclose(f, r, rtol=2e-2, atol=2e-2), (i, err)

    print("KERNEL_OK")
</pallas_src>

<mosaic_0001>
module attributes {stable_mosaic.version = 11 : i64} {
  func.func @_conv_tap_kernel(%arg0: i32, %arg1: memref<1x512x8xf32, #tpu.memory_space<vmem>>, %arg2: memref<1x8x64xf32, #tpu.memory_space<vmem>>, %arg3: memref<1x64xf32, #tpu.memory_space<vmem>>, %arg4: memref<512x64xf32, #tpu.memory_space<vmem>>, %arg5: memref<512x64xf32, #tpu.memory_space<vmem>>) attributes {dimension_semantics = [#tpu.dimension_semantics<arbitrary>], iteration_bounds = array<i64: 9>, scalar_prefetch = 0 : i64, scratch_operands = 1 : i64, tpu.core_type = #tpu.core_type<tc>, window_params = [{transform_indices = @transform_0, window_bounds = array<i64: 1, 512, 8>}, {transform_indices = @transform_1, window_bounds = array<i64: 1, 8, 64>}, {pipeline_mode = #tpu.pipeline_mode<synchronous>, transform_indices = @transform_2, window_bounds = array<i64: 1, 64>}, {pipeline_mode = #tpu.pipeline_mode<synchronous>, transform_indices = @transform_3, window_bounds = array<i64: 512, 64>}]} {
    %c0_i32 = arith.constant 0 : i32
    %0 = arith.cmpi eq, %arg0, %c0_i32 : i32
    %1 = arith.extui %0 : i1 to i32
    %c0_i32_0 = arith.constant 0 : i32
    %2 = arith.cmpi ne, %1, %c0_i32_0 : i32
    scf.if %2 {
      %cst_11 = arith.constant 0.000000e+00 : f32
      %14 = vector.broadcast %cst_11 : f32 to vector<512x64xf32>
      %c0_12 = arith.constant 0 : index
      %c0_13 = arith.constant 0 : index
      %15 = vector.load %arg5[%c0_12, %c0_13] : memref<512x64xf32, #tpu.memory_space<vmem>>, vector<512x64xf32>
      tpu.vector_store %arg5[%c0_12, %c0_13], %14 {strides = array<i32>} : memref<512x64xf32, #tpu.memory_space<vmem>>, vector<512x64xf32>,
    } else {
    }
    %c0 = arith.constant 0 : index
    %c0_1 = arith.constant 0 : index
    %3 = vector.load %arg5[%c0, %c0_1] : memref<512x64xf32, #tpu.memory_space<vmem>>, vector<512x64xf32>
    %c0_2 = arith.constant 0 : index
    %c0_3 = arith.constant 0 : index
    %c0_4 = arith.constant 0 : index
    %4 = vector.load %arg1[%c0_2, %c0_3, %c0_4] : memref<1x512x8xf32, #tpu.memory_space<vmem>>, vector<1x512x8xf32>
    %5 = vector.shape_cast %4 : vector<1x512x8xf32> to vector<512x8xf32>
    %c0_5 = arith.constant 0 : index
    %c0_6 = arith.constant 0 : index
    %c0_7 = arith.constant 0 : index
    %6 = vector.load %arg2[%c0_5, %c0_6, %c0_7] : memref<1x8x64xf32, #tpu.memory_space<vmem>>, vector<1x8x64xf32>
    %7 = vector.shape_cast %6 : vector<1x8x64xf32> to vector<8x64xf32>
    %cst = arith.constant dense<0.000000e+00> : vector<512x64xf32>
    %8 = tpu.matmul %5, %7, %cst {dimension_numbers = #tpu.dot_dimension_numbers<[1], [0], [0], [1], [0, 0, 1, 1], [], []>} : vector<512x8xf32>, vector<8x64xf32>, vector<512x64xf32> -> vector<512x64xf32>
    %9 = arith.addf %3, %8 : vector<512x64xf32>
    %c0_8 = arith.constant 0 : index
    %c0_9 = arith.constant 0 : index
    %10 = vector.load %arg5[%c0_8, %c0_9] : memref<512x64xf32, #tpu.memory_space<vmem>>, vector<512x64xf32>
    tpu.vector_store %arg5[%c0_8, %c0_9], %9 {strides = array<i32>} : memref<512x64xf32, #tpu.memory_space<vmem>>, vector<512x64xf32>,
    %c8_i32 = arith.constant 8 : i32
    %11 = arith.cmpi eq, %arg0, %c8_i32 : i32
    %12 = arith.extui %11 : i1 to i32
    %c0_i32_10 = arith.constant 0 : i32
    %13 = arith.cmpi ne, %12, %c0_i32_10 : i32
    scf.if %13 {
      %c0_11 = arith.constant 0 : index
      %c0_12 = arith.constant 0 : index
      %14 = vector.load %arg5[%c0_11, %c0_12] : memref<512x64xf32, #tpu.memory_space<vmem>>, vector<512x64xf32>
      %c0_13 = arith.constant 0 : index
      %c0_14 = arith.constant 0 : index
      %15 = vector.load %arg3[%c0_13, %c0_14] : memref<1x64xf32, #tpu.memory_space<vmem>>, vector<1x64xf32>
      %16 = vector.broadcast %15 : vector<1x64xf32> to vector<512x64xf32>
      %17 = arith.addf %14, %16 : vector<512x64xf32>
      %cst_15 = arith.constant 0.000000e+00 : f32
      %18 = vector.broadcast %cst_15 : f32 to vector<512x64xf32>
      %19 = arith.maximumf %17, %18 : vector<512x64xf32>
      %c0_16 = arith.constant 0 : index
      %c0_17 = arith.constant 0 : index
      %20 = vector.load %arg4[%c0_16, %c0_17] : memref<512x64xf32, #tpu.memory_space<vmem>>, vector<512x64xf32>
      tpu.vector_store %arg4[%c0_16, %c0_17], %19 {strides = array<i32>} : memref<512x64xf32, #tpu.memory_space<vmem>>, vector<512x64xf32>,
    } else {
    }
    return
  }
  func.func @transform_0(%arg0: i32) -> (i32, i32, i32) {
    %c0_i32 = arith.constant 0 : i32
    %c0_i32_0 = arith.constant 0 : i32
    %c0_i32_1 = arith.constant 0 : i32
    return %arg0, %c0_i32, %c0_i32_0 : i32, i32, i32
  }
  func.func @transform_1(%arg0: i32) -> (i32, i32, i32) {
    %c0_i32 = arith.constant 0 : i32
    %c0_i32_0 = arith.constant 0 : i32
    %c0_i32_1 = arith.constant 0 : i32
    return %arg0, %c0_i32, %c0_i32_0 : i32, i32, i32
  }
  func.func @transform_2(%arg0: i32) -> (i32, i32) {
    %c0_i32 = arith.constant 0 : i32
    %c0_i32_0 = arith.constant 0 : i32
    %c0_i32_1 = arith.constant 0 : i32
    return %c0_i32, %c0_i32_0 : i32, i32
  }
  func.func @transform_3(%arg0: i32) -> (i32, i32) {
    %c0_i32 = arith.constant 0 : i32
    %c0_i32_0 = arith.constant 0 : i32
    %c0_i32_1 = arith.constant 0 : i32
    return %c0_i32, %c0_i32_0 : i32, i32
  }
}

module attributes {stable_mosaic.version = 11 : i64} {
  func.func @_conv_tap_kernel(%arg0: i32, %arg1: memref<1x512x64xf32, #tpu.memory_space<vmem>>, %arg2: memref<1x64x64xf32, #tpu.memory_space<vmem>>, %arg3: memref<1x64xf32, #tpu.memory_space<vmem>>, %arg4: memref<512x64xf32, #tpu.memory_space<vmem>>, %arg5: memref<512x64xf32, #tpu.memory_space<vmem>>) attributes {dimension_semantics = [#tpu.dimension_semantics<arbitrary>], iteration_bounds = array<i64: 9>, scalar_prefetch = 0 : i64, scratch_operands = 1 : i64, tpu.core_type = #tpu.core_type<tc>, window_params = [{transform_indices = @transform_0, window_bounds = array<i64: 1, 512, 64>}, {transform_indices = @transform_1, window_bounds = array<i64: 1, 64, 64>}, {pipeline_mode = #tpu.pipeline_mode<synchronous>, transform_indices = @transform_2, window_bounds = array<i64: 1, 64>}, {pipeline_mode = #tpu.pipeline_mode<synchronous>, transform_indices = @transform_3, window_bounds = array<i64: 512, 64>}]} {
    %c0_i32 = arith.constant 0 : i32
    %0 = arith.cmpi eq, %arg0, %c0_i32 : i32
    %1 = arith.extui %0 : i1 to i32
    %c0_i32_0 = arith.constant 0 : i32
    %2 = arith.cmpi ne, %1, %c0_i32_0 : i32
    scf.if %2 {
      %cst_11 = arith.constant 0.000000e+00 : f32
      %14 = vector.broadcast %cst_11 : f32 to vector<512x64xf32>
      %c0_12 = arith.constant 0 : index
      %c0_13 = arith.constant 0 : index
      %15 = vector.load %arg5[%c0_12, %c0_13] : memref<512x64xf32, #tpu.memory_space<vmem>>, vector<512x64xf32>
      tpu.vector_store %arg5[%c0_12, %c0_13], %14 {strides = array<i32>} : memref<512x64xf32, #tpu.memory_space<vmem>>, vector<512x64xf32>,
    } else {
    }
    %c0 = arith.constant 0 : index
    %c0_1 = arith.constant 0 : index
    %3 = vector.load %arg5[%c0, %c0_1] : memref<512x64xf32, #tpu.memory_space<vmem>>, vector<512x64xf32>
    %c0_2 = arith.constant 0 : index
    %c0_3 = arith.constant 0 : index
    %c0_4 = arith.constant 0 : index
    %4 = vector.load %arg1[%c0_2, %c0_3, %c0_4] : memref<1x512x64xf32, #tpu.memory_space<vmem>>, vector<1x512x64xf32>
    %5 = vector.shape_cast %4 : vector<1x512x64xf32> to vector<512x64xf32>
    %c0_5 = arith.constant 0 : index
    %c0_6 = arith.constant 0 : index
    %c0_7 = arith.constant 0 : index
    %6 = vector.load %arg2[%c0_5, %c0_6, %c0_7] : memref<1x64x64xf32, #tpu.memory_space<vmem>>, vector<1x64x64xf32>
    %7 = vector.shape_cast %6 : vector<1x64x64xf32> to vector<64x64xf32>
    %cst = arith.constant dense<0.000000e+00> : vector<512x64xf32>
    %8 = tpu.matmul %5, %7, %cst {dimension_numbers = #tpu.dot_dimension_numbers<[1], [0], [0], [1], [0, 0, 1, 1], [], []>} : vector<512x64xf32>, vector<64x64xf32>, vector<512x64xf32> -> vector<512x64xf32>
    %9 = arith.addf %3, %8 : vector<512x64xf32>
    %c0_8 = arith.constant 0 : index
    %c0_9 = arith.constant 0 : index
    %10 = vector.load %arg5[%c0_8, %c0_9] : memref<512x64xf32, #tpu.memory_space<vmem>>, vector<512x64xf32>
    tpu.vector_store %arg5[%c0_8, %c0_9], %9 {strides = array<i32>} : memref<512x64xf32, #tpu.memory_space<vmem>>, vector<512x64xf32>,
    %c8_i32 = arith.constant 8 : i32
    %11 = arith.cmpi eq, %arg0, %c8_i32 : i32
    %12 = arith.extui %11 : i1 to i32
    %c0_i32_10 = arith.constant 0 : i32
    %13 = arith.cmpi ne, %12, %c0_i32_10 : i32
    scf.if %13 {
      %c0_11 = arith.constant 0 : index
      %c0_12 = arith.constant 0 : index
      %14 = vector.load %arg5[%c0_11, %c0_12] : memref<512x64xf32, #tpu.memory_space<vmem>>, vector<512x64xf32>
      %c0_13 = arith.constant 0 : index
      %c0_14 = arith.constant 0 : index
      %15 = vector.load %arg3[%c0_13, %c0_14] : memref<1x64xf32, #tpu.memory_space<vmem>>, vector<1x64xf32>
      %16 = vector.broadcast %15 : vector<1x64xf32> to vector<512x64xf32>
      %17 = arith.addf %14, %16 : vector<512x64xf32>
      %c0_15 = arith.constant 0 : index
      %c0_16 = arith.constant 0 : index
      %18 = vector.load %arg4[%c0_15, %c0_16] : memref<512x64xf32, #tpu.memory_space<vmem>>, vector<512x64xf32>
      tpu.vector_store %arg4[%c0_15, %c0_16], %17 {strides = array<i32>} : memref<512x64xf32, #tpu.memory_space<vmem>>, vector<512x64xf32>,
    } else {
    }
    return
  }
  func.func @transform_0(%arg0: i32) -> (i32, i32, i32) {
    %c0_i32 = arith.constant 0 : i32
    %c0_i32_0 = arith.constant 0 : i32
    %c0_i32_1 = arith.constant 0 : i32
    return %arg0, %c0_i32, %c0_i32_0 : i32, i32, i32
  }
  func.func @transform_1(%arg0: i32) -> (i32, i32, i32) {
    %c0_i32 = arith.constant 0 : i32
    %c0_i32_0 = arith.constant 0 : i32
    %c0_i32_1 = arith.constant 0 : i32
    return %arg0, %c0_i32, %c0_i32_0 : i32, i32, i32
  }
  func.func @transform_2(%arg0: i32) -> (i32, i32) {
    %c0_i32 = arith.constant 0 : i32
    %c0_i32_0 = arith.constant 0 : i32
    %c0_i32_1 = arith.constant 0 : i32
    return %c0_i32, %c0_i32_0 : i32, i32
  }
  func.func @transform_3(%arg0: i32) -> (i32, i32) {
    %c0_i32 = arith.constant 0 : i32
    %c0_i32_0 = arith.constant 0 : i32
    %c0_i32_1 = arith.constant 0 : i32
    return %c0_i32, %c0_i32_0 : i32, i32
  }
}

module attributes {stable_mosaic.version = 11 : i64} {
  func.func @_relu_maxpool_kernel(%arg0: i32, %arg1: memref<4x128x64xf32, #tpu.memory_space<vmem>>, %arg2: memref<128x64xf32, #tpu.memory_space<vmem>>) attributes {dimension_semantics = [#tpu.dimension_semantics<arbitrary>], iteration_bounds = array<i64: 1>, scalar_prefetch = 0 : i64, scratch_operands = 0 : i64, tpu.core_type = #tpu.core_type<tc>, window_params = [{pipeline_mode = #tpu.pipeline_mode<synchronous>, transform_indices = @transform_0, window_bounds = array<i64: 4, 128, 64>}, {pipeline_mode = #tpu.pipeline_mode<synchronous>, transform_indices = @transform_1, window_bounds = array<i64: 128, 64>}]} {
    %c0 = arith.constant 0 : index
    %c0_0 = arith.constant 0 : index
    %c0_1 = arith.constant 0 : index
    %0 = vector.load %arg1[%c0, %c0_0, %c0_1] : memref<4x128x64xf32, #tpu.memory_space<vmem>>, vector<1x128x64xf32>
    %1 = vector.shape_cast %0 : vector<1x128x64xf32> to vector<128x64xf32>
    %c1 = arith.constant 1 : index
    %c0_2 = arith.constant 0 : index
    %c0_3 = arith.constant 0 : index
    %2 = vector.load %arg1[%c1, %c0_2, %c0_3] : memref<4x128x64xf32, #tpu.memory_space<vmem>>, vector<1x128x64xf32>
    %3 = vector.shape_cast %2 : vector<1x128x64xf32> to vector<128x64xf32>
    %4 = arith.maximumf %1, %3 : vector<128x64xf32>
    %c2 = arith.constant 2 : index
    %c0_4 = arith.constant 0 : index
    %c0_5 = arith.constant 0 : index
    %5 = vector.load %arg1[%c2, %c0_4, %c0_5] : memref<4x128x64xf32, #tpu.memory_space<vmem>>, vector<1x128x64xf32>
    %6 = vector.shape_cast %5 : vector<1x128x64xf32> to vector<128x64xf32>
    %c3 = arith.constant 3 : index
    %c0_6 = arith.constant 0 : index
    %c0_7 = arith.constant 0 : index
    %7 = vector.load %arg1[%c3, %c0_6, %c0_7] : memref<4x128x64xf32, #tpu.memory_space<vmem>>, vector<1x128x64xf32>
    %8 = vector.shape_cast %7 : vector<1x128x64xf32> to vector<128x64xf32>
    %9 = arith.maximumf %6, %8 : vector<128x64xf32>
    %10 = arith.maximumf %4, %9 : vector<128x64xf32>
    %cst = arith.constant 0.000000e+00 : f32
    %11 = vector.broadcast %cst : f32 to vector<128x64xf32>
    %12 = arith.maximumf %10, %11 : vector<128x64xf32>
    %c0_8 = arith.constant 0 : index
    %c0_9 = arith.constant 0 : index
    %13 = vector.load %arg2[%c0_8, %c0_9] : memref<128x64xf32, #tpu.memory_space<vmem>>, vector<128x64xf32>
    tpu.vector_store %arg2[%c0_8, %c0_9], %12 {strides = array<i32>} : memref<128x64xf32, #tpu.memory_space<vmem>>, vector<128x64xf32>,
    return
  }
  func.func @transform_0(%arg0: i32) -> (i32, i32, i32) {
    %c0_i32 = arith.constant 0 : i32
    %c0_i32_0 = arith.constant 0 : i32
    %c0_i32_1 = arith.constant 0 : i32
    %c0_i32_2 = arith.constant 0 : i32
    return %c0_i32, %c0_i32_0, %c0_i32_1 : i32, i32, i32
  }
  func.func @transform_1(%arg0: i32) -> (i32, i32) {
    %c0_i32 = arith.constant 0 : i32
    %c0_i32_0 = arith.constant 0 : i32
    %c0_i32_1 = arith.constant 0 : i32
    return %c0_i32, %c0_i32_0 : i32, i32
  }
}

module attributes {stable_mosaic.version = 11 : i64} {
  func.func @_conv_tap_kernel(%arg0: i32, %arg1: memref<1x128x64xf32, #tpu.memory_space<vmem>>, %arg2: memref<1x64x128xf32, #tpu.memory_space<vmem>>, %arg3: memref<1x128xf32, #tpu.memory_space<vmem>>, %arg4: memref<128x128xf32, #tpu.memory_space<vmem>>, %arg5: memref<128x128xf32, #tpu.memory_space<vmem>>) attributes {dimension_semantics = [#tpu.dimension_semantics<arbitrary>], iteration_bounds = array<i64: 9>, scalar_prefetch = 0 : i64, scratch_operands = 1 : i64, tpu.core_type = #tpu.core_type<tc>, window_params = [{transform_indices = @transform_0, window_bounds = array<i64: 1, 128, 64>}, {transform_indices = @transform_1, window_bounds = array<i64: 1, 64, 128>}, {pipeline_mode = #tpu.pipeline_mode<synchronous>, transform_indices = @transform_2, window_bounds = array<i64: 1, 128>}, {pipeline_mode = #tpu.pipeline_mode<synchronous>, transform_indices = @transform_3, window_bounds = array<i64: 128, 128>}]} {
    %c0_i32 = arith.constant 0 : i32
    %0 = arith.cmpi eq, %arg0, %c0_i32 : i32
    %1 = arith.extui %0 : i1 to i32
    %c0_i32_0 = arith.constant 0 : i32
    %2 = arith.cmpi ne, %1, %c0_i32_0 : i32
    scf.if %2 {
      %cst_11 = arith.constant 0.000000e+00 : f32
      %14 = vector.broadcast %cst_11 : f32 to vector<128x128xf32>
      %c0_12 = arith.constant 0 : index
      %c0_13 = arith.constant 0 : index
      %15 = vector.load %arg5[%c0_12, %c0_13] : memref<128x128xf32, #tpu.memory_space<vmem>>, vector<128x128xf32>
      tpu.vector_store %arg5[%c0_12, %c0_13], %14 {strides = array<i32>} : memref<128x128xf32, #tpu.memory_space<vmem>>, vector<128x128xf32>,
    } else {
    }
    %c0 = arith.constant 0 : index
    %c0_1 = arith.constant 0 : index
    %3 = vector.load %arg5[%c0, %c0_1] : memref<128x128xf32, #tpu.memory_space<vmem>>, vector<128x128xf32>
    %c0_2 = arith.constant 0 : index
    %c0_3 = arith.constant 0 : index
    %c0_4 = arith.constant 0 : index
    %4 = vector.load %arg1[%c0_2, %c0_3, %c0_4] : memref<1x128x64xf32, #tpu.memory_space<vmem>>, vector<1x128x64xf32>
    %5 = vector.shape_cast %4 : vector<1x128x64xf32> to vector<128x64xf32>
    %c0_5 = arith.constant 0 : index
    %c0_6 = arith.constant 0 : index
    %c0_7 = arith.constant 0 : index
    %6 = vector.load %arg2[%c0_5, %c0_6, %c0_7] : memref<1x64x128xf32, #tpu.memory_space<vmem>>, vector<1x64x128xf32>
    %7 = vector.shape_cast %6 : vector<1x64x128xf32> to vector<64x128xf32>
    %cst = arith.constant dense<0.000000e+00> : vector<128x128xf32>
    %8 = tpu.matmul %5, %7, %cst {dimension_numbers = #tpu.dot_dimension_numbers<[1], [0], [0], [1], [0, 0, 1, 1], [], []>} : vector<128x64xf32>, vector<64x128xf32>, vector<128x128xf32> -> vector<128x128xf32>
    %9 = arith.addf %3, %8 : vector<128x128xf32>
    %c0_8 = arith.constant 0 : index
    %c0_9 = arith.constant 0 : index
    %10 = vector.load %arg5[%c0_8, %c0_9] : memref<128x128xf32, #tpu.memory_space<vmem>>, vector<128x128xf32>
    tpu.vector_store %arg5[%c0_8, %c0_9], %9 {strides = array<i32>} : memref<128x128xf32, #tpu.memory_space<vmem>>, vector<128x128xf32>,
    %c8_i32 = arith.constant 8 : i32
    %11 = arith.cmpi eq, %arg0, %c8_i32 : i32
    %12 = arith.extui %11 : i1 to i32
    %c0_i32_10 = arith.constant 0 : i32
    %13 = arith.cmpi ne, %12, %c0_i32_10 : i32
    scf.if %13 {
      %c0_11 = arith.constant 0 : index
      %c0_12 = arith.constant 0 : index
      %14 = vector.load %arg5[%c0_11, %c0_12] : memref<128x128xf32, #tpu.memory_space<vmem>>, vector<128x128xf32>
      %c0_13 = arith.constant 0 : index
      %c0_14 = arith.constant 0 : index
      %15 = vector.load %arg3[%c0_13, %c0_14] : memref<1x128xf32, #tpu.memory_space<vmem>>, vector<1x128xf32>
      %16 = vector.broadcast %15 : vector<1x128xf32> to vector<128x128xf32>
      %17 = arith.addf %14, %16 : vector<128x128xf32>
      %cst_15 = arith.constant 0.000000e+00 : f32
      %18 = vector.broadcast %cst_15 : f32 to vector<128x128xf32>
      %19 = arith.maximumf %17, %18 : vector<128x128xf32>
      %c0_16 = arith.constant 0 : index
      %c0_17 = arith.constant 0 : index
      %20 = vector.load %arg4[%c0_16, %c0_17] : memref<128x128xf32, #tpu.memory_space<vmem>>, vector<128x128xf32>
      tpu.vector_store %arg4[%c0_16, %c0_17], %19 {strides = array<i32>} : memref<128x128xf32, #tpu.memory_space<vmem>>, vector<128x128xf32>,
    } else {
    }
    return
  }
  func.func @transform_0(%arg0: i32) -> (i32, i32, i32) {
    %c0_i32 = arith.constant 0 : i32
    %c0_i32_0 = arith.constant 0 : i32
    %c0_i32_1 = arith.constant 0 : i32
    return %arg0, %c0_i32, %c0_i32_0 : i32, i32, i32
  }
  func.func @transform_1(%arg0: i32) -> (i32, i32, i32) {
    %c0_i32 = arith.constant 0 : i32
    %c0_i32_0 = arith.constant 0 : i32
    %c0_i32_1 = arith.constant 0 : i32
    return %arg0, %c0_i32, %c0_i32_0 : i32, i32, i32
  }
  func.func @transform_2(%arg0: i32) -> (i32, i32) {
    %c0_i32 = arith.constant 0 : i32
    %c0_i32_0 = arith.constant 0 : i32
    %c0_i32_1 = arith.constant 0 : i32
    return %c0_i32, %c0_i32_0 : i32, i32
  }
  func.func @transform_3(%arg0: i32) -> (i32, i32) {
    %c0_i32 = arith.constant 0 : i32
    %c0_i32_0 = arith.constant 0 : i32
    %c0_i32_1 = arith.constant 0 : i32
    return %c0_i32, %c0_i32_0 : i32, i32
  }
}

module attributes {stable_mosaic.version = 11 : i64} {
  func.func @_conv_tap_kernel(%arg0: i32, %arg1: memref<1x128x128xf32, #tpu.memory_space<vmem>>, %arg2: memref<1x128x128xf32, #tpu.memory_space<vmem>>, %arg3: memref<1x128xf32, #tpu.memory_space<vmem>>, %arg4: memref<128x128xf32, #tpu.memory_space<vmem>>, %arg5: memref<128x128xf32, #tpu.memory_space<vmem>>) attributes {dimension_semantics = [#tpu.dimension_semantics<arbitrary>], iteration_bounds = array<i64: 9>, scalar_prefetch = 0 : i64, scratch_operands = 1 : i64, tpu.core_type = #tpu.core_type<tc>, window_params = [{transform_indices = @transform_0, window_bounds = array<i64: 1, 128, 128>}, {transform_indices = @transform_1, window_bounds = array<i64: 1, 128, 128>}, {pipeline_mode = #tpu.pipeline_mode<synchronous>, transform_indices = @transform_2, window_bounds = array<i64: 1, 128>}, {pipeline_mode = #tpu.pipeline_mode<synchronous>, transform_indices = @transform_3, window_bounds = array<i64: 128, 128>}]} {
    %c0_i32 = arith.constant 0 : i32
    %0 = arith.cmpi eq, %arg0, %c0_i32 : i32
    %1 = arith.extui %0 : i1 to i32
    %c0_i32_0 = arith.constant 0 : i32
    %2 = arith.cmpi ne, %1, %c0_i32_0 : i32
    scf.if %2 {
      %cst_11 = arith.constant 0.000000e+00 : f32
      %14 = vector.broadcast %cst_11 : f32 to vector<128x128xf32>
      %c0_12 = arith.constant 0 : index
      %c0_13 = arith.constant 0 : index
      %15 = vector.load %arg5[%c0_12, %c0_13] : memref<128x128xf32, #tpu.memory_space<vmem>>, vector<128x128xf32>
      tpu.vector_store %arg5[%c0_12, %c0_13], %14 {strides = array<i32>} : memref<128x128xf32, #tpu.memory_space<vmem>>, vector<128x128xf32>,
    } else {
    }
    %c0 = arith.constant 0 : index
    %c0_1 = arith.constant 0 : index
    %3 = vector.load %arg5[%c0, %c0_1] : memref<128x128xf32, #tpu.memory_space<vmem>>, vector<128x128xf32>
    %c0_2 = arith.constant 0 : index
    %c0_3 = arith.constant 0 : index
    %c0_4 = arith.constant 0 : index
    %4 = vector.load %arg1[%c0_2, %c0_3, %c0_4] : memref<1x128x128xf32, #tpu.memory_space<vmem>>, vector<1x128x128xf32>
    %5 = vector.shape_cast %4 : vector<1x128x128xf32> to vector<128x128xf32>
    %c0_5 = arith.constant 0 : index
    %c0_6 = arith.constant 0 : index
    %c0_7 = arith.constant 0 : index
    %6 = vector.load %arg2[%c0_5, %c0_6, %c0_7] : memref<1x128x128xf32, #tpu.memory_space<vmem>>, vector<1x128x128xf32>
    %7 = vector.shape_cast %6 : vector<1x128x128xf32> to vector<128x128xf32>
    %cst = arith.constant dense<0.000000e+00> : vector<128x128xf32>
    %8 = tpu.matmul %5, %7, %cst {dimension_numbers = #tpu.dot_dimension_numbers<[1], [0], [0], [1], [0, 0, 1, 1], [], []>} : vector<128x128xf32>, vector<128x128xf32>, vector<128x128xf32> -> vector<128x128xf32>
    %9 = arith.addf %3, %8 : vector<128x128xf32>
    %c0_8 = arith.constant 0 : index
    %c0_9 = arith.constant 0 : index
    %10 = vector.load %arg5[%c0_8, %c0_9] : memref<128x128xf32, #tpu.memory_space<vmem>>, vector<128x128xf32>
    tpu.vector_store %arg5[%c0_8, %c0_9], %9 {strides = array<i32>} : memref<128x128xf32, #tpu.memory_space<vmem>>, vector<128x128xf32>,
    %c8_i32 = arith.constant 8 : i32
    %11 = arith.cmpi eq, %arg0, %c8_i32 : i32
    %12 = arith.extui %11 : i1 to i32
    %c0_i32_10 = arith.constant 0 : i32
    %13 = arith.cmpi ne, %12, %c0_i32_10 : i32
    scf.if %13 {
      %c0_11 = arith.constant 0 : index
      %c0_12 = arith.constant 0 : index
      %14 = vector.load %arg5[%c0_11, %c0_12] : memref<128x128xf32, #tpu.memory_space<vmem>>, vector<128x128xf32>
      %c0_13 = arith.constant 0 : index
      %c0_14 = arith.constant 0 : index
      %15 = vector.load %arg3[%c0_13, %c0_14] : memref<1x128xf32, #tpu.memory_space<vmem>>, vector<1x128xf32>
      %16 = vector.broadcast %15 : vector<1x128xf32> to vector<128x128xf32>
      %17 = arith.addf %14, %16 : vector<128x128xf32>
      %c0_15 = arith.constant 0 : index
      %c0_16 = arith.constant 0 : index
      %18 = vector.load %arg4[%c0_15, %c0_16] : memref<128x128xf32, #tpu.memory_space<vmem>>, vector<128x128xf32>
      tpu.vector_store %arg4[%c0_15, %c0_16], %17 {strides = array<i32>} : memref<128x128xf32, #tpu.memory_space<vmem>>, vector<128x128xf32>,
    } else {
    }
    return
  }
  func.func @transform_0(%arg0: i32) -> (i32, i32, i32) {
    %c0_i32 = arith.constant 0 : i32
    %c0_i32_0 = arith.constant 0 : i32
    %c0_i32_1 = arith.constant 0 : i32
    return %arg0, %c0_i32, %c0_i32_0 : i32, i32, i32
  }
  func.func @transform_1(%arg0: i32) -> (i32, i32, i32) {
    %c0_i32 = arith.constant 0 : i32
    %c0_i32_0 = arith.constant 0 : i32
    %c0_i32_1 = arith.constant 0 : i32
    return %arg0, %c0_i32, %c0_i32_0 : i32, i32, i32
  }
  func.func @transform_2(%arg0: i32) -> (i32, i32) {
    %c0_i32 = arith.constant 0 : i32
    %c0_i32_0 = arith.constant 0 : i32
    %c0_i32_1 = arith.constant 0 : i32
    return %c0_i32, %c0_i32_0 : i32, i32
  }
  func.func @transform_3(%arg0: i32) -> (i32, i32) {
    %c0_i32 = arith.constant 0 : i32
    %c0_i32_0 = arith.constant 0 : i32
    %c0_i32_1 = arith.constant 0 : i32
    return %c0_i32, %c0_i32_0 : i32, i32
  }
}

module attributes {stable_mosaic.version = 11 : i64} {
  func.func @_relu_maxpool_kernel(%arg0: i32, %arg1: memref<4x32x128xf32, #tpu.memory_space<vmem>>, %arg2: memref<32x128xf32, #tpu.memory_space<vmem>>) attributes {dimension_semantics = [#tpu.dimension_semantics<arbitrary>], iteration_bounds = array<i64: 1>, scalar_prefetch = 0 : i64, scratch_operands = 0 : i64, tpu.core_type = #tpu.core_type<tc>, window_params = [{pipeline_mode = #tpu.pipeline_mode<synchronous>, transform_indices = @transform_0, window_bounds = array<i64: 4, 32, 128>}, {pipeline_mode = #tpu.pipeline_mode<synchronous>, transform_indices = @transform_1, window_bounds = array<i64: 32, 128>}]} {
    %c0 = arith.constant 0 : index
    %c0_0 = arith.constant 0 : index
    %c0_1 = arith.constant 0 : index
    %0 = vector.load %arg1[%c0, %c0_0, %c0_1] : memref<4x32x128xf32, #tpu.memory_space<vmem>>, vector<1x32x128xf32>
    %1 = vector.shape_cast %0 : vector<1x32x128xf32> to vector<32x128xf32>
    %c1 = arith.constant 1 : index
    %c0_2 = arith.constant 0 : index
    %c0_3 = arith.constant 0 : index
    %2 = vector.load %arg1[%c1, %c0_2, %c0_3] : memref<4x32x128xf32, #tpu.memory_space<vmem>>, vector<1x32x128xf32>
    %3 = vector.shape_cast %2 : vector<1x32x128xf32> to vector<32x128xf32>
    %4 = arith.maximumf %1, %3 : vector<32x128xf32>
    %c2 = arith.constant 2 : index
    %c0_4 = arith.constant 0 : index
    %c0_5 = arith.constant 0 : index
    %5 = vector.load %arg1[%c2, %c0_4, %c0_5] : memref<4x32x128xf32, #tpu.memory_space<vmem>>, vector<1x32x128xf32>
    %6 = vector.shape_cast %5 : vector<1x32x128xf32> to vector<32x128xf32>
    %c3 = arith.constant 3 : index
    %c0_6 = arith.constant 0 : index
    %c0_7 = arith.constant 0 : index
    %7 = vector.load %arg1[%c3, %c0_6, %c0_7] : memref<4x32x128xf32, #tpu.memory_space<vmem>>, vector<1x32x128xf32>
    %8 = vector.shape_cast %7 : vector<1x32x128xf32> to vector<32x128xf32>
    %9 = arith.maximumf %6, %8 : vector<32x128xf32>
    %10 = arith.maximumf %4, %9 : vector<32x128xf32>
    %cst = arith.constant 0.000000e+00 : f32
    %11 = vector.broadcast %cst : f32 to vector<32x128xf32>
    %12 = arith.maximumf %10, %11 : vector<32x128xf32>
    %c0_8 = arith.constant 0 : index
    %c0_9 = arith.constant 0 : index
    %13 = vector.load %arg2[%c0_8, %c0_9] : memref<32x128xf32, #tpu.memory_space<vmem>>, vector<32x128xf32>
    tpu.vector_store %arg2[%c0_8, %c0_9], %12 {strides = array<i32>} : memref<32x128xf32, #tpu.memory_space<vmem>>, vector<32x128xf32>,
    return
  }
  func.func @transform_0(%arg0: i32) -> (i32, i32, i32) {
    %c0_i32 = arith.constant 0 : i32
    %c0_i32_0 = arith.constant 0 : i32
    %c0_i32_1 = arith.constant 0 : i32
    %c0_i32_2 = arith.constant 0 : i32
    return %c0_i32, %c0_i32_0, %c0_i32_1 : i32, i32, i32
  }
  func.func @transform_1(%arg0: i32) -> (i32, i32) {
    %c0_i32 = arith.constant 0 : i32
    %c0_i32_0 = arith.constant 0 : i32
    %c0_i32_1 = arith.constant 0 : i32
    return %c0_i32, %c0_i32_0 : i32, i32
  }
}

module attributes {stable_mosaic.version = 11 : i64} {
  func.func @_conv_tap_kernel(%arg0: i32, %arg1: memref<1x32x128xf32, #tpu.memory_space<vmem>>, %arg2: memref<1x128x256xf32, #tpu.memory_space<vmem>>, %arg3: memref<1x256xf32, #tpu.memory_space<vmem>>, %arg4: memref<32x256xf32, #tpu.memory_space<vmem>>, %arg5: memref<32x256xf32, #tpu.memory_space<vmem>>) attributes {dimension_semantics = [#tpu.dimension_semantics<arbitrary>], iteration_bounds = array<i64: 9>, scalar_prefetch = 0 : i64, scratch_operands = 1 : i64, tpu.core_type = #tpu.core_type<tc>, window_params = [{transform_indices = @transform_0, window_bounds = array<i64: 1, 32, 128>}, {transform_indices = @transform_1, window_bounds = array<i64: 1, 128, 256>}, {pipeline_mode = #tpu.pipeline_mode<synchronous>, transform_indices = @transform_2, window_bounds = array<i64: 1, 256>}, {pipeline_mode = #tpu.pipeline_mode<synchronous>, transform_indices = @transform_3, window_bounds = array<i64: 32, 256>}]} {
    %c0_i32 = arith.constant 0 : i32
    %0 = arith.cmpi eq, %arg0, %c0_i32 : i32
    %1 = arith.extui %0 : i1 to i32
    %c0_i32_0 = arith.constant 0 : i32
    %2 = arith.cmpi ne, %1, %c0_i32_0 : i32
    scf.if %2 {
      %cst_11 = arith.constant 0.000000e+00 : f32
      %14 = vector.broadcast %cst_11 : f32 to vector<32x256xf32>
      %c0_12 = arith.constant 0 : index
      %c0_13 = arith.constant 0 : index
      %15 = vector.load %arg5[%c0_12, %c0_13] : memref<32x256xf32, #tpu.memory_space<vmem>>, vector<32x256xf32>
      tpu.vector_store %arg5[%c0_12, %c0_13], %14 {strides = array<i32>} : memref<32x256xf32, #tpu.memory_space<vmem>>, vector<32x256xf32>,
    } else {
    }
    %c0 = arith.constant 0 : index
    %c0_1 = arith.constant 0 : index
    %3 = vector.load %arg5[%c0, %c0_1] : memref<32x256xf32, #tpu.memory_space<vmem>>, vector<32x256xf32>
    %c0_2 = arith.constant 0 : index
    %c0_3 = arith.constant 0 : index
    %c0_4 = arith.constant 0 : index
    %4 = vector.load %arg1[%c0_2, %c0_3, %c0_4] : memref<1x32x128xf32, #tpu.memory_space<vmem>>, vector<1x32x128xf32>
    %5 = vector.shape_cast %4 : vector<1x32x128xf32> to vector<32x128xf32>
    %c0_5 = arith.constant 0 : index
    %c0_6 = arith.constant 0 : index
    %c0_7 = arith.constant 0 : index
    %6 = vector.load %arg2[%c0_5, %c0_6, %c0_7] : memref<1x128x256xf32, #tpu.memory_space<vmem>>, vector<1x128x256xf32>
    %7 = vector.shape_cast %6 : vector<1x128x256xf32> to vector<128x256xf32>
    %cst = arith.constant dense<0.000000e+00> : vector<32x256xf32>
    %8 = tpu.matmul %5, %7, %cst {dimension_numbers = #tpu.dot_dimension_numbers<[1], [0], [0], [1], [0, 0, 1, 1], [], []>} : vector<32x128xf32>, vector<128x256xf32>, vector<32x256xf32> -> vector<32x256xf32>
    %9 = arith.addf %3, %8 : vector<32x256xf32>
    %c0_8 = arith.constant 0 : index
    %c0_9 = arith.constant 0 : index
    %10 = vector.load %arg5[%c0_8, %c0_9] : memref<32x256xf32, #tpu.memory_space<vmem>>, vector<32x256xf32>
    tpu.vector_store %arg5[%c0_8, %c0_9], %9 {strides = array<i32>} : memref<32x256xf32, #tpu.memory_space<vmem>>, vector<32x256xf32>,
    %c8_i32 = arith.constant 8 : i32
    %11 = arith.cmpi eq, %arg0, %c8_i32 : i32
    %12 = arith.extui %11 : i1 to i32
    %c0_i32_10 = arith.constant 0 : i32
    %13 = arith.cmpi ne, %12, %c0_i32_10 : i32
    scf.if %13 {
      %c0_11 = arith.constant 0 : index
      %c0_12 = arith.constant 0 : index
      %14 = vector.load %arg5[%c0_11, %c0_12] : memref<32x256xf32, #tpu.memory_space<vmem>>, vector<32x256xf32>
      %c0_13 = arith.constant 0 : index
      %c0_14 = arith.constant 0 : index
      %15 = vector.load %arg3[%c0_13, %c0_14] : memref<1x256xf32, #tpu.memory_space<vmem>>, vector<1x256xf32>
      %16 = vector.broadcast %15 : vector<1x256xf32> to vector<32x256xf32>
      %17 = arith.addf %14, %16 : vector<32x256xf32>
      %cst_15 = arith.constant 0.000000e+00 : f32
      %18 = vector.broadcast %cst_15 : f32 to vector<32x256xf32>
      %19 = arith.maximumf %17, %18 : vector<32x256xf32>
      %c0_16 = arith.constant 0 : index
      %c0_17 = arith.constant 0 : index
      %20 = vector.load %arg4[%c0_16, %c0_17] : memref<32x256xf32, #tpu.memory_space<vmem>>, vector<32x256xf32>
      tpu.vector_store %arg4[%c0_16, %c0_17], %19 {strides = array<i32>} : memref<32x256xf32, #tpu.memory_space<vmem>>, vector<32x256xf32>,
    } else {
    }
    return
  }
  func.func @transform_0(%arg0: i32) -> (i32, i32, i32) {
    %c0_i32 = arith.constant 0 : i32
    %c0_i32_0 = arith.constant 0 : i32
    %c0_i32_1 = arith.constant 0 : i32
    return %arg0, %c0_i32, %c0_i32_0 : i32, i32, i32
  }
  func.func @transform_1(%arg0: i32) -> (i32, i32, i32) {
    %c0_i32 = arith.constant 0 : i32
    %c0_i32_0 = arith.constant 0 : i32
    %c0_i32_1 = arith.constant 0 : i32
    return %arg0, %c0_i32, %c0_i32_0 : i32, i32, i32
  }
  func.func @transform_2(%arg0: i32) -> (i32, i32) {
    %c0_i32 = arith.constant 0 : i32
    %c0_i32_0 = arith.constant 0 : i32
    %c0_i32_1 = arith.constant 0 : i32
    return %c0_i32, %c0_i32_0 : i32, i32
  }
  func.func @transform_3(%arg0: i32) -> (i32, i32) {
    %c0_i32 = arith.constant 0 : i32
    %c0_i32_0 = arith.constant 0 : i32
    %c0_i32_1 = arith.constant 0 : i32
    return %c0_i32, %c0_i32_0 : i32, i32
  }
}

module attributes {stable_mosaic.version = 11 : i64} {
  func.func @_conv_tap_kernel(%arg0: i32, %arg1: memref<1x32x256xf32, #tpu.memory_space<vmem>>, %arg2: memref<1x256x256xf32, #tpu.memory_space<vmem>>, %arg3: memref<1x256xf32, #tpu.memory_space<vmem>>, %arg4: memref<32x256xf32, #tpu.memory_space<vmem>>, %arg5: memref<32x256xf32, #tpu.memory_space<vmem>>) attributes {dimension_semantics = [#tpu.dimension_semantics<arbitrary>], iteration_bounds = array<i64: 9>, scalar_prefetch = 0 : i64, scratch_operands = 1 : i64, tpu.core_type = #tpu.core_type<tc>, window_params = [{transform_indices = @transform_0, window_bounds = array<i64: 1, 32, 256>}, {transform_indices = @transform_1, window_bounds = array<i64: 1, 256, 256>}, {pipeline_mode = #tpu.pipeline_mode<synchronous>, transform_indices = @transform_2, window_bounds = array<i64: 1, 256>}, {pipeline_mode = #tpu.pipeline_mode<synchronous>, transform_indices = @transform_3, window_bounds = array<i64: 32, 256>}]} {
    %c0_i32 = arith.constant 0 : i32
    %0 = arith.cmpi eq, %arg0, %c0_i32 : i32
    %1 = arith.extui %0 : i1 to i32
    %c0_i32_0 = arith.constant 0 : i32
    %2 = arith.cmpi ne, %1, %c0_i32_0 : i32
    scf.if %2 {
      %cst_11 = arith.constant 0.000000e+00 : f32
      %14 = vector.broadcast %cst_11 : f32 to vector<32x256xf32>
      %c0_12 = arith.constant 0 : index
      %c0_13 = arith.constant 0 : index
      %15 = vector.load %arg5[%c0_12, %c0_13] : memref<32x256xf32, #tpu.memory_space<vmem>>, vector<32x256xf32>
      tpu.vector_store %arg5[%c0_12, %c0_13], %14 {strides = array<i32>} : memref<32x256xf32, #tpu.memory_space<vmem>>, vector<32x256xf32>,
    } else {
    }
    %c0 = arith.constant 0 : index
    %c0_1 = arith.constant 0 : index
    %3 = vector.load %arg5[%c0, %c0_1] : memref<32x256xf32, #tpu.memory_space<vmem>>, vector<32x256xf32>
    %c0_2 = arith.constant 0 : index
    %c0_3 = arith.constant 0 : index
    %c0_4 = arith.constant 0 : index
    %4 = vector.load %arg1[%c0_2, %c0_3, %c0_4] : memref<1x32x256xf32, #tpu.memory_space<vmem>>, vector<1x32x256xf32>
    %5 = vector.shape_cast %4 : vector<1x32x256xf32> to vector<32x256xf32>
    %c0_5 = arith.constant 0 : index
    %c0_6 = arith.constant 0 : index
    %c0_7 = arith.constant 0 : index
    %6 = vector.load %arg2[%c0_5, %c0_6, %c0_7] : memref<1x256x256xf32, #tpu.memory_space<vmem>>, vector<1x256x256xf32>
    %7 = vector.shape_cast %6 : vector<1x256x256xf32> to vector<256x256xf32>
    %cst = arith.constant dense<0.000000e+00> : vector<32x256xf32>
    %8 = tpu.matmul %5, %7, %cst {dimension_numbers = #tpu.dot_dimension_numbers<[1], [0], [0], [1], [0, 0, 1, 1], [], []>} : vector<32x256xf32>, vector<256x256xf32>, vector<32x256xf32> -> vector<32x256xf32>
    %9 = arith.addf %3, %8 : vector<32x256xf32>
    %c0_8 = arith.constant 0 : index
    %c0_9 = arith.constant 0 : index
    %10 = vector.load %arg5[%c0_8, %c0_9] : memref<32x256xf32, #tpu.memory_space<vmem>>, vector<32x256xf32>
    tpu.vector_store %arg5[%c0_8, %c0_9], %9 {strides = array<i32>} : memref<32x256xf32, #tpu.memory_space<vmem>>, vector<32x256xf32>,
    %c8_i32 = arith.constant 8 : i32
    %11 = arith.cmpi eq, %arg0, %c8_i32 : i32
    %12 = arith.extui %11 : i1 to i32
    %c0_i32_10 = arith.constant 0 : i32
    %13 = arith.cmpi ne, %12, %c0_i32_10 : i32
    scf.if %13 {
      %c0_11 = arith.constant 0 : index
      %c0_12 = arith.constant 0 : index
      %14 = vector.load %arg5[%c0_11, %c0_12] : memref<32x256xf32, #tpu.memory_space<vmem>>, vector<32x256xf32>
      %c0_13 = arith.constant 0 : index
      %c0_14 = arith.constant 0 : index
      %15 = vector.load %arg3[%c0_13, %c0_14] : memref<1x256xf32, #tpu.memory_space<vmem>>, vector<1x256xf32>
      %16 = vector.broadcast %15 : vector<1x256xf32> to vector<32x256xf32>
      %17 = arith.addf %14, %16 : vector<32x256xf32>
      %c0_15 = arith.constant 0 : index
      %c0_16 = arith.constant 0 : index
      %18 = vector.load %arg4[%c0_15, %c0_16] : memref<32x256xf32, #tpu.memory_space<vmem>>, vector<32x256xf32>
      tpu.vector_store %arg4[%c0_15, %c0_16], %17 {strides = array<i32>} : memref<32x256xf32, #tpu.memory_space<vmem>>, vector<32x256xf32>,
    } else {
    }
    return
  }
  func.func @transform_0(%arg0: i32) -> (i32, i32, i32) {
    %c0_i32 = arith.constant 0 : i32
    %c0_i32_0 = arith.constant 0 : i32
    %c0_i32_1 = arith.constant 0 : i32
    return %arg0, %c0_i32, %c0_i32_0 : i32, i32, i32
  }
  func.func @transform_1(%arg0: i32) -> (i32, i32, i32) {
    %c0_i32 = arith.constant 0 : i32
    %c0_i32_0 = arith.constant 0 : i32
    %c0_i32_1 = arith.constant 0 : i32
    return %arg0, %c0_i32, %c0_i32_0 : i32, i32, i32
  }
  func.func @transform_2(%arg0: i32) -> (i32, i32) {
    %c0_i32 = arith.constant 0 : i32
    %c0_i32_0 = arith.constant 0 : i32
    %c0_i32_1 = arith.constant 0 : i32
    return %c0_i32, %c0_i32_0 : i32, i32
  }
  func.func @transform_3(%arg0: i32) -> (i32, i32) {
    %c0_i32 = arith.constant 0 : i32
    %c0_i32_0 = arith.constant 0 : i32
    %c0_i32_1 = arith.constant 0 : i32
    return %c0_i32, %c0_i32_0 : i32, i32
  }
}

</mosaic_0001>

<llo_original>
// kernel: _lambda_.8
$region0: #{_lambda_.8}
  #allocation0 [shape = 'u32[]', space=smem, size = 0x4, offset = 0x4, fixed_abs, tag = 'smem constant byte address 0x4 - core index']
  #allocation1 [shape = 'u32[72,128]{1,0:T(1,128)}', space=vmem, size = 0x9000, scoped, tag = 'internal scratch']
  #allocation2 [shape = 'f32[512,64]{1,0:T(8,128)}', space=vmem, size = 0x40000, scoped, tag = 'scratch operand']
  %s0 = inlined_call_operand.vmem [shape: f32[9,512,8], index: 0, kind: input, shape index: {}]
  %s1 = inlined_call_operand.vmem [shape: f32[9,8,64], index: 1, kind: input, shape index: {}]
  %s2 = inlined_call_operand.vmem [shape: f32[1,64], index: 2, kind: input, shape index: {}]
  %s3 = inlined_call_operand.vmem [shape: f32[512,64], index: 3, kind: output, shape index: {}]
  %s4 = sld [smem:[#allocation0]]
  $region53: #{_lambda_.8} parent=0
    _
  %s6 = ssub.s32 1, %s4
  %s7 = scalar_select 0, %s6, %s4
  loop: start=0, step=1, limit=11
  $region2: #{_lambda_.8} parent=0 // loop_pre_header
    _
  $region3: #{_lambda_.8} parent=0 // loop_header
    %s9 = sphi 0, %s13
    %p10 = scmp.ge.s32.totalorder %s9, 11
    %s19 = sphi 0, %s21
    %s22 = sphi 0, %s19
    %s23 = sphi 0, %s22
    %s39 = sphi 0, %s23
    %s45 = sphi 0, %s47
    %s48 = sphi 0, %s45
    %s49 = sphi 0, %s48
    %s65 = sphi 0, %s49
    %s69 = sphi 0, %s69
    %s71 = sphi 0, %s69
    %s72 = sphi 0, %s71
    %s86 = sphi 0, %s72
    %s90 = sphi 0, %s90
    %s92 = sphi 0, %s90
    %s93 = sphi 0, %s92
    %s107 = sphi 0, %s93
  $region4: #{_lambda_.8} parent=0 // loop_header_branch
    %12 = sbr.rel (%p10) target = $region8
  $region5: #{_lambda_.8} parent=0 // loop_body
    %s14 = ssub.s32 %s9, 1
    %s15 = ssub.s32 %s9, 2
    %s16 = sadd.s32 %s9, 1
    %s17 = ssub.s32 %s9, %s16
    %p18 = scmp.eq.s32.totalorder %s17, 0
    %s20 = sadd.s32 %s19, 1
    %s21 = scalar_select %p18, %s19, %s20
    %p24 = pneg %p18
    %p25 = scmp.eq.s32.totalorder %s9, 8
    %p26 = por %p24, %p25
    %p27 = scmp.ne.s32.totalorder %s19, %s22
    %p28 = scmp.eq.s32.totalorder %s9, 0
    %p29 = por %p27, %p28
    %p30 = scmp.ne.s32.totalorder %s19, %s22
    %p31 = scmp.eq.s32.totalorder %s14, 8
    %p32 = por %p30, %p31
    %p33 = scmp.ne.s32.totalorder %s22, %s23
    %p34 = scmp.eq.s32.totalorder %s14, 0
    %p35 = por %p33, %p34
    %p36 = scmp.ne.s32.totalorder %s22, %s23
    %p37 = scmp.eq.s32.totalorder %s15, 8
    %p38 = por %p36, %p37
    %p40 = scmp.ne.s32.totalorder %s23, %s39
    %p41 = scmp.eq.s32.totalorder %s15, 0
    %p42 = por %p40, %p41
    %s43 = ssub.s32 %s9, %s16
    %p44 = scmp.eq.s32.totalorder %s43, 0
    %s46 = sadd.s32 %s45, 1
    %s47 = scalar_select %p44, %s45, %s46
    %p50 = pneg %p44
    %p51 = scmp.eq.s32.totalorder %s9, 8
    %p52 = por %p50, %p51
    %p53 = scmp.ne.s32.totalorder %s45, %s48
    %p54 = scmp.eq.s32.totalorder %s9, 0
    %p55 = por %p53, %p54
    %p56 = scmp.ne.s32.totalorder %s45, %s48
    %p57 = scmp.eq.s32.totalorder %s14, 8
    %p58 = por %p56, %p57
    %p59 = scmp.ne.s32.totalorder %s48, %s49
    %p60 = scmp.eq.s32.totalorder %s14, 0
    %p61 = por %p59, %p60
    %p62 = scmp.ne.s32.totalorder %s48, %s49
    %p63 = scmp.eq.s32.totalorder %s15, 8
    %p64 = por %p62, %p63
    %p66 = scmp.ne.s32.totalorder %s49, %s65
    %p67 = scmp.eq.s32.totalorder %s15, 0
    %p68 = por %p66, %p67
    %s70 = sadd.s32 %s69, 1
    %p73 = scmp.eq.s32.totalorder %s9, 8
    %p74 = scmp.ne.s32.totalorder %s69, %s71
    %p75 = scmp.eq.s32.totalorder %s9, 0
    %p76 = por %p74, %p75
    %p77 = scmp.ne.s32.totalorder %s69, %s71
    %p78 = scmp.eq.s32.totalorder %s14, 8
    %p79 = por %p77, %p78
    %p80 = scmp.ne.s32.totalorder %s71, %s72
    %p81 = scmp.eq.s32.totalorder %s14, 0
    %p82 = por %p80, %p81
    %p83 = scmp.ne.s32.totalorder %s71, %s72
    %p84 = scmp.eq.s32.totalorder %s15, 8
    %p85 = por %p83, %p84
    %p87 = scmp.ne.s32.totalorder %s72, %s86
    %p88 = scmp.eq.s32.totalorder %s15, 0
    %p89 = por %p87, %p88
    %s91 = sadd.s32 %s90, 1
    %p94 = scmp.eq.s32.totalorder %s9, 8
    %p95 = scmp.ne.s32.totalorder %s90, %s92
    %p96 = scmp.eq.s32.totalorder %s9, 0
    %p97 = por %p95, %p96
    %p98 = scmp.ne.s32.totalorder %s90, %s92
    %p99 = scmp.eq.s32.totalorder %s14, 8
    %p100 = por %p98, %p99
    %p101 = scmp.ne.s32.totalorder %s92, %s93
    %p102 = scmp.eq.s32.totalorder %s14, 0
    %p103 = por %p101, %p102
    %p104 = scmp.ne.s32.totalorder %s92, %s93
    %p105 = scmp.eq.s32.totalorder %s15, 8
    %p106 = por %p104, %p105
    %p108 = scmp.ne.s32.totalorder %s93, %s107
    %p109 = scmp.eq.s32.totalorder %s15, 0
    %p110 = por %p108, %p109
    %p111 = scmp.le.s32.totalorder 1, %s9
    %p112 = scmp.lt.s32.totalorder %s9, 10
    %p113 = pnand %p111, %p112
    %p114 = pneg %p113
    // Predicated region
    $region9: #{_lambda_.8} parent=5 // pred_check
      _
    $region10: #{_lambda_.8} parent=5 // pred_check_branch
      %116 = sbr.rel (%p113) target = $region12
    $region11: #{_lambda_.8} parent=5 // pred_region
      %s117 = ssub.s32 %s9, 1
      // Predicated region
      $region13: #{_lambda_.8} parent=11 // pred_check
        %p118 = pneg %p82
      $region14: #{_lambda_.8} parent=11 // pred_check_branch
        %120 = sbr.rel (%p118) target = $region16
      $region15: #{_lambda_.8} parent=11 // pred_region
        _
      $region16: #{_lambda_.8} parent=11 // pred_fallthru
        _
    $region12: #{_lambda_.8} parent=5 // pred_fallthru
      _
    %p121 = scmp.lt.s32.totalorder %s9, 9
    // Predicated region
    $region17: #{_lambda_.8} parent=5 // pred_check
      %p122 = pneg %p121
    $region18: #{_lambda_.8} parent=5 // pred_check_branch
      %124 = sbr.rel (%p122) target = $region20
    $region19: #{_lambda_.8} parent=5 // pred_region
      // Predicated region
      $region21: #{_lambda_.8} parent=19 // pred_check
        %p125 = pneg %p29
      $region22: #{_lambda_.8} parent=19 // pred_check_branch
        %127 = sbr.rel (%p125) target = $region24
      $region23: #{_lambda_.8} parent=19 // pred_region
        %p128 = scmp.lt.s32.totalorder %s9, 8
        %s129 = scalar_select %p128, %s9, 8
        %s130 = smul.addr %s129, 64
        %s131 = smul.addr %s130, 8
        %s132 = scalar_lea.vmem %s0, %s131
      $region24: #{_lambda_.8} parent=19 // pred_fallthru
        _
      // Predicated region
      $region25: #{_lambda_.8} parent=19 // pred_check
        %p133 = pneg %p55
      $region26: #{_lambda_.8} parent=19 // pred_check_branch
        %135 = sbr.rel (%p133) target = $region28
      $region27: #{_lambda_.8} parent=19 // pred_region
        %p136 = scmp.lt.s32.totalorder %s9, 8
        %s137 = scalar_select %p136, %s9, 8
        %s138 = smul.addr %s137, 8
        %s139 = scalar_lea.vmem %s1, %s138
      $region28: #{_lambda_.8} parent=19 // pred_fallthru
        _
    $region20: #{_lambda_.8} parent=5 // pred_fallthru
      _
    %p140 = scmp.le.s32.totalorder 1, %s9
    %p141 = scmp.lt.s32.totalorder %s9, 10
    %p142 = pnand %p140, %p141
    %p143 = pneg %p142
    // Predicated region
    $region29: #{_lambda_.8} parent=5 // pred_check
      _
    $region30: #{_lambda_.8} parent=5 // pred_check_branch
      %145 = sbr.rel (%p142) target = $region32
    $region31: #{_lambda_.8} parent=5 // pred_region
      %s146 = ssub.s32 %s9, 1
      %p147 = scmp.lt.s32.totalorder %s14, 8
      %s148 = scalar_select %p147, %s14, 8
      %s149 = smul.addr %s148, 64
      %s150 = smul.addr %s149, 8
      %s151 = scalar_lea.vmem %s0, %s150
      %p152 = pneg %p35
      %p153 = pneg %p32
      %p154 = scmp.lt.s32.totalorder %s14, 8
      %s155 = scalar_select %p154, %s14, 8
      %s156 = smul.addr %s155, 8
      %s157 = scalar_lea.vmem %s1, %s156
      %p158 = pneg %p61
      %p159 = pneg %p58
      %p160 = pneg %p82
      %p161 = pneg %p79
      %p162 = pneg %p103
      %p163 = pneg %p100
      %p164 = scmp.lt.s32.totalorder %s14, 8
      %s165 = scalar_select %p164, %s14, 8
      %s166 = smul.addr %s165, 64
      %s167 = smul.addr %s166, 8
      %s168 = scalar_lea.vmem %s0, %s167
      %p169 = scmp.lt.s32.totalorder %s14, 8
      %s170 = scalar_select %p169, %s14, 8
      %s171 = smul.addr %s170, 8
      %s172 = scalar_lea.vmem %s1, %s171
      %p173 = scmp.eq.s32.totalorder %s14, 0
      // Predicated region
      $region33: #{_lambda_.8} parent=31 // pred_check
        %p174 = pneg %p173
      $region34: #{_lambda_.8} parent=31 // pred_check_branch
        %176 = sbr.rel (%p174) target = $region36
      $region35: #{_lambda_.8} parent=31 // pred_region
        %vm177 = vcmask 523264
        %178 = vst.msk [vmem:[#allocation2] sm:$0xff] %vm177, 0.0
        %179 = vst.msk [vmem:[#allocation2 + $0x8] sm:$0xff] %vm177, 0.0
        %180 = vst.msk [vmem:[#allocation2 + $0x10] sm:$0xff] %vm177, 0.0
        %181 = vst.msk [vmem:[#allocation2 + $0x18] sm:$0xff] %vm177, 0.0
        %182 = vst.msk [vmem:[#allocation2 + $0x20] sm:$0xff] %vm177, 0.0
        %183 = vst.msk [vmem:[#allocation2 + $0x28] sm:$0xff] %vm177, 0.0
        %184 = vst.msk [vmem:[#allocation2 + $0x30] sm:$0xff] %vm177, 0.0
        %185 = vst.msk [vmem:[#allocation2 + $0x38] sm:$0xff] %vm177, 0.0
        %186 = vst.msk [vmem:[#allocation2 + $0x40] sm:$0xff] %vm177, 0.0
        %187 = vst.msk [vmem:[#allocation2 + $0x48] sm:$0xff] %vm177, 0.0
        %188 = vst.msk [vmem:[#allocation2 + $0x50] sm:$0xff] %vm177, 0.0
        %189 = vst.msk [vmem:[#allocation2 + $0x58] sm:$0xff] %vm177, 0.0
        %190 = vst.msk [vmem:[#allocation2 + $0x60] sm:$0xff] %vm177, 0.0
        %191 = vst.msk [vmem:[#allocation2 + $0x68] sm:$0xff] %vm177, 0.0
        %192 = vst.msk [vmem:[#allocation2 + $0x70] sm:$0xff] %vm177, 0.0
        %193 = vst.msk [vmem:[#allocation2 + $0x78] sm:$0xff] %vm177, 0.0
        %194 = vst.msk [vmem:[#allocation2 + $0x80] sm:$0xff] %vm177, 0.0
        %195 = vst.msk [vmem:[#allocation2 + $0x88] sm:$0xff] %vm177, 0.0
        %196 = vst.msk [vmem:[#allocation2 + $0x90] sm:$0xff] %vm177, 0.0
        %197 = vst.msk [vmem:[#allocation2 + $0x98] sm:$0xff] %vm177, 0.0
        %198 = vst.msk [vmem:[#allocation2 + $0xa0] sm:$0xff] %vm177, 0.0
        %199 = vst.msk [vmem:[#allocation2 + $0xa8] sm:$0xff] %vm177, 0.0
        %200 = vst.msk [vmem:[#allocation2 + $0xb0] sm:$0xff] %vm177, 0.0
        %201 = vst.msk [vmem:[#allocation2 + $0xb8] sm:$0xff] %vm177, 0.0
        %202 = vst.msk [vmem:[#allocation2 + $0xc0] sm:$0xff] %vm177, 0.0
        %203 = vst.msk [vmem:[#allocation2 + $0xc8] sm:$0xff] %vm177, 0.0
        %204 = vst.msk [vmem:[#allocation2 + $0xd0] sm:$0xff] %vm177, 0.0
        %205 = vst.msk [vmem:[#allocation2 + $0xd8] sm:$0xff] %vm177, 0.0
        %206 = vst.msk [vmem:[#allocation2 + $0xe0] sm:$0xff] %vm177, 0.0
        %207 = vst.msk [vmem:[#allocation2 + $0xe8] sm:$0xff] %vm177, 0.0
        %208 = vst.msk [vmem:[#allocation2 + $0xf0] sm:$0xff] %vm177, 0.0
        %209 = vst.msk [vmem:[#allocation2 + $0xf8] sm:$0xff] %vm177, 0.0
        %210 = vst.msk [vmem:[#allocation2 + $0x100] sm:$0xff] %vm177, 0.0
        %211 = vst.msk [vmem:[#allocation2 + $0x108] sm:$0xff] %vm177, 0.0
        %212 = vst.msk [vmem:[#allocation2 + $0x110] sm:$0xff] %vm177, 0.0
        %213 = vst.msk [vmem:[#allocation2 + $0x118] sm:$0xff] %vm177, 0.0
        %214 = vst.msk [vmem:[#allocation2 + $0x120] sm:$0xff] %vm177, 0.0
        %215 = vst.msk [vmem:[#allocation2 + $0x128] sm:$0xff] %vm177, 0.0
        %216 = vst.msk [vmem:[#allocation2 + $0x130] sm:$0xff] %vm177, 0.0
        %217 = vst.msk [vmem:[#allocation2 + $0x138] sm:$0xff] %vm177, 0.0
        %218 = vst.msk [vmem:[#allocation2 + $0x140] sm:$0xff] %vm177, 0.0
        %219 = vst.msk [vmem:[#allocation2 + $0x148] sm:$0xff] %vm177, 0.0
        %220 = vst.msk [vmem:[#allocation2 + $0x150] sm:$0xff] %vm177, 0.0
        %221 = vst.msk [vmem:[#allocation2 + $0x158] sm:$0xff] %vm177, 0.0
        %222 = vst.msk [vmem:[#allocation2 + $0x160] sm:$0xff] %vm177, 0.0
        %223 = vst.msk [vmem:[#allocation2 + $0x168] sm:$0xff] %vm177, 0.0
        %224 = vst.msk [vmem:[#allocation2 + $0x170] sm:$0xff] %vm177, 0.0
        %225 = vst.msk [vmem:[#allocation2 + $0x178] sm:$0xff] %vm177, 0.0
        %226 = vst.msk [vmem:[#allocation2 + $0x180] sm:$0xff] %vm177, 0.0
        %227 = vst.msk [vmem:[#allocation2 + $0x188] sm:$0xff] %vm177, 0.0
        %228 = vst.msk [vmem:[#allocation2 + $0x190] sm:$0xff] %vm177, 0.0
        %229 = vst.msk [vmem:[#allocation2 + $0x198] sm:$0xff] %vm177, 0.0
        %230 = vst.msk [vmem:[#allocation2 + $0x1a0] sm:$0xff] %vm177, 0.0
        %231 = vst.msk [vmem:[#allocation2 + $0x1a8] sm:$0xff] %vm177, 0.0
        %232 = vst.msk [vmem:[#allocation2 + $0x1b0] sm:$0xff] %vm177, 0.0
        %233 = vst.msk [vmem:[#allocation2 + $0x1b8] sm:$0xff] %vm177, 0.0
        %234 = vst.msk [vmem:[#allocation2 + $0x1c0] sm:$0xff] %vm177, 0.0
        %235 = vst.msk [vmem:[#allocation2 + $0x1c8] sm:$0xff] %vm177, 0.0
        %236 = vst.msk [vmem:[#allocation2 + $0x1d0] sm:$0xff] %vm177, 0.0
        %237 = vst.msk [vmem:[#allocation2 + $0x1d8] sm:$0xff] %vm177, 0.0
        %238 = vst.msk [vmem:[#allocation2 + $0x1e0] sm:$0xff] %vm177, 0.0
        %239 = vst.msk [vmem:[#allocation2 + $0x1e8] sm:$0xff] %vm177, 0.0
        %240 = vst.msk [vmem:[#allocation2 + $0x1f0] sm:$0xff] %vm177, 0.0
        %241 = vst.msk [vmem:[#allocation2 + $0x1f8] sm:$0xff] %vm177, 0.0
      $region36: #{_lambda_.8} parent=31 // pred_fallthru
        _
      %v242 = vld [vmem:[#allocation2] sm:$0xff]
      %v243 = vld [vmem:[#allocation2 + $0x8] sm:$0xff]
      %v244 = vld [vmem:[#allocation2 + $0x10] sm:$0xff]
      %v245 = vld [vmem:[#allocation2 + $0x18] sm:$0xff]
      %v246 = vld [vmem:[#allocation2 + $0x20] sm:$0xff]
      %v247 = vld [vmem:[#allocation2 + $0x28] sm:$0xff]
      %v248 = vld [vmem:[#allocation2 + $0x30] sm:$0xff]
      %v249 = vld [vmem:[#allocation2 + $0x38] sm:$0xff]
      %v250 = vld [vmem:[#allocation2 + $0x40] sm:$0xff]
      %v251 = vld [vmem:[#allocation2 + $0x48] sm:$0xff]
      %v252 = vld [vmem:[#allocation2 + $0x50] sm:$0xff]
      %v253 = vld [vmem:[#allocation2 + $0x58] sm:$0xff]
      %v254 = vld [vmem:[#allocation2 + $0x60] sm:$0xff]
      %v255 = vld [vmem:[#allocation2 + $0x68] sm:$0xff]
      %v256 = vld [vmem:[#allocation2 + $0x70] sm:$0xff]
      %v257 = vld [vmem:[#allocation2 + $0x78] sm:$0xff]
      %v258 = vld [vmem:[#allocation2 + $0x80] sm:$0xff]
      %v259 = vld [vmem:[#allocation2 + $0x88] sm:$0xff]
      %v260 = vld [vmem:[#allocation2 + $0x90] sm:$0xff]
      %v261 = vld [vmem:[#allocation2 + $0x98] sm:$0xff]
      %v262 = vld [vmem:[#allocation2 + $0xa0] sm:$0xff]
      %v263 = vld [vmem:[#allocation2 + $0xa8] sm:$0xff]
      %v264 = vld [vmem:[#allocation2 + $0xb0] sm:$0xff]
      %v265 = vld [vmem:[#allocation2 + $0xb8] sm:$0xff]
      %v266 = vld [vmem:[#allocation2 + $0xc0] sm:$0xff]
      %v267 = vld [vmem:[#allocation2 + $0xc8] sm:$0xff]
      %v268 = vld [vmem:[#allocation2 + $0xd0] sm:$0xff]
      %v269 = vld [vmem:[#allocation2 + $0xd8] sm:$0xff]
      %v270 = vld [vmem:[#allocation2 + $0xe0] sm:$0xff]
      %v271 = vld [vmem:[#allocation2 + $0xe8] sm:$0xff]
      %v272 = vld [vmem:[#allocation2 + $0xf0] sm:$0xff]
      %v273 = vld [vmem:[#allocation2 + $0xf8] sm:$0xff]
      %v274 = vld [vmem:[#allocation2 + $0x100] sm:$0xff]
      %v275 = vld [vmem:[#allocation2 + $0x108] sm:$0xff]
      %v276 = vld [vmem:[#allocation2 + $0x110] sm:$0xff]
      %v277 = vld [vmem:[#allocation2 + $0x118] sm:$0xff]
      %v278 = vld [vmem:[#allocation2 + $0x120] sm:$0xff]
      %v279 = vld [vmem:[#allocation2 + $0x128] sm:$0xff]
      %v280 = vld [vmem:[#allocation2 + $0x130] sm:$0xff]
      %v281 = vld [vmem:[#allocation2 + $0x138] sm:$0xff]
      %v282 = vld [vmem:[#allocation2 + $0x140] sm:$0xff]
      %v283 = vld [vmem:[#allocation2 + $0x148] sm:$0xff]
      %v284 = vld [vmem:[#allocation2 + $0x150] sm:$0xff]
      %v285 = vld [vmem:[#allocation2 + $0x158] sm:$0xff]
      %v286 = vld [vmem:[#allocation2 + $0x160] sm:$0xff]
      %v287 = vld [vmem:[#allocation2 + $0x168] sm:$0xff]
      %v288 = vld [vmem:[#allocation2 + $0x170] sm:$0xff]
      %v289 = vld [vmem:[#allocation2 + $0x178] sm:$0xff]
      %v290 = vld [vmem:[#allocation2 + $0x180] sm:$0xff]
      %v291 = vld [vmem:[#allocation2 + $0x188] sm:$0xff]
      %v292 = vld [vmem:[#allocation2 + $0x190] sm:$0xff]
      %v293 = vld [vmem:[#allocation2 + $0x198] sm:$0xff]
      %v294 = vld [vmem:[#allocation2 + $0x1a0] sm:$0xff]
      %v295 = vld [vmem:[#allocation2 + $0x1a8] sm:$0xff]
      %v296 = vld [vmem:[#allocation2 + $0x1b0] sm:$0xff]
      %v297 = vld [vmem:[#allocation2 + $0x1b8] sm:$0xff]
      %v298 = vld [vmem:[#allocation2 + $0x1c0] sm:$0xff]
      %v299 = vld [vmem:[#allocation2 + $0x1c8] sm:$0xff]
      %v300 = vld [vmem:[#allocation2 + $0x1d0] sm:$0xff]
      %v301 = vld [vmem:[#allocation2 + $0x1d8] sm:$0xff]
      %v302 = vld [vmem:[#allocation2 + $0x1e0] sm:$0xff]
      %v303 = vld [vmem:[#allocation2 + $0x1e8] sm:$0xff]
      %v304 = vld [vmem:[#allocation2 + $0x1f0] sm:$0xff]
      %v305 = vld [vmem:[#allocation2 + $0x1f8] sm:$0xff]
      %v306 = vld [vmem:[%s168] sm:$0xff]
      %v307 = vld [vmem:[%s168 + $0x8] sm:$0xff]
      %v308 = vld [vmem:[%s168 + $0x10] sm:$0xff]
      %v309 = vld [vmem:[%s168 + $0x18] sm:$0xff]
      %v310 = vld [vmem:[%s168 + $0x20] sm:$0xff]
      %v311 = vld [vmem:[%s168 + $0x28] sm:$0xff]
      %v312 = vld [vmem:[%s168 + $0x30] sm:$0xff]
      %v313 = vld [vmem:[%s168 + $0x38] sm:$0xff]
      %v314 = vld [vmem:[%s168 + $0x40] sm:$0xff]
      %v315 = vld [vmem:[%s168 + $0x48] sm:$0xff]
      %v316 = vld [vmem:[%s168 + $0x50] sm:$0xff]
      %v317 = vld [vmem:[%s168 + $0x58] sm:$0xff]
      %v318 = vld [vmem:[%s168 + $0x60] sm:$0xff]
      %v319 = vld [vmem:[%s168 + $0x68] sm:$0xff]
      %v320 = vld [vmem:[%s168 + $0x70] sm:$0xff]
      %v321 = vld [vmem:[%s168 + $0x78] sm:$0xff]
      %v322 = vld [vmem:[%s168 + $0x80] sm:$0xff]
      %v323 = vld [vmem:[%s168 + $0x88] sm:$0xff]
      %v324 = vld [vmem:[%s168 + $0x90] sm:$0xff]
      %v325 = vld [vmem:[%s168 + $0x98] sm:$0xff]
      %v326 = vld [vmem:[%s168 + $0xa0] sm:$0xff]
      %v327 = vld [vmem:[%s168 + $0xa8] sm:$0xff]
      %v328 = vld [vmem:[%s168 + $0xb0] sm:$0xff]
      %v329 = vld [vmem:[%s168 + $0xb8] sm:$0xff]
      %v330 = vld [vmem:[%s168 + $0xc0] sm:$0xff]
      %v331 = vld [vmem:[%s168 + $0xc8] sm:$0xff]
      %v332 = vld [vmem:[%s168 + $0xd0] sm:$0xff]
      %v333 = vld [vmem:[%s168 + $0xd8] sm:$0xff]
      %v334 = vld [vmem:[%s168 + $0xe0] sm:$0xff]
      %v335 = vld [vmem:[%s168 + $0xe8] sm:$0xff]
      %v336 = vld [vmem:[%s168 + $0xf0] sm:$0xff]
      %v337 = vld [vmem:[%s168 + $0xf8] sm:$0xff]
      %v338 = vld [vmem:[%s168 + $0x100] sm:$0xff]
      %v339 = vld [vmem:[%s168 + $0x108] sm:$0xff]
      %v340 = vld [vmem:[%s168 + $0x110] sm:$0xff]
      %v341 = vld [vmem:[%s168 + $0x118] sm:$0xff]
      %v342 = vld [vmem:[%s168 + $0x120] sm:$0xff]
      %v343 = vld [vmem:[%s168 + $0x128] sm:$0xff]
      %v344 = vld [vmem:[%s168 + $0x130] sm:$0xff]
      %v345 = vld [vmem:[%s168 + $0x138] sm:$0xff]
      %v346 = vld [vmem:[%s168 + $0x140] sm:$0xff]
      %v347 = vld [vmem:[%s168 + $0x148] sm:$0xff]
      %v348 = vld [vmem:[%s168 + $0x150] sm:$0xff]
      %v349 = vld [vmem:[%s168 + $0x158] sm:$0xff]
      %v350 = vld [vmem:[%s168 + $0x160] sm:$0xff]
      %v351 = vld [vmem:[%s168 + $0x168] sm:$0xff]
      %v352 = vld [vmem:[%s168 + $0x170] sm:$0xff]
      %v353 = vld [vmem:[%s168 + $0x178] sm:$0xff]
      %v354 = vld [vmem:[%s168 + $0x180] sm:$0xff]
      %v355 = vld [vmem:[%s168 + $0x188] sm:$0xff]
      %v356 = vld [vmem:[%s168 + $0x190] sm:$0xff]
      %v357 = vld [vmem:[%s168 + $0x198] sm:$0xff]
      %v358 = vld [vmem:[%s168 + $0x1a0] sm:$0xff]
      %v359 = vld [vmem:[%s168 + $0x1a8] sm:$0xff]
      %v360 = vld [vmem:[%s168 + $0x1b0] sm:$0xff]
      %v361 = vld [vmem:[%s168 + $0x1b8] sm:$0xff]
      %v362 = vld [vmem:[%s168 + $0x1c0] sm:$0xff]
      %v363 = vld [vmem:[%s168 + $0x1c8] sm:$0xff]
      %v364 = vld [vmem:[%s168 + $0x1d0] sm:$0xff]
      %v365 = vld [vmem:[%s168 + $0x1d8] sm:$0xff]
      %v366 = vld [vmem:[%s168 + $0x1e0] sm:$0xff]
      %v367 = vld [vmem:[%s168 + $0x1e8] sm:$0xff]
      %v368 = vld [vmem:[%s168 + $0x1f0] sm:$0xff]
      %v369 = vld [vmem:[%s168 + $0x1f8] sm:$0xff]
      %v370 = vld [vmem:[%s172] sm:$0xff]
      %vm371 = vcmask 64512
      %v373 = vsel %vm371, %v306, 0
      %v376 = vsel %vm371, %v307, 0
      %v379 = vsel %vm371, %v308, 0
      %v382 = vsel %vm371, %v309, 0
      %v385 = vsel %vm371, %v310, 0
      %v388 = vsel %vm371, %v311, 0
      %v391 = vsel %vm371, %v312, 0
      %v394 = vsel %vm371, %v313, 0
      %v397 = vsel %vm371, %v314, 0
      %v400 = vsel %vm371, %v315, 0
      %v403 = vsel %vm371, %v316, 0
      %v406 = vsel %vm371, %v317, 0
      %v409 = vsel %vm371, %v318, 0
      %v412 = vsel %vm371, %v319, 0
      %v415 = vsel %vm371, %v320, 0
      %v418 = vsel %vm371, %v321, 0
      %v421 = vsel %vm371, %v322, 0
      %v424 = vsel %vm371, %v323, 0
      %v427 = vsel %vm371, %v324, 0
      %v430 = vsel %vm371, %v325, 0
      %v433 = vsel %vm371, %v326, 0
      %v436 = vsel %vm371, %v327, 0
      %v439 = vsel %vm371, %v328, 0
      %v442 = vsel %vm371, %v329, 0
      %v445 = vsel %vm371, %v330, 0
      %v448 = vsel %vm371, %v331, 0
      %v451 = vsel %vm371, %v332, 0
      %v454 = vsel %vm371, %v333, 0
      %v457 = vsel %vm371, %v334, 0
      %v460 = vsel %vm371, %v335, 0
      %v463 = vsel %vm371, %v336, 0
      %v466 = vsel %vm371, %v337, 0
      %v469 = vsel %vm371, %v338, 0
      %v472 = vsel %vm371, %v339, 0
      %v475 = vsel %vm371, %v340, 0
      %v478 = vsel %vm371, %v341, 0
      %v481 = vsel %vm371, %v342, 0
      %v484 = vsel %vm371, %v343, 0
      %v487 = vsel %vm371, %v344, 0
      %v490 = vsel %vm371, %v345, 0
      %v493 = vsel %vm371, %v346, 0
      %v496 = vsel %vm371, %v347, 0
      %v499 = vsel %vm371, %v348, 0
      %v502 = vsel %vm371, %v349, 0
      %v505 = vsel %vm371, %v350, 0
      %v508 = vsel %vm371, %v351, 0
      %v511 = vsel %vm371, %v352, 0
      %v514 = vsel %vm371, %v353, 0
      %v517 = vsel %vm371, %v354, 0
      %v520 = vsel %vm371, %v355, 0
      %v523 = vsel %vm371, %v356, 0
      %v526 = vsel %vm371, %v357, 0
      %v529 = vsel %vm371, %v358, 0
      %v532 = vsel %vm371, %v359, 0
      %v535 = vsel %vm371, %v360, 0
      %v538 = vsel %vm371, %v361, 0
      %v541 = vsel %vm371, %v362, 0
      %v544 = vsel %vm371, %v363, 0
      %v547 = vsel %vm371, %v364, 0
      %v550 = vsel %vm371, %v365, 0
      %v553 = vsel %vm371, %v366, 0
      %v556 = vsel %vm371, %v367, 0
      %v559 = vsel %vm371, %v368, 0
      %v562 = vsel %vm371, %v369, 0
      %564 = vmatpush.msra.mxu0 0.0
      %565 = vmatpush.msra.mxu0 0.0
      %566 = vmatpush.msra.mxu0 0.0
      %567 = vmatpush.msra.mxu0 0.0
      %568 = vmatpush.msra.mxu0 0.0
      %569 = vmatpush.msra.mxu0 0.0
      %570 = vmatpush.msra.mxu0 0.0
      %571 = vmatpush.msra.mxu0 0.0
      %572 = vmatpush.msra.mxu0 0.0
      %573 = vmatpush.msra.mxu0 0.0
      %574 = vmatpush.msra.mxu0 0.0
      %575 = vmatpush.msra.mxu0 0.0
      %576 = vmatpush.msra.mxu0 0.0
      %577 = vmatpush.msra.mxu0 0.0
      %578 = vmatpush.msra.mxu0 0.0
      %579 = vmatpush.msra.mxu0 %v370
      %580 = vmatmul.f32.gmra.mxu0 %v373
      %v581 = vpop.f32.mrf.mxu0
      %v582 = vadd.f32 0.0, %v581
      %583 = vmatmul.f32.gmra.mxu0 %v376
      %v584 = vpop.f32.mrf.mxu0
      %v585 = vadd.f32 0.0, %v584
      %586 = vmatmul.f32.gmra.mxu0 %v379
      %v587 = vpop.f32.mrf.mxu0
      %v588 = vadd.f32 0.0, %v587
      %589 = vmatmul.f32.gmra.mxu0 %v382
      %v590 = vpop.f32.mrf.mxu0
      %v591 = vadd.f32 0.0, %v590
      %592 = vmatmul.f32.gmra.mxu0 %v385
      %v593 = vpop.f32.mrf.mxu0
      %v594 = vadd.f32 0.0, %v593
      %595 = vmatmul.f32.gmra.mxu0 %v388
      %v596 = vpop.f32.mrf.mxu0
      %v597 = vadd.f32 0.0, %v596
      %598 = vmatmul.f32.gmra.mxu0 %v391
      %v599 = vpop.f32.mrf.mxu0
      %v600 = vadd.f32 0.0, %v599
      %601 = vmatmul.f32.gmra.mxu0 %v394
      %v602 = vpop.f32.mrf.mxu0
      %v603 = vadd.f32 0.0, %v602
      %604 = vmatmul.f32.gmra.mxu0 %v397
      %v605 = vpop.f32.mrf.mxu0
      %v606 = vadd.f32 0.0, %v605
      %607 = vmatmul.f32.gmra.mxu0 %v400
      %v608 = vpop.f32.mrf.mxu0
      %v609 = vadd.f32 0.0, %v608
      %610 = vmatmul.f32.gmra.mxu0 %v403
      %v611 = vpop.f32.mrf.mxu0
      %v612 = vadd.f32 0.0, %v611
      %613 = vmatmul.f32.gmra.mxu0 %v406
      %v614 = vpop.f32.mrf.mxu0
      %v615 = vadd.f32 0.0, %v614
      %616 = vmatmul.f32.gmra.mxu0 %v409
      %v617 = vpop.f32.mrf.mxu0
      %v618 = vadd.f32 0.0, %v617
      %619 = vmatmul.f32.gmra.mxu0 %v412
      %v620 = vpop.f32.mrf.mxu0
      %v621 = vadd.f32 0.0, %v620
      %622 = vmatmul.f32.gmra.mxu0 %v415
      %v623 = vpop.f32.mrf.mxu0
      %v624 = vadd.f32 0.0, %v623
      %625 = vmatmul.f32.gmra.mxu0 %v418
      %v626 = vpop.f32.mrf.mxu0
      %v627 = vadd.f32 0.0, %v626
      %628 = vmatmul.f32.gmra.mxu0 %v421
      %v629 = vpop.f32.mrf.mxu0
      %v630 = vadd.f32 0.0, %v629
      %631 = vmatmul.f32.gmra.mxu0 %v424
      %v632 = vpop.f32.mrf.mxu0
      %v633 = vadd.f32 0.0, %v632
      %634 = vmatmul.f32.gmra.mxu0 %v427
      %v635 = vpop.f32.mrf.mxu0
      %v636 = vadd.f32 0.0, %v635
      %637 = vmatmul.f32.gmra.mxu0 %v430
      %v638 = vpop.f32.mrf.mxu0
      %v639 = vadd.f32 0.0, %v638
      %640 = vmatmul.f32.gmra.mxu0 %v433
      %v641 = vpop.f32.mrf.mxu0
      %v642 = vadd.f32 0.0, %v641
      %643 = vmatmul.f32.gmra.mxu0 %v436
      %v644 = vpop.f32.mrf.mxu0
      %v645 = vadd.f32 0.0, %v644
      %646 = vmatmul.f32.gmra.mxu0 %v439
      %v647 = vpop.f32.mrf.mxu0
      %v648 = vadd.f32 0.0, %v647
      %649 = vmatmul.f32.gmra.mxu0 %v442
      %v650 = vpop.f32.mrf.mxu0
      %v651 = vadd.f32 0.0, %v650
      %652 = vmatmul.f32.gmra.mxu0 %v445
      %v653 = vpop.f32.mrf.mxu0
      %v654 = vadd.f32 0.0, %v653
      %655 = vmatmul.f32.gmra.mxu0 %v448
      %v656 = vpop.f32.mrf.mxu0
      %v657 = vadd.f32 0.0, %v656
      %658 = vmatmul.f32.gmra.mxu0 %v451
      %v659 = vpop.f32.mrf.mxu0
      %v660 = vadd.f32 0.0, %v659
      %661 = vmatmul.f32.gmra.mxu0 %v454
      %v662 = vpop.f32.mrf.mxu0
      %v663 = vadd.f32 0.0, %v662
      %664 = vmatmul.f32.gmra.mxu0 %v457
      %v665 = vpop.f32.mrf.mxu0
      %v666 = vadd.f32 0.0, %v665
      %667 = vmatmul.f32.gmra.mxu0 %v460
      %v668 = vpop.f32.mrf.mxu0
      %v669 = vadd.f32 0.0, %v668
      %670 = vmatmul.f32.gmra.mxu0 %v463
      %v671 = vpop.f32.mrf.mxu0
      %v672 = vadd.f32 0.0, %v671
      %673 = vmatmul.f32.gmra.mxu0 %v466
      %v674 = vpop.f32.mrf.mxu0
      %v675 = vadd.f32 0.0, %v674
      %676 = vmatmul.f32.gmra.mxu0 %v469
      %v677 = vpop.f32.mrf.mxu0
      %v678 = vadd.f32 0.0, %v677
      %679 = vmatmul.f32.gmra.mxu0 %v472
      %v680 = vpop.f32.mrf.mxu0
      %v681 = vadd.f32 0.0, %v680
      %682 = vmatmul.f32.gmra.mxu0 %v475
      %v683 = vpop.f32.mrf.mxu0
      %v684 = vadd.f32 0.0, %v683
      %685 = vmatmul.f32.gmra.mxu0 %v478
      %v686 = vpop.f32.mrf.mxu0
      %v687 = vadd.f32 0.0, %v686
      %688 = vmatmul.f32.gmra.mxu0 %v481
      %v689 = vpop.f32.mrf.mxu0
      %v690 = vadd.f32 0.0, %v689
      %691 = vmatmul.f32.gmra.mxu0 %v484
      %v692 = vpop.f32.mrf.mxu0
      %v693 = vadd.f32 0.0, %v692
      %694 = vmatmul.f32.gmra.mxu0 %v487
      %v695 = vpop.f32.mrf.mxu0
      %v696 = vadd.f32 0.0, %v695
      %697 = vmatmul.f32.gmra.mxu0 %v490
      %v698 = vpop.f32.mrf.mxu0
      %v699 = vadd.f32 0.0, %v698
      %700 = vmatmul.f32.gmra.mxu0 %v493
      %v701 = vpop.f32.mrf.mxu0
      %v702 = vadd.f32 0.0, %v701
      %703 = vmatmul.f32.gmra.mxu0 %v496
      %v704 = vpop.f32.mrf.mxu0
      %v705 = vadd.f32 0.0, %v704
      %706 = vmatmul.f32.gmra.mxu0 %v499
      %v707 = vpop.f32.mrf.mxu0
      %v708 = vadd.f32 0.0, %v707
      %709 = vmatmul.f32.gmra.mxu0 %v502
      %v710 = vpop.f32.mrf.mxu0
      %v711 = vadd.f32 0.0, %v710
      %712 = vmatmul.f32.gmra.mxu0 %v505
      %v713 = vpop.f32.mrf.mxu0
      %v714 = vadd.f32 0.0, %v713
      %715 = vmatmul.f32.gmra.mxu0 %v508
      %v716 = vpop.f32.mrf.mxu0
      %v717 = vadd.f32 0.0, %v716
      %718 = vmatmul.f32.gmra.mxu0 %v511
      %v719 = vpop.f32.mrf.mxu0
      %v720 = vadd.f32 0.0, %v719
      %721 = vmatmul.f32.gmra.mxu0 %v514
      %v722 = vpop.f32.mrf.mxu0
      %v723 = vadd.f32 0.0, %v722
      %724 = vmatmul.f32.gmra.mxu0 %v517
      %v725 = vpop.f32.mrf.mxu0
      %v726 = vadd.f32 0.0, %v725
      %727 = vmatmul.f32.gmra.mxu0 %v520
      %v728 = vpop.f32.mrf.mxu0
      %v729 = vadd.f32 0.0, %v728
      %730 = vmatmul.f32.gmra.mxu0 %v523
      %v731 = vpop.f32.mrf.mxu0
      %v732 = vadd.f32 0.0, %v731
      %733 = vmatmul.f32.gmra.mxu0 %v526
      %v734 = vpop.f32.mrf.mxu0
      %v735 = vadd.f32 0.0, %v734
      %736 = vmatmul.f32.gmra.mxu0 %v529
      %v737 = vpop.f32.mrf.mxu0
      %v738 = vadd.f32 0.0, %v737
      %739 = vmatmul.f32.gmra.mxu0 %v532
      %v740 = vpop.f32.mrf.mxu0
      %v741 = vadd.f32 0.0, %v740
      %742 = vmatmul.f32.gmra.mxu0 %v535
      %v743 = vpop.f32.mrf.mxu0
      %v744 = vadd.f32 0.0, %v743
      %745 = vmatmul.f32.gmra.mxu0 %v538
      %v746 = vpop.f32.mrf.mxu0
      %v747 = vadd.f32 0.0, %v746
      %748 = vmatmul.f32.gmra.mxu0 %v541
      %v749 = vpop.f32.mrf.mxu0
      %v750 = vadd.f32 0.0, %v749
      %751 = vmatmul.f32.gmra.mxu0 %v544
      %v752 = vpop.f32.mrf.mxu0
      %v753 = vadd.f32 0.0, %v752
      %754 = vmatmul.f32.gmra.mxu0 %v547
      %v755 = vpop.f32.mrf.mxu0
      %v756 = vadd.f32 0.0, %v755
      %757 = vmatmul.f32.gmra.mxu0 %v550
      %v758 = vpop.f32.mrf.mxu0
      %v759 = vadd.f32 0.0, %v758
      %760 = vmatmul.f32.gmra.mxu0 %v553
      %v761 = vpop.f32.mrf.mxu0
      %v762 = vadd.f32 0.0, %v761
      %763 = vmatmul.f32.gmra.mxu0 %v556
      %v764 = vpop.f32.mrf.mxu0
      %v765 = vadd.f32 0.0, %v764
      %766 = vmatmul.f32.gmra.mxu0 %v559
      %v767 = vpop.f32.mrf.mxu0
      %v768 = vadd.f32 0.0, %v767
      %769 = vmatmul.f32.gmra.mxu0 %v562
      %v770 = vpop.f32.mrf.mxu0
      %v771 = vadd.f32 0.0, %v770
      %772 = vdwg.mxu0
      %v773 = vadd.f32 %v242, %v582
      %v774 = vadd.f32 %v243, %v585
      %v775 = vadd.f32 %v244, %v588
      %v776 = vadd.f32 %v245, %v591
      %v777 = vadd.f32 %v246, %v594
      %v778 = vadd.f32 %v247, %v597
      %v779 = vadd.f32 %v248, %v600
      %v780 = vadd.f32 %v249, %v603
      %v781 = vadd.f32 %v250, %v606
      %v782 = vadd.f32 %v251, %v609
      %v783 = vadd.f32 %v252, %v612
      %v784 = vadd.f32 %v253, %v615
      %v785 = vadd.f32 %v254, %v618
      %v786 = vadd.f32 %v255, %v621
      %v787 = vadd.f32 %v256, %v624
      %v788 = vadd.f32 %v257, %v627
      %v789 = vadd.f32 %v258, %v630
      %v790 = vadd.f32 %v259, %v633
      %v791 = vadd.f32 %v260, %v636
      %v792 = vadd.f32 %v261, %v639
      %v793 = vadd.f32 %v262, %v642
      %v794 = vadd.f32 %v263, %v645
      %v795 = vadd.f32 %v264, %v648
      %v796 = vadd.f32 %v265, %v651
      %v797 = vadd.f32 %v266, %v654
      %v798 = vadd.f32 %v267, %v657
      %v799 = vadd.f32 %v268, %v660
      %v800 = vadd.f32 %v269, %v663
      %v801 = vadd.f32 %v270, %v666
      %v802 = vadd.f32 %v271, %v669
      %v803 = vadd.f32 %v272, %v672
      %v804 = vadd.f32 %v273, %v675
      %v805 = vadd.f32 %v274, %v678
      %v806 = vadd.f32 %v275, %v681
      %v807 = vadd.f32 %v276, %v684
      %v808 = vadd.f32 %v277, %v687
      %v809 = vadd.f32 %v278, %v690
      %v810 = vadd.f32 %v279, %v693
      %v811 = vadd.f32 %v280, %v696
      %v812 = vadd.f32 %v281, %v699
      %v813 = vadd.f32 %v282, %v702
      %v814 = vadd.f32 %v283, %v705
      %v815 = vadd.f32 %v284, %v708
      %v816 = vadd.f32 %v285, %v711
      %v817 = vadd.f32 %v286, %v714
      %v818 = vadd.f32 %v287, %v717
      %v819 = vadd.f32 %v288, %v720
      %v820 = vadd.f32 %v289, %v723
      %v821 = vadd.f32 %v290, %v726
      %v822 = vadd.f32 %v291, %v729
      %v823 = vadd.f32 %v292, %v732
      %v824 = vadd.f32 %v293, %v735
      %v825 = vadd.f32 %v294, %v738
      %v826 = vadd.f32 %v295, %v741
      %v827 = vadd.f32 %v296, %v744
      %v828 = vadd.f32 %v297, %v747
      %v829 = vadd.f32 %v298, %v750
      %v830 = vadd.f32 %v299, %v753
      %v831 = vadd.f32 %v300, %v756
      %v832 = vadd.f32 %v301, %v759
      %v833 = vadd.f32 %v302, %v762
      %v834 = vadd.f32 %v303, %v765
      %v835 = vadd.f32 %v304, %v768
      %v836 = vadd.f32 %v305, %v771
      %vm837 = vcmask 523264
      %838 = vst.msk [vmem:[#allocation2] sm:$0xff] %vm837, %v773
      %839 = vst.msk [vmem:[#allocation2 + $0x8] sm:$0xff] %vm837, %v774
      %840 = vst.msk [vmem:[#allocation2 + $0x10] sm:$0xff] %vm837, %v775
      %841 = vst.msk [vmem:[#allocation2 + $0x18] sm:$0xff] %vm837, %v776
      %842 = vst.msk [vmem:[#allocation2 + $0x20] sm:$0xff] %vm837, %v777
      %843 = vst.msk [vmem:[#allocation2 + $0x28] sm:$0xff] %vm837, %v778
      %844 = vst.msk [vmem:[#allocation2 + $0x30] sm:$0xff] %vm837, %v779
      %845 = vst.msk [vmem:[#allocation2 + $0x38] sm:$0xff] %vm837, %v780
      %846 = vst.msk [vmem:[#allocation2 + $0x40] sm:$0xff] %vm837, %v781
      %847 = vst.msk [vmem:[#allocation2 + $0x48] sm:$0xff] %vm837, %v782
      %848 = vst.msk [vmem:[#allocation2 + $0x50] sm:$0xff] %vm837, %v783
      %849 = vst.msk [vmem:[#allocation2 + $0x58] sm:$0xff] %vm837, %v784
      %850 = vst.msk [vmem:[#allocation2 + $0x60] sm:$0xff] %vm837, %v785
      %851 = vst.msk [vmem:[#allocation2 + $0x68] sm:$0xff] %vm837, %v786
      %852 = vst.msk [vmem:[#allocation2 + $0x70] sm:$0xff] %vm837, %v787
      %853 = vst.msk [vmem:[#allocation2 + $0x78] sm:$0xff] %vm837, %v788
      %854 = vst.msk [vmem:[#allocation2 + $0x80] sm:$0xff] %vm837, %v789
      %855 = vst.msk [vmem:[#allocation2 + $0x88] sm:$0xff] %vm837, %v790
      %856 = vst.msk [vmem:[#allocation2 + $0x90] sm:$0xff] %vm837, %v791
      %857 = vst.msk [vmem:[#allocation2 + $0x98] sm:$0xff] %vm837, %v792
      %858 = vst.msk [vmem:[#allocation2 + $0xa0] sm:$0xff] %vm837, %v793
      %859 = vst.msk [vmem:[#allocation2 + $0xa8] sm:$0xff] %vm837, %v794
      %860 = vst.msk [vmem:[#allocation2 + $0xb0] sm:$0xff] %vm837, %v795
      %861 = vst.msk [vmem:[#allocation2 + $0xb8] sm:$0xff] %vm837, %v796
      %862 = vst.msk [vmem:[#allocation2 + $0xc0] sm:$0xff] %vm837, %v797
      %863 = vst.msk [vmem:[#allocation2 + $0xc8] sm:$0xff] %vm837, %v798
      %864 = vst.msk [vmem:[#allocation2 + $0xd0] sm:$0xff] %vm837, %v799
      %865 = vst.msk [vmem:[#allocation2 + $0xd8] sm:$0xff] %vm837, %v800
      %866 = vst.msk [vmem:[#allocation2 + $0xe0] sm:$0xff] %vm837, %v801
      %867 = vst.msk [vmem:[#allocation2 + $0xe8] sm:$0xff] %vm837, %v802
      %868 = vst.msk [vmem:[#allocation2 + $0xf0] sm:$0xff] %vm837, %v803
      %869 = vst.msk [vmem:[#allocation2 + $0xf8] sm:$0xff] %vm837, %v804
      %870 = vst.msk [vmem:[#allocation2 + $0x100] sm:$0xff] %vm837, %v805
      %871 = vst.msk [vmem:[#allocation2 + $0x108] sm:$0xff] %vm837, %v806
      %872 = vst.msk [vmem:[#allocation2 + $0x110] sm:$0xff] %vm837, %v807
      %873 = vst.msk [vmem:[#allocation2 + $0x118] sm:$0xff] %vm837, %v808
      %874 = vst.msk [vmem:[#allocation2 + $0x120] sm:$0xff] %vm837, %v809
      %875 = vst.msk [vmem:[#allocation2 + $0x128] sm:$0xff] %vm837, %v810
      %876 = vst.msk [vmem:[#allocation2 + $0x130] sm:$0xff] %vm837, %v811
      %877 = vst.msk [vmem:[#allocation2 + $0x138] sm:$0xff] %vm837, %v812
      %878 = vst.msk [vmem:[#allocation2 + $0x140] sm:$0xff] %vm837, %v813
      %879 = vst.msk [vmem:[#allocation2 + $0x148] sm:$0xff] %vm837, %v814
      %880 = vst.msk [vmem:[#allocation2 + $0x150] sm:$0xff] %vm837, %v815
      %881 = vst.msk [vmem:[#allocation2 + $0x158] sm:$0xff] %vm837, %v816
      %882 = vst.msk [vmem:[#allocation2 + $0x160] sm:$0xff] %vm837, %v817
      %883 = vst.msk [vmem:[#allocation2 + $0x168] sm:$0xff] %vm837, %v818
      %884 = vst.msk [vmem:[#allocation2 + $0x170] sm:$0xff] %vm837, %v819
      %885 = vst.msk [vmem:[#allocation2 + $0x178] sm:$0xff] %vm837, %v820
      %886 = vst.msk [vmem:[#allocation2 + $0x180] sm:$0xff] %vm837, %v821
      %887 = vst.msk [vmem:[#allocation2 + $0x188] sm:$0xff] %vm837, %v822
      %888 = vst.msk [vmem:[#allocation2 + $0x190] sm:$0xff] %vm837, %v823
      %889 = vst.msk [vmem:[#allocation2 + $0x198] sm:$0xff] %vm837, %v824
      %890 = vst.msk [vmem:[#allocation2 + $0x1a0] sm:$0xff] %vm837, %v825
      %891 = vst.msk [vmem:[#allocation2 + $0x1a8] sm:$0xff] %vm837, %v826
      %892 = vst.msk [vmem:[#allocation2 + $0x1b0] sm:$0xff] %vm837, %v827
      %893 = vst.msk [vmem:[#allocation2 + $0x1b8] sm:$0xff] %vm837, %v828
      %894 = vst.msk [vmem:[#allocation2 + $0x1c0] sm:$0xff] %vm837, %v829
      %895 = vst.msk [vmem:[#allocation2 + $0x1c8] sm:$0xff] %vm837, %v830
      %896 = vst.msk [vmem:[#allocation2 + $0x1d0] sm:$0xff] %vm837, %v831
      %897 = vst.msk [vmem:[#allocation2 + $0x1d8] sm:$0xff] %vm837, %v832
      %898 = vst.msk [vmem:[#allocation2 + $0x1e0] sm:$0xff] %vm837, %v833
      %899 = vst.msk [vmem:[#allocation2 + $0x1e8] sm:$0xff] %vm837, %v834
      %900 = vst.msk [vmem:[#allocation2 + $0x1f0] sm:$0xff] %vm837, %v835
      %901 = vst.msk [vmem:[#allocation2 + $0x1f8] sm:$0xff] %vm837, %v836
      %p902 = scmp.eq.s32.totalorder %s14, 8
      // Predicated region
      $region37: #{_lambda_.8} parent=31 // pred_check
        %p903 = pneg %p902
      $region38: #{_lambda_.8} parent=31 // pred_check_branch
        %905 = sbr.rel (%p903) target = $region40
      $region39: #{_lambda_.8} parent=31 // pred_region
        %v906 = vld [vmem:[#allocation2] sm:$0xff]
        %v907 = vld [vmem:[#allocation2 + $0x8] sm:$0xff]
        %v908 = vld [vmem:[#allocation2 + $0x10] sm:$0xff]
        %v909 = vld [vmem:[#allocation2 + $0x18] sm:$0xff]
        %v910 = vld [vmem:[#allocation2 + $0x20] sm:$0xff]
        %v911 = vld [vmem:[#allocation2 + $0x28] sm:$0xff]
        %v912 = vld [vmem:[#allocation2 + $0x30] sm:$0xff]
        %v913 = vld [vmem:[#allocation2 + $0x38] sm:$0xff]
        %v914 = vld [vmem:[#allocation2 + $0x40] sm:$0xff]
        %v915 = vld [vmem:[#allocation2 + $0x48] sm:$0xff]
        %v916 = vld [vmem:[#allocation2 + $0x50] sm:$0xff]
        %v917 = vld [vmem:[#allocation2 + $0x58] sm:$0xff]
        %v918 = vld [vmem:[#allocation2 + $0x60] sm:$0xff]
        %v919 = vld [vmem:[#allocation2 + $0x68] sm:$0xff]
        %v920 = vld [vmem:[#allocation2 + $0x70] sm:$0xff]
        %v921 = vld [vmem:[#allocation2 + $0x78] sm:$0xff]
        %v922 = vld [vmem:[#allocation2 + $0x80] sm:$0xff]
        %v923 = vld [vmem:[#allocation2 + $0x88] sm:$0xff]
        %v924 = vld [vmem:[#allocation2 + $0x90] sm:$0xff]
        %v925 = vld [vmem:[#allocation2 + $0x98] sm:$0xff]
        %v926 = vld [vmem:[#allocation2 + $0xa0] sm:$0xff]
        %v927 = vld [vmem:[#allocation2 + $0xa8] sm:$0xff]
        %v928 = vld [vmem:[#allocation2 + $0xb0] sm:$0xff]
        %v929 = vld [vmem:[#allocation2 + $0xb8] sm:$0xff]
        %v930 = vld [vmem:[#allocation2 + $0xc0] sm:$0xff]
        %v931 = vld [vmem:[#allocation2 + $0xc8] sm:$0xff]
        %v932 = vld [vmem:[#allocation2 + $0xd0] sm:$0xff]
        %v933 = vld [vmem:[#allocation2 + $0xd8] sm:$0xff]
        %v934 = vld [vmem:[#allocation2 + $0xe0] sm:$0xff]
        %v935 = vld [vmem:[#allocation2 + $0xe8] sm:$0xff]
        %v936 = vld [vmem:[#allocation2 + $0xf0] sm:$0xff]
        %v937 = vld [vmem:[#allocation2 + $0xf8] sm:$0xff]
        %v938 = vld [vmem:[#allocation2 + $0x100] sm:$0xff]
        %v939 = vld [vmem:[#allocation2 + $0x108] sm:$0xff]
        %v940 = vld [vmem:[#allocation2 + $0x110] sm:$0xff]
        %v941 = vld [vmem:[#allocation2 + $0x118] sm:$0xff]
        %v942 = vld [vmem:[#allocation2 + $0x120] sm:$0xff]
        %v943 = vld [vmem:[#allocation2 + $0x128] sm:$0xff]
        %v944 = vld [vmem:[#allocation2 + $0x130] sm:$0xff]
        %v945 = vld [vmem:[#allocation2 + $0x138] sm:$0xff]
        %v946 = vld [vmem:[#allocation2 + $0x140] sm:$0xff]
        %v947 = vld [vmem:[#allocation2 + $0x148] sm:$0xff]
        %v948 = vld [vmem:[#allocation2 + $0x150] sm:$0xff]
        %v949 = vld [vmem:[#allocation2 + $0x158] sm:$0xff]
        %v950 = vld [vmem:[#allocation2 + $0x160] sm:$0xff]
        %v951 = vld [vmem:[#allocation2 + $0x168] sm:$0xff]
        %v952 = vld [vmem:[#allocation2 + $0x170] sm:$0xff]
        %v953 = vld [vmem:[#allocation2 + $0x178] sm:$0xff]
        %v954 = vld [vmem:[#allocation2 + $0x180] sm:$0xff]
        %v955 = vld [vmem:[#allocation2 + $0x188] sm:$0xff]
        %v956 = vld [vmem:[#allocation2 + $0x190] sm:$0xff]
        %v957 = vld [vmem:[#allocation2 + $0x198] sm:$0xff]
        %v958 = vld [vmem:[#allocation2 + $0x1a0] sm:$0xff]
        %v959 = vld [vmem:[#allocation2 + $0x1a8] sm:$0xff]
        %v960 = vld [vmem:[#allocation2 + $0x1b0] sm:$0xff]
        %v961 = vld [vmem:[#allocation2 + $0x1b8] sm:$0xff]
        %v962 = vld [vmem:[#allocation2 + $0x1c0] sm:$0xff]
        %v963 = vld [vmem:[#allocation2 + $0x1c8] sm:$0xff]
        %v964 = vld [vmem:[#allocation2 + $0x1d0] sm:$0xff]
        %v965 = vld [vmem:[#allocation2 + $0x1d8] sm:$0xff]
        %v966 = vld [vmem:[#allocation2 + $0x1e0] sm:$0xff]
        %v967 = vld [vmem:[#allocation2 + $0x1e8] sm:$0xff]
        %v968 = vld [vmem:[#allocation2 + $0x1f0] sm:$0xff]
        %v969 = vld [vmem:[#allocation2 + $0x1f8] sm:$0xff]
        %v970 = vld [vmem:[%s2] sm:$0x1]
        %v972 = vperm.slane %v970, 0
        %v974 = vadd.f32 %v906, %v972
        %v975 = vadd.f32 %v907, %v972
        %v976 = vadd.f32 %v908, %v972
        %v977 = vadd.f32 %v909, %v972
        %v978 = vadd.f32 %v910, %v972
        %v979 = vadd.f32 %v911, %v972
        %v980 = vadd.f32 %v912, %v972
        %v981 = vadd.f32 %v913, %v972
        %v982 = vadd.f32 %v914, %v972
        %v983 = vadd.f32 %v915, %v972
        %v984 = vadd.f32 %v916, %v972
        %v985 = vadd.f32 %v917, %v972
        %v986 = vadd.f32 %v918, %v972
        %v987 = vadd.f32 %v919, %v972
        %v988 = vadd.f32 %v920, %v972
        %v989 = vadd.f32 %v921, %v972
        %v990 = vadd.f32 %v922, %v972
        %v991 = vadd.f32 %v923, %v972
        %v992 = vadd.f32 %v924, %v972
        %v993 = vadd.f32 %v925, %v972
        %v994 = vadd.f32 %v926, %v972
        %v995 = vadd.f32 %v927, %v972
        %v996 = vadd.f32 %v928, %v972
        %v997 = vadd.f32 %v929, %v972
        %v998 = vadd.f32 %v930, %v972
        %v999 = vadd.f32 %v931, %v972
        %v1000 = vadd.f32 %v932, %v972
        %v1001 = vadd.f32 %v933, %v972
        %v1002 = vadd.f32 %v934, %v972
        %v1003 = vadd.f32 %v935, %v972
        %v1004 = vadd.f32 %v936, %v972
        %v1005 = vadd.f32 %v937, %v972
        %v1006 = vadd.f32 %v938, %v972
        %v1007 = vadd.f32 %v939, %v972
        %v1008 = vadd.f32 %v940, %v972
        %v1009 = vadd.f32 %v941, %v972
        %v1010 = vadd.f32 %v942, %v972
        %v1011 = vadd.f32 %v943, %v972
        %v1012 = vadd.f32 %v944, %v972
        %v1013 = vadd.f32 %v945, %v972
        %v1014 = vadd.f32 %v946, %v972
        %v1015 = vadd.f32 %v947, %v972
        %v1016 = vadd.f32 %v948, %v972
        %v1017 = vadd.f32 %v949, %v972
        %v1018 = vadd.f32 %v950, %v972
        %v1019 = vadd.f32 %v951, %v972
        %v1020 = vadd.f32 %v952, %v972
        %v1021 = vadd.f32 %v953, %v972
        %v1022 = vadd.f32 %v954, %v972
        %v1023 = vadd.f32 %v955, %v972
        %v1024 = vadd.f32 %v956, %v972
        %v1025 = vadd.f32 %v957, %v972
        %v1026 = vadd.f32 %v958, %v972
        %v1027 = vadd.f32 %v959, %v972
        %v1028 = vadd.f32 %v960, %v972
        %v1029 = vadd.f32 %v961, %v972
        %v1030 = vadd.f32 %v962, %v972
        %v1031 = vadd.f32 %v963, %v972
        %v1032 = vadd.f32 %v964, %v972
        %v1033 = vadd.f32 %v965, %v972
        %v1034 = vadd.f32 %v966, %v972
        %v1035 = vadd.f32 %v967, %v972
        %v1036 = vadd.f32 %v968, %v972
        %v1037 = vadd.f32 %v969, %v972
        %v1038 = vmax.f32 %v974, 0.0
        %v1039 = vmax.f32 %v975, 0.0
        %v1040 = vmax.f32 %v976, 0.0
        %v1041 = vmax.f32 %v977, 0.0
        %v1042 = vmax.f32 %v978, 0.0
        %v1043 = vmax.f32 %v979, 0.0
        %v1044 = vmax.f32 %v980, 0.0
        %v1045 = vmax.f32 %v981, 0.0
        %v1046 = vmax.f32 %v982, 0.0
        %v1047 = vmax.f32 %v983, 0.0
        %v1048 = vmax.f32 %v984, 0.0
        %v1049 = vmax.f32 %v985, 0.0
        %v1050 = vmax.f32 %v986, 0.0
        %v1051 = vmax.f32 %v987, 0.0
        %v1052 = vmax.f32 %v988, 0.0
        %v1053 = vmax.f32 %v989, 0.0
        %v1054 = vmax.f32 %v990, 0.0
        %v1055 = vmax.f32 %v991, 0.0
        %v1056 = vmax.f32 %v992, 0.0
        %v1057 = vmax.f32 %v993, 0.0
        %v1058 = vmax.f32 %v994, 0.0
        %v1059 = vmax.f32 %v995, 0.0
        %v1060 = vmax.f32 %v996, 0.0
        %v1061 = vmax.f32 %v997, 0.0
        %v1062 = vmax.f32 %v998, 0.0
        %v1063 = vmax.f32 %v999, 0.0
        %v1064 = vmax.f32 %v1000, 0.0
        %v1065 = vmax.f32 %v1001, 0.0
        %v1066 = vmax.f32 %v1002, 0.0
        %v1067 = vmax.f32 %v1003, 0.0
        %v1068 = vmax.f32 %v1004, 0.0
        %v1069 = vmax.f32 %v1005, 0.0
        %v1070 = vmax.f32 %v1006, 0.0
        %v1071 = vmax.f32 %v1007, 0.0
        %v1072 = vmax.f32 %v1008, 0.0
        %v1073 = vmax.f32 %v1009, 0.0
        %v1074 = vmax.f32 %v1010, 0.0
        %v1075 = vmax.f32 %v1011, 0.0
        %v1076 = vmax.f32 %v1012, 0.0
        %v1077 = vmax.f32 %v1013, 0.0
        %v1078 = vmax.f32 %v1014, 0.0
        %v1079 = vmax.f32 %v1015, 0.0
        %v1080 = vmax.f32 %v1016, 0.0
        %v1081 = vmax.f32 %v1017, 0.0
        %v1082 = vmax.f32 %v1018, 0.0
        %v1083 = vmax.f32 %v1019, 0.0
        %v1084 = vmax.f32 %v1020, 0.0
        %v1085 = vmax.f32 %v1021, 0.0
        %v1086 = vmax.f32 %v1022, 0.0
        %v1087 = vmax.f32 %v1023, 0.0
        %v1088 = vmax.f32 %v1024, 0.0
        %v1089 = vmax.f32 %v1025, 0.0
        %v1090 = vmax.f32 %v1026, 0.0
        %v1091 = vmax.f32 %v1027, 0.0
        %v1092 = vmax.f32 %v1028, 0.0
        %v1093 = vmax.f32 %v1029, 0.0
        %v1094 = vmax.f32 %v1030, 0.0
        %v1095 = vmax.f32 %v1031, 0.0
        %v1096 = vmax.f32 %v1032, 0.0
        %v1097 = vmax.f32 %v1033, 0.0
        %v1098 = vmax.f32 %v1034, 0.0
        %v1099 = vmax.f32 %v1035, 0.0
        %v1100 = vmax.f32 %v1036, 0.0
        %v1101 = vmax.f32 %v1037, 0.0
        %1102 = vst.msk [vmem:[%s3] sm:$0xff] %vm837, %v1038
        %1103 = vst.msk [vmem:[%s3 + $0x8] sm:$0xff] %vm837, %v1039
        %1104 = vst.msk [vmem:[%s3 + $0x10] sm:$0xff] %vm837, %v1040
        %1105 = vst.msk [vmem:[%s3 + $0x18] sm:$0xff] %vm837, %v1041
        %1106 = vst.msk [vmem:[%s3 + $0x20] sm:$0xff] %vm837, %v1042
        %1107 = vst.msk [vmem:[%s3 + $0x28] sm:$0xff] %vm837, %v1043
        %1108 = vst.msk [vmem:[%s3 + $0x30] sm:$0xff] %vm837, %v1044
        %1109 = vst.msk [vmem:[%s3 + $0x38] sm:$0xff] %vm837, %v1045
        %1110 = vst.msk [vmem:[%s3 + $0x40] sm:$0xff] %vm837, %v1046
        %1111 = vst.msk [vmem:[%s3 + $0x48] sm:$0xff] %vm837, %v1047
        %1112 = vst.msk [vmem:[%s3 + $0x50] sm:$0xff] %vm837, %v1048
        %1113 = vst.msk [vmem:[%s3 + $0x58] sm:$0xff] %vm837, %v1049
        %1114 = vst.msk [vmem:[%s3 + $0x60] sm:$0xff] %vm837, %v1050
        %1115 = vst.msk [vmem:[%s3 + $0x68] sm:$0xff] %vm837, %v1051
        %1116 = vst.msk [vmem:[%s3 + $0x70] sm:$0xff] %vm837, %v1052
        %1117 = vst.msk [vmem:[%s3 + $0x78] sm:$0xff] %vm837, %v1053
        %1118 = vst.msk [vmem:[%s3 + $0x80] sm:$0xff] %vm837, %v1054
        %1119 = vst.msk [vmem:[%s3 + $0x88] sm:$0xff] %vm837, %v1055
        %1120 = vst.msk [vmem:[%s3 + $0x90] sm:$0xff] %vm837, %v1056
        %1121 = vst.msk [vmem:[%s3 + $0x98] sm:$0xff] %vm837, %v1057
        %1122 = vst.msk [vmem:[%s3 + $0xa0] sm:$0xff] %vm837, %v1058
        %1123 = vst.msk [vmem:[%s3 + $0xa8] sm:$0xff] %vm837, %v1059
        %1124 = vst.msk [vmem:[%s3 + $0xb0] sm:$0xff] %vm837, %v1060
        %1125 = vst.msk [vmem:[%s3 + $0xb8] sm:$0xff] %vm837, %v1061
        %1126 = vst.msk [vmem:[%s3 + $0xc0] sm:$0xff] %vm837, %v1062
        %1127 = vst.msk [vmem:[%s3 + $0xc8] sm:$0xff] %vm837, %v1063
        %1128 = vst.msk [vmem:[%s3 + $0xd0] sm:$0xff] %vm837, %v1064
        %1129 = vst.msk [vmem:[%s3 + $0xd8] sm:$0xff] %vm837, %v1065
        %1130 = vst.msk [vmem:[%s3 + $0xe0] sm:$0xff] %vm837, %v1066
        %1131 = vst.msk [vmem:[%s3 + $0xe8] sm:$0xff] %vm837, %v1067
        %1132 = vst.msk [vmem:[%s3 + $0xf0] sm:$0xff] %vm837, %v1068
        %1133 = vst.msk [vmem:[%s3 + $0xf8] sm:$0xff] %vm837, %v1069
        %1134 = vst.msk [vmem:[%s3 + $0x100] sm:$0xff] %vm837, %v1070
        %1135 = vst.msk [vmem:[%s3 + $0x108] sm:$0xff] %vm837, %v1071
        %1136 = vst.msk [vmem:[%s3 + $0x110] sm:$0xff] %vm837, %v1072
        %1137 = vst.msk [vmem:[%s3 + $0x118] sm:$0xff] %vm837, %v1073
        %1138 = vst.msk [vmem:[%s3 + $0x120] sm:$0xff] %vm837, %v1074
        %1139 = vst.msk [vmem:[%s3 + $0x128] sm:$0xff] %vm837, %v1075
        %1140 = vst.msk [vmem:[%s3 + $0x130] sm:$0xff] %vm837, %v1076
        %1141 = vst.msk [vmem:[%s3 + $0x138] sm:$0xff] %vm837, %v1077
        %1142 = vst.msk [vmem:[%s3 + $0x140] sm:$0xff] %vm837, %v1078
        %1143 = vst.msk [vmem:[%s3 + $0x148] sm:$0xff] %vm837, %v1079
        %1144 = vst.msk [vmem:[%s3 + $0x150] sm:$0xff] %vm837, %v1080
        %1145 = vst.msk [vmem:[%s3 + $0x158] sm:$0xff] %vm837, %v1081
        %1146 = vst.msk [vmem:[%s3 + $0x160] sm:$0xff] %vm837, %v1082
        %1147 = vst.msk [vmem:[%s3 + $0x168] sm:$0xff] %vm837, %v1083
        %1148 = vst.msk [vmem:[%s3 + $0x170] sm:$0xff] %vm837, %v1084
        %1149 = vst.msk [vmem:[%s3 + $0x178] sm:$0xff] %vm837, %v1085
        %1150 = vst.msk [vmem:[%s3 + $0x180] sm:$0xff] %vm837, %v1086
        %1151 = vst.msk [vmem:[%s3 + $0x188] sm:$0xff] %vm837, %v1087
        %1152 = vst.msk [vmem:[%s3 + $0x190] sm:$0xff] %vm837, %v1088
        %1153 = vst.msk [vmem:[%s3 + $0x198] sm:$0xff] %vm837, %v1089
        %1154 = vst.msk [vmem:[%s3 + $0x1a0] sm:$0xff] %vm837, %v1090
        %1155 = vst.msk [vmem:[%s3 + $0x1a8] sm:$0xff] %vm837, %v1091
        %1156 = vst.msk [vmem:[%s3 + $0x1b0] sm:$0xff] %vm837, %v1092
        %1157 = vst.msk [vmem:[%s3 + $0x1b8] sm:$0xff] %vm837, %v1093
        %1158 = vst.msk [vmem:[%s3 + $0x1c0] sm:$0xff] %vm837, %v1094
        %1159 = vst.msk [vmem:[%s3 + $0x1c8] sm:$0xff] %vm837, %v1095
        %1160 = vst.msk [vmem:[%s3 + $0x1d0] sm:$0xff] %vm837, %v1096
        %1161 = vst.msk [vmem:[%s3 + $0x1d8] sm:$0xff] %vm837, %v1097
        %1162 = vst.msk [vmem:[%s3 + $0x1e0] sm:$0xff] %vm837, %v1098
        %1163 = vst.msk [vmem:[%s3 + $0x1e8] sm:$0xff] %vm837, %v1099
        %1164 = vst.msk [vmem:[%s3 + $0x1f0] sm:$0xff] %vm837, %v1100
        %1165 = vst.msk [vmem:[%s3 + $0x1f8] sm:$0xff] %vm837, %v1101
      $region40: #{_lambda_.8} parent=31 // pred_fallthru
        _
      // Predicated region
      $region41: #{_lambda_.8} parent=31 // pred_check
        %p1166 = pneg %p100
      $region42: #{_lambda_.8} parent=31 // pred_check_branch
        %1168 = sbr.rel (%p1166) target = $region44
      $region43: #{_lambda_.8} parent=31 // pred_region
        _
      $region44: #{_lambda_.8} parent=31 // pred_fallthru
        _
      // Predicated region
      $region45: #{_lambda_.8} parent=31 // pred_check
        %p1169 = pneg %p100
      $region46: #{_lambda_.8} parent=31 // pred_check_branch
        %1171 = sbr.rel (%p1169) target = $region48
      $region47: #{_lambda_.8} parent=31 // pred_region
        _
      $region48: #{_lambda_.8} parent=31 // pred_fallthru
        _
    $region32: #{_lambda_.8} parent=5 // pred_fallthru
      _
    %p1172 = scmp.le.s32.totalorder 2, %s9
    // Predicated region
    $region49: #{_lambda_.8} parent=5 // pred_check
      %p1173 = pneg %p1172
    $region50: #{_lambda_.8} parent=5 // pred_check_branch
      %1175 = sbr.rel (%p1173) target = $region52
    $region51: #{_lambda_.8} parent=5 // pred_region
      %s1176 = ssub.s32 %s9, 2
    $region52: #{_lambda_.8} parent=5 // pred_fallthru
      _
  $region6: #{_lambda_.8} parent=0 // loop_footer
    %s13 = sadd.s32 1, %s9
  $region7: #{_lambda_.8} parent=0 // loop_footer_branch
    %8 = sbr.rel target = $region3
  $region8: #{_lambda_.8} parent=0 // loop_exit
    _

// kernel: _lambda_.10
$region0: #{_lambda_.10}
  #allocation0 [shape = 'u32[]', space=smem, size = 0x4, offset = 0x4, fixed_abs, tag = 'smem constant byte address 0x4 - core index']
  #allocation1 [shape = 'u32[72,128]{1,0:T(1,128)}', space=vmem, size = 0x9000, scoped, tag = 'internal scratch']
  %s0 = inlined_call_operand.vmem [shape: f32[4,128,64], index: 0, kind: input, shape index: {}]
  %s1 = inlined_call_operand.vmem [shape: f32[128,64], index: 1, kind: output, shape index: {}]
  %s2 = sld [smem:[#allocation0]]
  $region14: #{_lambda_.10} parent=0
    _
  %s4 = ssub.s32 1, %s2
  %s5 = scalar_select 0, %s4, %s2
  // Predicated region
  $region2: #{_lambda_.10} parent=0 // pred_check
    _
  $region3: #{_lambda_.10} parent=0 // pred_check_branch
    %7 = sbr.rel (0) target = $region5
  $region4: #{_lambda_.10} parent=0 // pred_region
    _
  $region5: #{_lambda_.10} parent=0 // pred_fallthru
    _
  %v8 = vld [vmem:[%s0] sm:$0xff]
  %v9 = vld [vmem:[%s0 + $0x8] sm:$0xff]
  %v10 = vld [vmem:[%s0 + $0x10] sm:$0xff]
  %v11 = vld [vmem:[%s0 + $0x18] sm:$0xff]
  %v12 = vld [vmem:[%s0 + $0x20] sm:$0xff]
  %v13 = vld [vmem:[%s0 + $0x28] sm:$0xff]
  %v14 = vld [vmem:[%s0 + $0x30] sm:$0xff]
  %v15 = vld [vmem:[%s0 + $0x38] sm:$0xff]
  %v16 = vld [vmem:[%s0 + $0x40] sm:$0xff]
  %v17 = vld [vmem:[%s0 + $0x48] sm:$0xff]
  %v18 = vld [vmem:[%s0 + $0x50] sm:$0xff]
  %v19 = vld [vmem:[%s0 + $0x58] sm:$0xff]
  %v20 = vld [vmem:[%s0 + $0x60] sm:$0xff]
  %v21 = vld [vmem:[%s0 + $0x68] sm:$0xff]
  %v22 = vld [vmem:[%s0 + $0x70] sm:$0xff]
  %v23 = vld [vmem:[%s0 + $0x78] sm:$0xff]
  %s24 = scalar_lea.vmem %s0, 128
  %v25 = vld [vmem:[%s24] sm:$0xff]
  %v26 = vld [vmem:[%s24 + $0x8] sm:$0xff]
  %v27 = vld [vmem:[%s24 + $0x10] sm:$0xff]
  %v28 = vld [vmem:[%s24 + $0x18] sm:$0xff]
  %v29 = vld [vmem:[%s24 + $0x20] sm:$0xff]
  %v30 = vld [vmem:[%s24 + $0x28] sm:$0xff]
  %v31 = vld [vmem:[%s24 + $0x30] sm:$0xff]
  %v32 = vld [vmem:[%s24 + $0x38] sm:$0xff]
  %v33 = vld [vmem:[%s24 + $0x40] sm:$0xff]
  %v34 = vld [vmem:[%s24 + $0x48] sm:$0xff]
  %v35 = vld [vmem:[%s24 + $0x50] sm:$0xff]
  %v36 = vld [vmem:[%s24 + $0x58] sm:$0xff]
  %v37 = vld [vmem:[%s24 + $0x60] sm:$0xff]
  %v38 = vld [vmem:[%s24 + $0x68] sm:$0xff]
  %v39 = vld [vmem:[%s24 + $0x70] sm:$0xff]
  %v40 = vld [vmem:[%s24 + $0x78] sm:$0xff]
  %v41 = vmax.f32 %v8, %v25
  %v42 = vmax.f32 %v9, %v26
  %v43 = vmax.f32 %v10, %v27
  %v44 = vmax.f32 %v11, %v28
  %v45 = vmax.f32 %v12, %v29
  %v46 = vmax.f32 %v13, %v30
  %v47 = vmax.f32 %v14, %v31
  %v48 = vmax.f32 %v15, %v32
  %v49 = vmax.f32 %v16, %v33
  %v50 = vmax.f32 %v17, %v34
  %v51 = vmax.f32 %v18, %v35
  %v52 = vmax.f32 %v19, %v36
  %v53 = vmax.f32 %v20, %v37
  %v54 = vmax.f32 %v21, %v38
  %v55 = vmax.f32 %v22, %v39
  %v56 = vmax.f32 %v23, %v40
  %s57 = scalar_lea.vmem %s0, 256
  %v58 = vld [vmem:[%s57] sm:$0xff]
  %v59 = vld [vmem:[%s57 + $0x8] sm:$0xff]
  %v60 = vld [vmem:[%s57 + $0x10] sm:$0xff]
  %v61 = vld [vmem:[%s57 + $0x18] sm:$0xff]
  %v62 = vld [vmem:[%s57 + $0x20] sm:$0xff]
  %v63 = vld [vmem:[%s57 + $0x28] sm:$0xff]
  %v64 = vld [vmem:[%s57 + $0x30] sm:$0xff]
  %v65 = vld [vmem:[%s57 + $0x38] sm:$0xff]
  %v66 = vld [vmem:[%s57 + $0x40] sm:$0xff]
  %v67 = vld [vmem:[%s57 + $0x48] sm:$0xff]
  %v68 = vld [vmem:[%s57 + $0x50] sm:$0xff]
  %v69 = vld [vmem:[%s57 + $0x58] sm:$0xff]
  %v70 = vld [vmem:[%s57 + $0x60] sm:$0xff]
  %v71 = vld [vmem:[%s57 + $0x68] sm:$0xff]
  %v72 = vld [vmem:[%s57 + $0x70] sm:$0xff]
  %v73 = vld [vmem:[%s57 + $0x78] sm:$0xff]
  %s74 = scalar_lea.vmem %s0, 384
  %v75 = vld [vmem:[%s74] sm:$0xff]
  %v76 = vld [vmem:[%s74 + $0x8] sm:$0xff]
  %v77 = vld [vmem:[%s74 + $0x10] sm:$0xff]
  %v78 = vld [vmem:[%s74 + $0x18] sm:$0xff]
  %v79 = vld [vmem:[%s74 + $0x20] sm:$0xff]
  %v80 = vld [vmem:[%s74 + $0x28] sm:$0xff]
  %v81 = vld [vmem:[%s74 + $0x30] sm:$0xff]
  %v82 = vld [vmem:[%s74 + $0x38] sm:$0xff]
  %v83 = vld [vmem:[%s74 + $0x40] sm:$0xff]
  %v84 = vld [vmem:[%s74 + $0x48] sm:$0xff]
  %v85 = vld [vmem:[%s74 + $0x50] sm:$0xff]
  %v86 = vld [vmem:[%s74 + $0x58] sm:$0xff]
  %v87 = vld [vmem:[%s74 + $0x60] sm:$0xff]
  %v88 = vld [vmem:[%s74 + $0x68] sm:$0xff]
  %v89 = vld [vmem:[%s74 + $0x70] sm:$0xff]
  %v90 = vld [vmem:[%s74 + $0x78] sm:$0xff]
  %v91 = vmax.f32 %v58, %v75
  %v92 = vmax.f32 %v59, %v76
  %v93 = vmax.f32 %v60, %v77
  %v94 = vmax.f32 %v61, %v78
  %v95 = vmax.f32 %v62, %v79
  %v96 = vmax.f32 %v63, %v80
  %v97 = vmax.f32 %v64, %v81
  %v98 = vmax.f32 %v65, %v82
  %v99 = vmax.f32 %v66, %v83
  %v100 = vmax.f32 %v67, %v84
  %v101 = vmax.f32 %v68, %v85
  %v102 = vmax.f32 %v69, %v86
  %v103 = vmax.f32 %v70, %v87
  %v104 = vmax.f32 %v71, %v88
  %v105 = vmax.f32 %v72, %v89
  %v106 = vmax.f32 %v73, %v90
  %v107 = vmax.f32 %v41, %v91
  %v108 = vmax.f32 %v42, %v92
  %v109 = vmax.f32 %v43, %v93
  %v110 = vmax.f32 %v44, %v94
  %v111 = vmax.f32 %v45, %v95
  %v112 = vmax.f32 %v46, %v96
  %v113 = vmax.f32 %v47, %v97
  %v114 = vmax.f32 %v48, %v98
  %v115 = vmax.f32 %v49, %v99
  %v116 = vmax.f32 %v50, %v100
  %v117 = vmax.f32 %v51, %v101
  %v118 = vmax.f32 %v52, %v102
  %v119 = vmax.f32 %v53, %v103
  %v120 = vmax.f32 %v54, %v104
  %v121 = vmax.f32 %v55, %v105
  %v122 = vmax.f32 %v56, %v106
  %v123 = vmax.f32 %v107, 0.0
  %v124 = vmax.f32 %v108, 0.0
  %v125 = vmax.f32 %v109, 0.0
  %v126 = vmax.f32 %v110, 0.0
  %v127 = vmax.f32 %v111, 0.0
  %v128 = vmax.f32 %v112, 0.0
  %v129 = vmax.f32 %v113, 0.0
  %v130 = vmax.f32 %v114, 0.0
  %v131 = vmax.f32 %v115, 0.0
  %v132 = vmax.f32 %v116, 0.0
  %v133 = vmax.f32 %v117, 0.0
  %v134 = vmax.f32 %v118, 0.0
  %v135 = vmax.f32 %v119, 0.0
  %v136 = vmax.f32 %v120, 0.0
  %v137 = vmax.f32 %v121, 0.0
  %v138 = vmax.f32 %v122, 0.0
  %vm139 = vcmask 523264
  %140 = vst.msk [vmem:[%s1] sm:$0xff] %vm139, %v123
  %141 = vst.msk [vmem:[%s1 + $0x8] sm:$0xff] %vm139, %v124
  %142 = vst.msk [vmem:[%s1 + $0x10] sm:$0xff] %vm139, %v125
  %143 = vst.msk [vmem:[%s1 + $0x18] sm:$0xff] %vm139, %v126
  %144 = vst.msk [vmem:[%s1 + $0x20] sm:$0xff] %vm139, %v127
  %145 = vst.msk [vmem:[%s1 + $0x28] sm:$0xff] %vm139, %v128
  %146 = vst.msk [vmem:[%s1 + $0x30] sm:$0xff] %vm139, %v129
  %147 = vst.msk [vmem:[%s1 + $0x38] sm:$0xff] %vm139, %v130
  %148 = vst.msk [vmem:[%s1 + $0x40] sm:$0xff] %vm139, %v131
  %149 = vst.msk [vmem:[%s1 + $0x48] sm:$0xff] %vm139, %v132
  %150 = vst.msk [vmem:[%s1 + $0x50] sm:$0xff] %vm139, %v133
  %151 = vst.msk [vmem:[%s1 + $0x58] sm:$0xff] %vm139, %v134
  %152 = vst.msk [vmem:[%s1 + $0x60] sm:$0xff] %vm139, %v135
  %153 = vst.msk [vmem:[%s1 + $0x68] sm:$0xff] %vm139, %v136
  %154 = vst.msk [vmem:[%s1 + $0x70] sm:$0xff] %vm139, %v137
  %155 = vst.msk [vmem:[%s1 + $0x78] sm:$0xff] %vm139, %v138
  // Predicated region
  $region6: #{_lambda_.10} parent=0 // pred_check
    _
  $region7: #{_lambda_.10} parent=0 // pred_check_branch
    %157 = sbr.rel (0) target = $region9
  $region8: #{_lambda_.10} parent=0 // pred_region
    _
  $region9: #{_lambda_.10} parent=0 // pred_fallthru
    _
  // Predicated region
  $region10: #{_lambda_.10} parent=0 // pred_check
    _
  $region11: #{_lambda_.10} parent=0 // pred_check_branch
    %159 = sbr.rel (0) target = $region13
  $region12: #{_lambda_.10} parent=0 // pred_region
    _
  $region13: #{_lambda_.10} parent=0 // pred_fallthru
    _

// kernel: _lambda_.9
$region0: #{_lambda_.9}
  #allocation0 [shape = 'u32[]', space=smem, size = 0x4, offset = 0x4, fixed_abs, tag = 'smem constant byte address 0x4 - core index']
  #allocation1 [shape = 'u32[72,128]{1,0:T(1,128)}', space=vmem, size = 0x9000, scoped, tag = 'internal scratch']
  #allocation2 [shape = 'f32[512,64]{1,0:T(8,128)}', space=vmem, size = 0x40000, scoped, tag = 'scratch operand']
  %s0 = inlined_call_operand.vmem [shape: f32[9,512,64], index: 0, kind: input, shape index: {}]
  %s1 = inlined_call_operand.vmem [shape: f32[9,64,64], index: 1, kind: input, shape index: {}]
  %s2 = inlined_call_operand.vmem [shape: f32[1,64], index: 2, kind: input, shape index: {}]
  %s3 = inlined_call_operand.vmem [shape: f32[512,64], index: 3, kind: output, shape index: {}]
  %s4 = sld [smem:[#allocation0]]
  $region53: #{_lambda_.9} parent=0
    _
  %s6 = ssub.s32 1, %s4
  %s7 = scalar_select 0, %s6, %s4
  loop: start=0, step=1, limit=11
  $region2: #{_lambda_.9} parent=0 // loop_pre_header
    _
  $region3: #{_lambda_.9} parent=0 // loop_header
    %s9 = sphi 0, %s13
    %p10 = scmp.ge.s32.totalorder %s9, 11
    %s19 = sphi 0, %s21
    %s22 = sphi 0, %s19
    %s23 = sphi 0, %s22
    %s39 = sphi 0, %s23
    %s45 = sphi 0, %s47
    %s48 = sphi 0, %s45
    %s49 = sphi 0, %s48
    %s65 = sphi 0, %s49
    %s69 = sphi 0, %s69
    %s71 = sphi 0, %s69
    %s72 = sphi 0, %s71
    %s86 = sphi 0, %s72
    %s90 = sphi 0, %s90
    %s92 = sphi 0, %s90
    %s93 = sphi 0, %s92
    %s107 = sphi 0, %s93
  $region4: #{_lambda_.9} parent=0 // loop_header_branch
    %12 = sbr.rel (%p10) target = $region8
  $region5: #{_lambda_.9} parent=0 // loop_body
    %s14 = ssub.s32 %s9, 1
    %s15 = ssub.s32 %s9, 2
    %s16 = sadd.s32 %s9, 1
    %s17 = ssub.s32 %s9, %s16
    %p18 = scmp.eq.s32.totalorder %s17, 0
    %s20 = sadd.s32 %s19, 1
    %s21 = scalar_select %p18, %s19, %s20
    %p24 = pneg %p18
    %p25 = scmp.eq.s32.totalorder %s9, 8
    %p26 = por %p24, %p25
    %p27 = scmp.ne.s32.totalorder %s19, %s22
    %p28 = scmp.eq.s32.totalorder %s9, 0
    %p29 = por %p27, %p28
    %p30 = scmp.ne.s32.totalorder %s19, %s22
    %p31 = scmp.eq.s32.totalorder %s14, 8
    %p32 = por %p30, %p31
    %p33 = scmp.ne.s32.totalorder %s22, %s23
    %p34 = scmp.eq.s32.totalorder %s14, 0
    %p35 = por %p33, %p34
    %p36 = scmp.ne.s32.totalorder %s22, %s23
    %p37 = scmp.eq.s32.totalorder %s15, 8
    %p38 = por %p36, %p37
    %p40 = scmp.ne.s32.totalorder %s23, %s39
    %p41 = scmp.eq.s32.totalorder %s15, 0
    %p42 = por %p40, %p41
    %s43 = ssub.s32 %s9, %s16
    %p44 = scmp.eq.s32.totalorder %s43, 0
    %s46 = sadd.s32 %s45, 1
    %s47 = scalar_select %p44, %s45, %s46
    %p50 = pneg %p44
    %p51 = scmp.eq.s32.totalorder %s9, 8
    %p52 = por %p50, %p51
    %p53 = scmp.ne.s32.totalorder %s45, %s48
    %p54 = scmp.eq.s32.totalorder %s9, 0
    %p55 = por %p53, %p54
    %p56 = scmp.ne.s32.totalorder %s45, %s48
    %p57 = scmp.eq.s32.totalorder %s14, 8
    %p58 = por %p56, %p57
    %p59 = scmp.ne.s32.totalorder %s48, %s49
    %p60 = scmp.eq.s32.totalorder %s14, 0
    %p61 = por %p59, %p60
    %p62 = scmp.ne.s32.totalorder %s48, %s49
    %p63 = scmp.eq.s32.totalorder %s15, 8
    %p64 = por %p62, %p63
    %p66 = scmp.ne.s32.totalorder %s49, %s65
    %p67 = scmp.eq.s32.totalorder %s15, 0
    %p68 = por %p66, %p67
    %s70 = sadd.s32 %s69, 1
    %p73 = scmp.eq.s32.totalorder %s9, 8
    %p74 = scmp.ne.s32.totalorder %s69, %s71
    %p75 = scmp.eq.s32.totalorder %s9, 0
    %p76 = por %p74, %p75
    %p77 = scmp.ne.s32.totalorder %s69, %s71
    %p78 = scmp.eq.s32.totalorder %s14, 8
    %p79 = por %p77, %p78
    %p80 = scmp.ne.s32.totalorder %s71, %s72
    %p81 = scmp.eq.s32.totalorder %s14, 0
    %p82 = por %p80, %p81
    %p83 = scmp.ne.s32.totalorder %s71, %s72
    %p84 = scmp.eq.s32.totalorder %s15, 8
    %p85 = por %p83, %p84
    %p87 = scmp.ne.s32.totalorder %s72, %s86
    %p88 = scmp.eq.s32.totalorder %s15, 0
    %p89 = por %p87, %p88
    %s91 = sadd.s32 %s90, 1
    %p94 = scmp.eq.s32.totalorder %s9, 8
    %p95 = scmp.ne.s32.totalorder %s90, %s92
    %p96 = scmp.eq.s32.totalorder %s9, 0
    %p97 = por %p95, %p96
    %p98 = scmp.ne.s32.totalorder %s90, %s92
    %p99 = scmp.eq.s32.totalorder %s14, 8
    %p100 = por %p98, %p99
    %p101 = scmp.ne.s32.totalorder %s92, %s93
    %p102 = scmp.eq.s32.totalorder %s14, 0
    %p103 = por %p101, %p102
    %p104 = scmp.ne.s32.totalorder %s92, %s93
    %p105 = scmp.eq.s32.totalorder %s15, 8
    %p106 = por %p104, %p105
    %p108 = scmp.ne.s32.totalorder %s93, %s107
    %p109 = scmp.eq.s32.totalorder %s15, 0
    %p110 = por %p108, %p109
    %p111 = scmp.le.s32.totalorder 1, %s9
    %p112 = scmp.lt.s32.totalorder %s9, 10
    %p113 = pnand %p111, %p112
    %p114 = pneg %p113
    // Predicated region
    $region9: #{_lambda_.9} parent=5 // pred_check
      _
    $region10: #{_lambda_.9} parent=5 // pred_check_branch
      %116 = sbr.rel (%p113) target = $region12
    $region11: #{_lambda_.9} parent=5 // pred_region
      %s117 = ssub.s32 %s9, 1
      // Predicated region
      $region13: #{_lambda_.9} parent=11 // pred_check
        %p118 = pneg %p82
      $region14: #{_lambda_.9} parent=11 // pred_check_branch
        %120 = sbr.rel (%p118) target = $region16
      $region15: #{_lambda_.9} parent=11 // pred_region
        _
      $region16: #{_lambda_.9} parent=11 // pred_fallthru
        _
    $region12: #{_lambda_.9} parent=5 // pred_fallthru
      _
    %p121 = scmp.lt.s32.totalorder %s9, 9
    // Predicated region
    $region17: #{_lambda_.9} parent=5 // pred_check
      %p122 = pneg %p121
    $region18: #{_lambda_.9} parent=5 // pred_check_branch
      %124 = sbr.rel (%p122) target = $region20
    $region19: #{_lambda_.9} parent=5 // pred_region
      // Predicated region
      $region21: #{_lambda_.9} parent=19 // pred_check
        %p125 = pneg %p29
      $region22: #{_lambda_.9} parent=19 // pred_check_branch
        %127 = sbr.rel (%p125) target = $region24
      $region23: #{_lambda_.9} parent=19 // pred_region
        %p128 = scmp.lt.s32.totalorder %s9, 8
        %s129 = scalar_select %p128, %s9, 8
        %s130 = smul.addr %s129, 64
        %s131 = smul.addr %s130, 8
        %s132 = scalar_lea.vmem %s0, %s131
      $region24: #{_lambda_.9} parent=19 // pred_fallthru
        _
      // Predicated region
      $region25: #{_lambda_.9} parent=19 // pred_check
        %p133 = pneg %p55
      $region26: #{_lambda_.9} parent=19 // pred_check_branch
        %135 = sbr.rel (%p133) target = $region28
      $region27: #{_lambda_.9} parent=19 // pred_region
        %p136 = scmp.lt.s32.totalorder %s9, 8
        %s137 = scalar_select %p136, %s9, 8
        %s138 = smul.addr %s137, 8
        %s139 = smul.addr %s138, 8
        %s140 = scalar_lea.vmem %s1, %s139
      $region28: #{_lambda_.9} parent=19 // pred_fallthru
        _
    $region20: #{_lambda_.9} parent=5 // pred_fallthru
      _
    %p141 = scmp.le.s32.totalorder 1, %s9
    %p142 = scmp.lt.s32.totalorder %s9, 10
    %p143 = pnand %p141, %p142
    %p144 = pneg %p143
    // Predicated region
    $region29: #{_lambda_.9} parent=5 // pred_check
      _
    $region30: #{_lambda_.9} parent=5 // pred_check_branch
      %146 = sbr.rel (%p143) target = $region32
    $region31: #{_lambda_.9} parent=5 // pred_region
      %s147 = ssub.s32 %s9, 1
      %p148 = scmp.lt.s32.totalorder %s14, 8
      %s149 = scalar_select %p148, %s14, 8
      %s150 = smul.addr %s149, 64
      %s151 = smul.addr %s150, 8
      %s152 = scalar_lea.vmem %s0, %s151
      %p153 = pneg %p35
      %p154 = pneg %p32
      %p155 = scmp.lt.s32.totalorder %s14, 8
      %s156 = scalar_select %p155, %s14, 8
      %s157 = smul.addr %s156, 8
      %s158 = smul.addr %s157, 8
      %s159 = scalar_lea.vmem %s1, %s158
      %p160 = pneg %p61
      %p161 = pneg %p58
      %p162 = pneg %p82
      %p163 = pneg %p79
      %p164 = pneg %p103
      %p165 = pneg %p100
      %p166 = scmp.lt.s32.totalorder %s14, 8
      %s167 = scalar_select %p166, %s14, 8
      %s168 = smul.addr %s167, 64
      %s169 = smul.addr %s168, 8
      %s170 = scalar_lea.vmem %s0, %s169
      %p171 = scmp.lt.s32.totalorder %s14, 8
      %s172 = scalar_select %p171, %s14, 8
      %s173 = smul.addr %s172, 8
      %s174 = smul.addr %s173, 8
      %s175 = scalar_lea.vmem %s1, %s174
      %p176 = scmp.eq.s32.totalorder %s14, 0
      // Predicated region
      $region33: #{_lambda_.9} parent=31 // pred_check
        %p177 = pneg %p176
      $region34: #{_lambda_.9} parent=31 // pred_check_branch
        %179 = sbr.rel (%p177) target = $region36
      $region35: #{_lambda_.9} parent=31 // pred_region
        %vm180 = vcmask 523264
        %181 = vst.msk [vmem:[#allocation2] sm:$0xff] %vm180, 0.0
        %182 = vst.msk [vmem:[#allocation2 + $0x8] sm:$0xff] %vm180, 0.0
        %183 = vst.msk [vmem:[#allocation2 + $0x10] sm:$0xff] %vm180, 0.0
        %184 = vst.msk [vmem:[#allocation2 + $0x18] sm:$0xff] %vm180, 0.0
        %185 = vst.msk [vmem:[#allocation2 + $0x20] sm:$0xff] %vm180, 0.0
        %186 = vst.msk [vmem:[#allocation2 + $0x28] sm:$0xff] %vm180, 0.0
        %187 = vst.msk [vmem:[#allocation2 + $0x30] sm:$0xff] %vm180, 0.0
        %188 = vst.msk [vmem:[#allocation2 + $0x38] sm:$0xff] %vm180, 0.0
        %189 = vst.msk [vmem:[#allocation2 + $0x40] sm:$0xff] %vm180, 0.0
        %190 = vst.msk [vmem:[#allocation2 + $0x48] sm:$0xff] %vm180, 0.0
        %191 = vst.msk [vmem:[#allocation2 + $0x50] sm:$0xff] %vm180, 0.0
        %192 = vst.msk [vmem:[#allocation2 + $0x58] sm:$0xff] %vm180, 0.0
        %193 = vst.msk [vmem:[#allocation2 + $0x60] sm:$0xff] %vm180, 0.0
        %194 = vst.msk [vmem:[#allocation2 + $0x68] sm:$0xff] %vm180, 0.0
        %195 = vst.msk [vmem:[#allocation2 + $0x70] sm:$0xff] %vm180, 0.0
        %196 = vst.msk [vmem:[#allocation2 + $0x78] sm:$0xff] %vm180, 0.0
        %197 = vst.msk [vmem:[#allocation2 + $0x80] sm:$0xff] %vm180, 0.0
        %198 = vst.msk [vmem:[#allocation2 + $0x88] sm:$0xff] %vm180, 0.0
        %199 = vst.msk [vmem:[#allocation2 + $0x90] sm:$0xff] %vm180, 0.0
        %200 = vst.msk [vmem:[#allocation2 + $0x98] sm:$0xff] %vm180, 0.0
        %201 = vst.msk [vmem:[#allocation2 + $0xa0] sm:$0xff] %vm180, 0.0
        %202 = vst.msk [vmem:[#allocation2 + $0xa8] sm:$0xff] %vm180, 0.0
        %203 = vst.msk [vmem:[#allocation2 + $0xb0] sm:$0xff] %vm180, 0.0
        %204 = vst.msk [vmem:[#allocation2 + $0xb8] sm:$0xff] %vm180, 0.0
        %205 = vst.msk [vmem:[#allocation2 + $0xc0] sm:$0xff] %vm180, 0.0
        %206 = vst.msk [vmem:[#allocation2 + $0xc8] sm:$0xff] %vm180, 0.0
        %207 = vst.msk [vmem:[#allocation2 + $0xd0] sm:$0xff] %vm180, 0.0
        %208 = vst.msk [vmem:[#allocation2 + $0xd8] sm:$0xff] %vm180, 0.0
        %209 = vst.msk [vmem:[#allocation2 + $0xe0] sm:$0xff] %vm180, 0.0
        %210 = vst.msk [vmem:[#allocation2 + $0xe8] sm:$0xff] %vm180, 0.0
        %211 = vst.msk [vmem:[#allocation2 + $0xf0] sm:$0xff] %vm180, 0.0
        %212 = vst.msk [vmem:[#allocation2 + $0xf8] sm:$0xff] %vm180, 0.0
        %213 = vst.msk [vmem:[#allocation2 + $0x100] sm:$0xff] %vm180, 0.0
        %214 = vst.msk [vmem:[#allocation2 + $0x108] sm:$0xff] %vm180, 0.0
        %215 = vst.msk [vmem:[#allocation2 + $0x110] sm:$0xff] %vm180, 0.0
        %216 = vst.msk [vmem:[#allocation2 + $0x118] sm:$0xff] %vm180, 0.0
        %217 = vst.msk [vmem:[#allocation2 + $0x120] sm:$0xff] %vm180, 0.0
        %218 = vst.msk [vmem:[#allocation2 + $0x128] sm:$0xff] %vm180, 0.0
        %219 = vst.msk [vmem:[#allocation2 + $0x130] sm:$0xff] %vm180, 0.0
        %220 = vst.msk [vmem:[#allocation2 + $0x138] sm:$0xff] %vm180, 0.0
        %221 = vst.msk [vmem:[#allocation2 + $0x140] sm:$0xff] %vm180, 0.0
        %222 = vst.msk [vmem:[#allocation2 + $0x148] sm:$0xff] %vm180, 0.0
        %223 = vst.msk [vmem:[#allocation2 + $0x150] sm:$0xff] %vm180, 0.0
        %224 = vst.msk [vmem:[#allocation2 + $0x158] sm:$0xff] %vm180, 0.0
        %225 = vst.msk [vmem:[#allocation2 + $0x160] sm:$0xff] %vm180, 0.0
        %226 = vst.msk [vmem:[#allocation2 + $0x168] sm:$0xff] %vm180, 0.0
        %227 = vst.msk [vmem:[#allocation2 + $0x170] sm:$0xff] %vm180, 0.0
        %228 = vst.msk [vmem:[#allocation2 + $0x178] sm:$0xff] %vm180, 0.0
        %229 = vst.msk [vmem:[#allocation2 + $0x180] sm:$0xff] %vm180, 0.0
        %230 = vst.msk [vmem:[#allocation2 + $0x188] sm:$0xff] %vm180, 0.0
        %231 = vst.msk [vmem:[#allocation2 + $0x190] sm:$0xff] %vm180, 0.0
        %232 = vst.msk [vmem:[#allocation2 + $0x198] sm:$0xff] %vm180, 0.0
        %233 = vst.msk [vmem:[#allocation2 + $0x1a0] sm:$0xff] %vm180, 0.0
        %234 = vst.msk [vmem:[#allocation2 + $0x1a8] sm:$0xff] %vm180, 0.0
        %235 = vst.msk [vmem:[#allocation2 + $0x1b0] sm:$0xff] %vm180, 0.0
        %236 = vst.msk [vmem:[#allocation2 + $0x1b8] sm:$0xff] %vm180, 0.0
        %237 = vst.msk [vmem:[#allocation2 + $0x1c0] sm:$0xff] %vm180, 0.0
        %238 = vst.msk [vmem:[#allocation2 + $0x1c8] sm:$0xff] %vm180, 0.0
        %239 = vst.msk [vmem:[#allocation2 + $0x1d0] sm:$0xff] %vm180, 0.0
        %240 = vst.msk [vmem:[#allocation2 + $0x1d8] sm:$0xff] %vm180, 0.0
        %241 = vst.msk [vmem:[#allocation2 + $0x1e0] sm:$0xff] %vm180, 0.0
        %242 = vst.msk [vmem:[#allocation2 + $0x1e8] sm:$0xff] %vm180, 0.0
        %243 = vst.msk [vmem:[#allocation2 + $0x1f0] sm:$0xff] %vm180, 0.0
        %244 = vst.msk [vmem:[#allocation2 + $0x1f8] sm:$0xff] %vm180, 0.0
      $region36: #{_lambda_.9} parent=31 // pred_fallthru
        _
      %v245 = vld [vmem:[#allocation2] sm:$0xff]
      %v246 = vld [vmem:[#allocation2 + $0x8] sm:$0xff]
      %v247 = vld [vmem:[#allocation2 + $0x10] sm:$0xff]
      %v248 = vld [vmem:[#allocation2 + $0x18] sm:$0xff]
      %v249 = vld [vmem:[#allocation2 + $0x20] sm:$0xff]
      %v250 = vld [vmem:[#allocation2 + $0x28] sm:$0xff]
      %v251 = vld [vmem:[#allocation2 + $0x30] sm:$0xff]
      %v252 = vld [vmem:[#allocation2 + $0x38] sm:$0xff]
      %v253 = vld [vmem:[#allocation2 + $0x40] sm:$0xff]
      %v254 = vld [vmem:[#allocation2 + $0x48] sm:$0xff]
      %v255 = vld [vmem:[#allocation2 + $0x50] sm:$0xff]
      %v256 = vld [vmem:[#allocation2 + $0x58] sm:$0xff]
      %v257 = vld [vmem:[#allocation2 + $0x60] sm:$0xff]
      %v258 = vld [vmem:[#allocation2 + $0x68] sm:$0xff]
      %v259 = vld [vmem:[#allocation2 + $0x70] sm:$0xff]
      %v260 = vld [vmem:[#allocation2 + $0x78] sm:$0xff]
      %v261 = vld [vmem:[#allocation2 + $0x80] sm:$0xff]
      %v262 = vld [vmem:[#allocation2 + $0x88] sm:$0xff]
      %v263 = vld [vmem:[#allocation2 + $0x90] sm:$0xff]
      %v264 = vld [vmem:[#allocation2 + $0x98] sm:$0xff]
      %v265 = vld [vmem:[#allocation2 + $0xa0] sm:$0xff]
      %v266 = vld [vmem:[#allocation2 + $0xa8] sm:$0xff]
      %v267 = vld [vmem:[#allocation2 + $0xb0] sm:$0xff]
      %v268 = vld [vmem:[#allocation2 + $0xb8] sm:$0xff]
      %v269 = vld [vmem:[#allocation2 + $0xc0] sm:$0xff]
      %v270 = vld [vmem:[#allocation2 + $0xc8] sm:$0xff]
      %v271 = vld [vmem:[#allocation2 + $0xd0] sm:$0xff]
      %v272 = vld [vmem:[#allocation2 + $0xd8] sm:$0xff]
      %v273 = vld [vmem:[#allocation2 + $0xe0] sm:$0xff]
      %v274 = vld [vmem:[#allocation2 + $0xe8] sm:$0xff]
      %v275 = vld [vmem:[#allocation2 + $0xf0] sm:$0xff]
      %v276 = vld [vmem:[#allocation2 + $0xf8] sm:$0xff]
      %v277 = vld [vmem:[#allocation2 + $0x100] sm:$0xff]
      %v278 = vld [vmem:[#allocation2 + $0x108] sm:$0xff]
      %v279 = vld [vmem:[#allocation2 + $0x110] sm:$0xff]
      %v280 = vld [vmem:[#allocation2 + $0x118] sm:$0xff]
      %v281 = vld [vmem:[#allocation2 + $0x120] sm:$0xff]
      %v282 = vld [vmem:[#allocation2 + $0x128] sm:$0xff]
      %v283 = vld [vmem:[#allocation2 + $0x130] sm:$0xff]
      %v284 = vld [vmem:[#allocation2 + $0x138] sm:$0xff]
      %v285 = vld [vmem:[#allocation2 + $0x140] sm:$0xff]
      %v286 = vld [vmem:[#allocation2 + $0x148] sm:$0xff]
      %v287 = vld [vmem:[#allocation2 + $0x150] sm:$0xff]
      %v288 = vld [vmem:[#allocation2 + $0x158] sm:$0xff]
      %v289 = vld [vmem:[#allocation2 + $0x160] sm:$0xff]
      %v290 = vld [vmem:[#allocation2 + $0x168] sm:$0xff]
      %v291 = vld [vmem:[#allocation2 + $0x170] sm:$0xff]
      %v292 = vld [vmem:[#allocation2 + $0x178] sm:$0xff]
      %v293 = vld [vmem:[#allocation2 + $0x180] sm:$0xff]
      %v294 = vld [vmem:[#allocation2 + $0x188] sm:$0xff]
      %v295 = vld [vmem:[#allocation2 + $0x190] sm:$0xff]
      %v296 = vld [vmem:[#allocation2 + $0x198] sm:$0xff]
      %v297 = vld [vmem:[#allocation2 + $0x1a0] sm:$0xff]
      %v298 = vld [vmem:[#allocation2 + $0x1a8] sm:$0xff]
      %v299 = vld [vmem:[#allocation2 + $0x1b0] sm:$0xff]
      %v300 = vld [vmem:[#allocation2 + $0x1b8] sm:$0xff]
      %v301 = vld [vmem:[#allocation2 + $0x1c0] sm:$0xff]
      %v302 = vld [vmem:[#allocation2 + $0x1c8] sm:$0xff]
      %v303 = vld [vmem:[#allocation2 + $0x1d0] sm:$0xff]
      %v304 = vld [vmem:[#allocation2 + $0x1d8] sm:$0xff]
      %v305 = vld [vmem:[#allocation2 + $0x1e0] sm:$0xff]
      %v306 = vld [vmem:[#allocation2 + $0x1e8] sm:$0xff]
      %v307 = vld [vmem:[#allocation2 + $0x1f0] sm:$0xff]
      %v308 = vld [vmem:[#allocation2 + $0x1f8] sm:$0xff]
      %v309 = vld [vmem:[%s170] sm:$0xff]
      %v310 = vld [vmem:[%s170 + $0x8] sm:$0xff]
      %v311 = vld [vmem:[%s170 + $0x10] sm:$0xff]
      %v312 = vld [vmem:[%s170 + $0x18] sm:$0xff]
      %v313 = vld [vmem:[%s170 + $0x20] sm:$0xff]
      %v314 = vld [vmem:[%s170 + $0x28] sm:$0xff]
      %v315 = vld [vmem:[%s170 + $0x30] sm:$0xff]
      %v316 = vld [vmem:[%s170 + $0x38] sm:$0xff]
      %v317 = vld [vmem:[%s170 + $0x40] sm:$0xff]
      %v318 = vld [vmem:[%s170 + $0x48] sm:$0xff]
      %v319 = vld [vmem:[%s170 + $0x50] sm:$0xff]
      %v320 = vld [vmem:[%s170 + $0x58] sm:$0xff]
      %v321 = vld [vmem:[%s170 + $0x60] sm:$0xff]
      %v322 = vld [vmem:[%s170 + $0x68] sm:$0xff]
      %v323 = vld [vmem:[%s170 + $0x70] sm:$0xff]
      %v324 = vld [vmem:[%s170 + $0x78] sm:$0xff]
      %v325 = vld [vmem:[%s170 + $0x80] sm:$0xff]
      %v326 = vld [vmem:[%s170 + $0x88] sm:$0xff]
      %v327 = vld [vmem:[%s170 + $0x90] sm:$0xff]
      %v328 = vld [vmem:[%s170 + $0x98] sm:$0xff]
      %v329 = vld [vmem:[%s170 + $0xa0] sm:$0xff]
      %v330 = vld [vmem:[%s170 + $0xa8] sm:$0xff]
      %v331 = vld [vmem:[%s170 + $0xb0] sm:$0xff]
      %v332 = vld [vmem:[%s170 + $0xb8] sm:$0xff]
      %v333 = vld [vmem:[%s170 + $0xc0] sm:$0xff]
      %v334 = vld [vmem:[%s170 + $0xc8] sm:$0xff]
      %v335 = vld [vmem:[%s170 + $0xd0] sm:$0xff]
      %v336 = vld [vmem:[%s170 + $0xd8] sm:$0xff]
      %v337 = vld [vmem:[%s170 + $0xe0] sm:$0xff]
      %v338 = vld [vmem:[%s170 + $0xe8] sm:$0xff]
      %v339 = vld [vmem:[%s170 + $0xf0] sm:$0xff]
      %v340 = vld [vmem:[%s170 + $0xf8] sm:$0xff]
      %v341 = vld [vmem:[%s170 + $0x100] sm:$0xff]
      %v342 = vld [vmem:[%s170 + $0x108] sm:$0xff]
      %v343 = vld [vmem:[%s170 + $0x110] sm:$0xff]
      %v344 = vld [vmem:[%s170 + $0x118] sm:$0xff]
      %v345 = vld [vmem:[%s170 + $0x120] sm:$0xff]
      %v346 = vld [vmem:[%s170 + $0x128] sm:$0xff]
      %v347 = vld [vmem:[%s170 + $0x130] sm:$0xff]
      %v348 = vld [vmem:[%s170 + $0x138] sm:$0xff]
      %v349 = vld [vmem:[%s170 + $0x140] sm:$0xff]
      %v350 = vld [vmem:[%s170 + $0x148] sm:$0xff]
      %v351 = vld [vmem:[%s170 + $0x150] sm:$0xff]
      %v352 = vld [vmem:[%s170 + $0x158] sm:$0xff]
      %v353 = vld [vmem:[%s170 + $0x160] sm:$0xff]
      %v354 = vld [vmem:[%s170 + $0x168] sm:$0xff]
      %v355 = vld [vmem:[%s170 + $0x170] sm:$0xff]
      %v356 = vld [vmem:[%s170 + $0x178] sm:$0xff]
      %v357 = vld [vmem:[%s170 + $0x180] sm:$0xff]
      %v358 = vld [vmem:[%s170 + $0x188] sm:$0xff]
      %v359 = vld [vmem:[%s170 + $0x190] sm:$0xff]
      %v360 = vld [vmem:[%s170 + $0x198] sm:$0xff]
      %v361 = vld [vmem:[%s170 + $0x1a0] sm:$0xff]
      %v362 = vld [vmem:[%s170 + $0x1a8] sm:$0xff]
      %v363 = vld [vmem:[%s170 + $0x1b0] sm:$0xff]
      %v364 = vld [vmem:[%s170 + $0x1b8] sm:$0xff]
      %v365 = vld [vmem:[%s170 + $0x1c0] sm:$0xff]
      %v366 = vld [vmem:[%s170 + $0x1c8] sm:$0xff]
      %v367 = vld [vmem:[%s170 + $0x1d0] sm:$0xff]
      %v368 = vld [vmem:[%s170 + $0x1d8] sm:$0xff]
      %v369 = vld [vmem:[%s170 + $0x1e0] sm:$0xff]
      %v370 = vld [vmem:[%s170 + $0x1e8] sm:$0xff]
      %v371 = vld [vmem:[%s170 + $0x1f0] sm:$0xff]
      %v372 = vld [vmem:[%s170 + $0x1f8] sm:$0xff]
      %v373 = vld [vmem:[%s175] sm:$0xff]
      %v374 = vld [vmem:[%s175 + $0x8] sm:$0xff]
      %v375 = vld [vmem:[%s175 + $0x10] sm:$0xff]
      %v376 = vld [vmem:[%s175 + $0x18] sm:$0xff]
      %v377 = vld [vmem:[%s175 + $0x20] sm:$0xff]
      %v378 = vld [vmem:[%s175 + $0x28] sm:$0xff]
      %v379 = vld [vmem:[%s175 + $0x30] sm:$0xff]
      %v380 = vld [vmem:[%s175 + $0x38] sm:$0xff]
      %vm381 = vcmask 523264
      %v383 = vsel %vm381, %v309, 0
      %v386 = vsel %vm381, %v310, 0
      %v389 = vsel %vm381, %v311, 0
      %v392 = vsel %vm381, %v312, 0
      %v395 = vsel %vm381, %v313, 0
      %v398 = vsel %vm381, %v314, 0
      %v401 = vsel %vm381, %v315, 0
      %v404 = vsel %vm381, %v316, 0
      %v407 = vsel %vm381, %v317, 0
      %v410 = vsel %vm381, %v318, 0
      %v413 = vsel %vm381, %v319, 0
      %v416 = vsel %vm381, %v320, 0
      %v419 = vsel %vm381, %v321, 0
      %v422 = vsel %vm381, %v322, 0
      %v425 = vsel %vm381, %v323, 0
      %v428 = vsel %vm381, %v324, 0
      %v431 = vsel %vm381, %v325, 0
      %v434 = vsel %vm381, %v326, 0
      %v437 = vsel %vm381, %v327, 0
      %v440 = vsel %vm381, %v328, 0
      %v443 = vsel %vm381, %v329, 0
      %v446 = vsel %vm381, %v330, 0
      %v449 = vsel %vm381, %v331, 0
      %v452 = vsel %vm381, %v332, 0
      %v455 = vsel %vm381, %v333, 0
      %v458 = vsel %vm381, %v334, 0
      %v461 = vsel %vm381, %v335, 0
      %v464 = vsel %vm381, %v336, 0
      %v467 = vsel %vm381, %v337, 0
      %v470 = vsel %vm381, %v338, 0
      %v473 = vsel %vm381, %v339, 0
      %v476 = vsel %vm381, %v340, 0
      %v479 = vsel %vm381, %v341, 0
      %v482 = vsel %vm381, %v342, 0
      %v485 = vsel %vm381, %v343, 0
      %v488 = vsel %vm381, %v344, 0
      %v491 = vsel %vm381, %v345, 0
      %v494 = vsel %vm381, %v346, 0
      %v497 = vsel %vm381, %v347, 0
      %v500 = vsel %vm381, %v348, 0
      %v503 = vsel %vm381, %v349, 0
      %v506 = vsel %vm381, %v350, 0
      %v509 = vsel %vm381, %v351, 0
      %v512 = vsel %vm381, %v352, 0
      %v515 = vsel %vm381, %v353, 0
      %v518 = vsel %vm381, %v354, 0
      %v521 = vsel %vm381, %v355, 0
      %v524 = vsel %vm381, %v356, 0
      %v527 = vsel %vm381, %v357, 0
      %v530 = vsel %vm381, %v358, 0
      %v533 = vsel %vm381, %v359, 0
      %v536 = vsel %vm381, %v360, 0
      %v539 = vsel %vm381, %v361, 0
      %v542 = vsel %vm381, %v362, 0
      %v545 = vsel %vm381, %v363, 0
      %v548 = vsel %vm381, %v364, 0
      %v551 = vsel %vm381, %v365, 0
      %v554 = vsel %vm381, %v366, 0
      %v557 = vsel %vm381, %v367, 0
      %v560 = vsel %vm381, %v368, 0
      %v563 = vsel %vm381, %v369, 0
      %v566 = vsel %vm381, %v370, 0
      %v569 = vsel %vm381, %v371, 0
      %v572 = vsel %vm381, %v372, 0
      %574 = vmatpush.msra.mxu0 0.0
      %575 = vmatpush.msra.mxu0 0.0
      %576 = vmatpush.msra.mxu0 0.0
      %577 = vmatpush.msra.mxu0 0.0
      %578 = vmatpush.msra.mxu0 0.0
      %579 = vmatpush.msra.mxu0 0.0
      %580 = vmatpush.msra.mxu0 0.0
      %581 = vmatpush.msra.mxu0 0.0
      %582 = vmatpush.msra.mxu0 %v380
      %583 = vmatpush.msra.mxu0 %v379
      %584 = vmatpush.msra.mxu0 %v378
      %585 = vmatpush.msra.mxu0 %v377
      %586 = vmatpush.msra.mxu0 %v376
      %587 = vmatpush.msra.mxu0 %v375
      %588 = vmatpush.msra.mxu0 %v374
      %589 = vmatpush.msra.mxu0 %v373
      %590 = vmatmul.f32.gmra.mxu0 %v383
      %v591 = vpop.f32.mrf.mxu0
      %v592 = vadd.f32 0.0, %v591
      %593 = vmatmul.f32.gmra.mxu0 %v386
      %v594 = vpop.f32.mrf.mxu0
      %v595 = vadd.f32 0.0, %v594
      %596 = vmatmul.f32.gmra.mxu0 %v389
      %v597 = vpop.f32.mrf.mxu0
      %v598 = vadd.f32 0.0, %v597
      %599 = vmatmul.f32.gmra.mxu0 %v392
      %v600 = vpop.f32.mrf.mxu0
      %v601 = vadd.f32 0.0, %v600
      %602 = vmatmul.f32.gmra.mxu0 %v395
      %v603 = vpop.f32.mrf.mxu0
      %v604 = vadd.f32 0.0, %v603
      %605 = vmatmul.f32.gmra.mxu0 %v398
      %v606 = vpop.f32.mrf.mxu0
      %v607 = vadd.f32 0.0, %v606
      %608 = vmatmul.f32.gmra.mxu0 %v401
      %v609 = vpop.f32.mrf.mxu0
      %v610 = vadd.f32 0.0, %v609
      %611 = vmatmul.f32.gmra.mxu0 %v404
      %v612 = vpop.f32.mrf.mxu0
      %v613 = vadd.f32 0.0, %v612
      %614 = vmatmul.f32.gmra.mxu0 %v407
      %v615 = vpop.f32.mrf.mxu0
      %v616 = vadd.f32 0.0, %v615
      %617 = vmatmul.f32.gmra.mxu0 %v410
      %v618 = vpop.f32.mrf.mxu0
      %v619 = vadd.f32 0.0, %v618
      %620 = vmatmul.f32.gmra.mxu0 %v413
      %v621 = vpop.f32.mrf.mxu0
      %v622 = vadd.f32 0.0, %v621
      %623 = vmatmul.f32.gmra.mxu0 %v416
      %v624 = vpop.f32.mrf.mxu0
      %v625 = vadd.f32 0.0, %v624
      %626 = vmatmul.f32.gmra.mxu0 %v419
      %v627 = vpop.f32.mrf.mxu0
      %v628 = vadd.f32 0.0, %v627
      %629 = vmatmul.f32.gmra.mxu0 %v422
      %v630 = vpop.f32.mrf.mxu0
      %v631 = vadd.f32 0.0, %v630
      %632 = vmatmul.f32.gmra.mxu0 %v425
      %v633 = vpop.f32.mrf.mxu0
      %v634 = vadd.f32 0.0, %v633
      %635 = vmatmul.f32.gmra.mxu0 %v428
      %v636 = vpop.f32.mrf.mxu0
      %v637 = vadd.f32 0.0, %v636
      %638 = vmatmul.f32.gmra.mxu0 %v431
      %v639 = vpop.f32.mrf.mxu0
      %v640 = vadd.f32 0.0, %v639
      %641 = vmatmul.f32.gmra.mxu0 %v434
      %v642 = vpop.f32.mrf.mxu0
      %v643 = vadd.f32 0.0, %v642
      %644 = vmatmul.f32.gmra.mxu0 %v437
      %v645 = vpop.f32.mrf.mxu0
      %v646 = vadd.f32 0.0, %v645
      %647 = vmatmul.f32.gmra.mxu0 %v440
      %v648 = vpop.f32.mrf.mxu0
      %v649 = vadd.f32 0.0, %v648
      %650 = vmatmul.f32.gmra.mxu0 %v443
      %v651 = vpop.f32.mrf.mxu0
      %v652 = vadd.f32 0.0, %v651
      %653 = vmatmul.f32.gmra.mxu0 %v446
      %v654 = vpop.f32.mrf.mxu0
      %v655 = vadd.f32 0.0, %v654
      %656 = vmatmul.f32.gmra.mxu0 %v449
      %v657 = vpop.f32.mrf.mxu0
      %v658 = vadd.f32 0.0, %v657
      %659 = vmatmul.f32.gmra.mxu0 %v452
      %v660 = vpop.f32.mrf.mxu0
      %v661 = vadd.f32 0.0, %v660
      %662 = vmatmul.f32.gmra.mxu0 %v455
      %v663 = vpop.f32.mrf.mxu0
      %v664 = vadd.f32 0.0, %v663
      %665 = vmatmul.f32.gmra.mxu0 %v458
      %v666 = vpop.f32.mrf.mxu0
      %v667 = vadd.f32 0.0, %v666
      %668 = vmatmul.f32.gmra.mxu0 %v461
      %v669 = vpop.f32.mrf.mxu0
      %v670 = vadd.f32 0.0, %v669
      %671 = vmatmul.f32.gmra.mxu0 %v464
      %v672 = vpop.f32.mrf.mxu0
      %v673 = vadd.f32 0.0, %v672
      %674 = vmatmul.f32.gmra.mxu0 %v467
      %v675 = vpop.f32.mrf.mxu0
      %v676 = vadd.f32 0.0, %v675
      %677 = vmatmul.f32.gmra.mxu0 %v470
      %v678 = vpop.f32.mrf.mxu0
      %v679 = vadd.f32 0.0, %v678
      %680 = vmatmul.f32.gmra.mxu0 %v473
      %v681 = vpop.f32.mrf.mxu0
      %v682 = vadd.f32 0.0, %v681
      %683 = vmatmul.f32.gmra.mxu0 %v476
      %v684 = vpop.f32.mrf.mxu0
      %v685 = vadd.f32 0.0, %v684
      %686 = vmatmul.f32.gmra.mxu0 %v479
      %v687 = vpop.f32.mrf.mxu0
      %v688 = vadd.f32 0.0, %v687
      %689 = vmatmul.f32.gmra.mxu0 %v482
      %v690 = vpop.f32.mrf.mxu0
      %v691 = vadd.f32 0.0, %v690
      %692 = vmatmul.f32.gmra.mxu0 %v485
      %v693 = vpop.f32.mrf.mxu0
      %v694 = vadd.f32 0.0, %v693
      %695 = vmatmul.f32.gmra.mxu0 %v488
      %v696 = vpop.f32.mrf.mxu0
      %v697 = vadd.f32 0.0, %v696
      %698 = vmatmul.f32.gmra.mxu0 %v491
      %v699 = vpop.f32.mrf.mxu0
      %v700 = vadd.f32 0.0, %v699
      %701 = vmatmul.f32.gmra.mxu0 %v494
      %v702 = vpop.f32.mrf.mxu0
      %v703 = vadd.f32 0.0, %v702
      %704 = vmatmul.f32.gmra.mxu0 %v497
      %v705 = vpop.f32.mrf.mxu0
      %v706 = vadd.f32 0.0, %v705
      %707 = vmatmul.f32.gmra.mxu0 %v500
      %v708 = vpop.f32.mrf.mxu0
      %v709 = vadd.f32 0.0, %v708
      %710 = vmatmul.f32.gmra.mxu0 %v503
      %v711 = vpop.f32.mrf.mxu0
      %v712 = vadd.f32 0.0, %v711
      %713 = vmatmul.f32.gmra.mxu0 %v506
      %v714 = vpop.f32.mrf.mxu0
      %v715 = vadd.f32 0.0, %v714
      %716 = vmatmul.f32.gmra.mxu0 %v509
      %v717 = vpop.f32.mrf.mxu0
      %v718 = vadd.f32 0.0, %v717
      %719 = vmatmul.f32.gmra.mxu0 %v512
      %v720 = vpop.f32.mrf.mxu0
      %v721 = vadd.f32 0.0, %v720
      %722 = vmatmul.f32.gmra.mxu0 %v515
      %v723 = vpop.f32.mrf.mxu0
      %v724 = vadd.f32 0.0, %v723
      %725 = vmatmul.f32.gmra.mxu0 %v518
      %v726 = vpop.f32.mrf.mxu0
      %v727 = vadd.f32 0.0, %v726
      %728 = vmatmul.f32.gmra.mxu0 %v521
      %v729 = vpop.f32.mrf.mxu0
      %v730 = vadd.f32 0.0, %v729
      %731 = vmatmul.f32.gmra.mxu0 %v524
      %v732 = vpop.f32.mrf.mxu0
      %v733 = vadd.f32 0.0, %v732
      %734 = vmatmul.f32.gmra.mxu0 %v527
      %v735 = vpop.f32.mrf.mxu0
      %v736 = vadd.f32 0.0, %v735
      %737 = vmatmul.f32.gmra.mxu0 %v530
      %v738 = vpop.f32.mrf.mxu0
      %v739 = vadd.f32 0.0, %v738
      %740 = vmatmul.f32.gmra.mxu0 %v533
      %v741 = vpop.f32.mrf.mxu0
      %v742 = vadd.f32 0.0, %v741
      %743 = vmatmul.f32.gmra.mxu0 %v536
      %v744 = vpop.f32.mrf.mxu0
      %v745 = vadd.f32 0.0, %v744
      %746 = vmatmul.f32.gmra.mxu0 %v539
      %v747 = vpop.f32.mrf.mxu0
      %v748 = vadd.f32 0.0, %v747
      %749 = vmatmul.f32.gmra.mxu0 %v542
      %v750 = vpop.f32.mrf.mxu0
      %v751 = vadd.f32 0.0, %v750
      %752 = vmatmul.f32.gmra.mxu0 %v545
      %v753 = vpop.f32.mrf.mxu0
      %v754 = vadd.f32 0.0, %v753
      %755 = vmatmul.f32.gmra.mxu0 %v548
      %v756 = vpop.f32.mrf.mxu0
      %v757 = vadd.f32 0.0, %v756
      %758 = vmatmul.f32.gmra.mxu0 %v551
      %v759 = vpop.f32.mrf.mxu0
      %v760 = vadd.f32 0.0, %v759
      %761 = vmatmul.f32.gmra.mxu0 %v554
      %v762 = vpop.f32.mrf.mxu0
      %v763 = vadd.f32 0.0, %v762
      %764 = vmatmul.f32.gmra.mxu0 %v557
      %v765 = vpop.f32.mrf.mxu0
      %v766 = vadd.f32 0.0, %v765
      %767 = vmatmul.f32.gmra.mxu0 %v560
      %v768 = vpop.f32.mrf.mxu0
      %v769 = vadd.f32 0.0, %v768
      %770 = vmatmul.f32.gmra.mxu0 %v563
      %v771 = vpop.f32.mrf.mxu0
      %v772 = vadd.f32 0.0, %v771
      %773 = vmatmul.f32.gmra.mxu0 %v566
      %v774 = vpop.f32.mrf.mxu0
      %v775 = vadd.f32 0.0, %v774
      %776 = vmatmul.f32.gmra.mxu0 %v569
      %v777 = vpop.f32.mrf.mxu0
      %v778 = vadd.f32 0.0, %v777
      %779 = vmatmul.f32.gmra.mxu0 %v572
      %v780 = vpop.f32.mrf.mxu0
      %v781 = vadd.f32 0.0, %v780
      %782 = vdwg.mxu0
      %v783 = vadd.f32 %v245, %v592
      %v784 = vadd.f32 %v246, %v595
      %v785 = vadd.f32 %v247, %v598
      %v786 = vadd.f32 %v248, %v601
      %v787 = vadd.f32 %v249, %v604
      %v788 = vadd.f32 %v250, %v607
      %v789 = vadd.f32 %v251, %v610
      %v790 = vadd.f32 %v252, %v613
      %v791 = vadd.f32 %v253, %v616
      %v792 = vadd.f32 %v254, %v619
      %v793 = vadd.f32 %v255, %v622
      %v794 = vadd.f32 %v256, %v625
      %v795 = vadd.f32 %v257, %v628
      %v796 = vadd.f32 %v258, %v631
      %v797 = vadd.f32 %v259, %v634
      %v798 = vadd.f32 %v260, %v637
      %v799 = vadd.f32 %v261, %v640
      %v800 = vadd.f32 %v262, %v643
      %v801 = vadd.f32 %v263, %v646
      %v802 = vadd.f32 %v264, %v649
      %v803 = vadd.f32 %v265, %v652
      %v804 = vadd.f32 %v266, %v655
      %v805 = vadd.f32 %v267, %v658
      %v806 = vadd.f32 %v268, %v661
      %v807 = vadd.f32 %v269, %v664
      %v808 = vadd.f32 %v270, %v667
      %v809 = vadd.f32 %v271, %v670
      %v810 = vadd.f32 %v272, %v673
      %v811 = vadd.f32 %v273, %v676
      %v812 = vadd.f32 %v274, %v679
      %v813 = vadd.f32 %v275, %v682
      %v814 = vadd.f32 %v276, %v685
      %v815 = vadd.f32 %v277, %v688
      %v816 = vadd.f32 %v278, %v691
      %v817 = vadd.f32 %v279, %v694
      %v818 = vadd.f32 %v280, %v697
      %v819 = vadd.f32 %v281, %v700
      %v820 = vadd.f32 %v282, %v703
      %v821 = vadd.f32 %v283, %v706
      %v822 = vadd.f32 %v284, %v709
      %v823 = vadd.f32 %v285, %v712
      %v824 = vadd.f32 %v286, %v715
      %v825 = vadd.f32 %v287, %v718
      %v826 = vadd.f32 %v288, %v721
      %v827 = vadd.f32 %v289, %v724
      %v828 = vadd.f32 %v290, %v727
      %v829 = vadd.f32 %v291, %v730
      %v830 = vadd.f32 %v292, %v733
      %v831 = vadd.f32 %v293, %v736
      %v832 = vadd.f32 %v294, %v739
      %v833 = vadd.f32 %v295, %v742
      %v834 = vadd.f32 %v296, %v745
      %v835 = vadd.f32 %v297, %v748
      %v836 = vadd.f32 %v298, %v751
      %v837 = vadd.f32 %v299, %v754
      %v838 = vadd.f32 %v300, %v757
      %v839 = vadd.f32 %v301, %v760
      %v840 = vadd.f32 %v302, %v763
      %v841 = vadd.f32 %v303, %v766
      %v842 = vadd.f32 %v304, %v769
      %v843 = vadd.f32 %v305, %v772
      %v844 = vadd.f32 %v306, %v775
      %v845 = vadd.f32 %v307, %v778
      %v846 = vadd.f32 %v308, %v781
      %847 = vst.msk [vmem:[#allocation2] sm:$0xff] %vm381, %v783
      %848 = vst.msk [vmem:[#allocation2 + $0x8] sm:$0xff] %vm381, %v784
      %849 = vst.msk [vmem:[#allocation2 + $0x10] sm:$0xff] %vm381, %v785
      %850 = vst.msk [vmem:[#allocation2 + $0x18] sm:$0xff] %vm381, %v786
      %851 = vst.msk [vmem:[#allocation2 + $0x20] sm:$0xff] %vm381, %v787
      %852 = vst.msk [vmem:[#allocation2 + $0x28] sm:$0xff] %vm381, %v788
      %853 = vst.msk [vmem:[#allocation2 + $0x30] sm:$0xff] %vm381, %v789
      %854 = vst.msk [vmem:[#allocation2 + $0x38] sm:$0xff] %vm381, %v790
      %855 = vst.msk [vmem:[#allocation2 + $0x40] sm:$0xff] %vm381, %v791
      %856 = vst.msk [vmem:[#allocation2 + $0x48] sm:$0xff] %vm381, %v792
      %857 = vst.msk [vmem:[#allocation2 + $0x50] sm:$0xff] %vm381, %v793
      %858 = vst.msk [vmem:[#allocation2 + $0x58] sm:$0xff] %vm381, %v794
      %859 = vst.msk [vmem:[#allocation2 + $0x60] sm:$0xff] %vm381, %v795
      %860 = vst.msk [vmem:[#allocation2 + $0x68] sm:$0xff] %vm381, %v796
      %861 = vst.msk [vmem:[#allocation2 + $0x70] sm:$0xff] %vm381, %v797
      %862 = vst.msk [vmem:[#allocation2 + $0x78] sm:$0xff] %vm381, %v798
      %863 = vst.msk [vmem:[#allocation2 + $0x80] sm:$0xff] %vm381, %v799
      %864 = vst.msk [vmem:[#allocation2 + $0x88] sm:$0xff] %vm381, %v800
      %865 = vst.msk [vmem:[#allocation2 + $0x90] sm:$0xff] %vm381, %v801
      %866 = vst.msk [vmem:[#allocation2 + $0x98] sm:$0xff] %vm381, %v802
      %867 = vst.msk [vmem:[#allocation2 + $0xa0] sm:$0xff] %vm381, %v803
      %868 = vst.msk [vmem:[#allocation2 + $0xa8] sm:$0xff] %vm381, %v804
      %869 = vst.msk [vmem:[#allocation2 + $0xb0] sm:$0xff] %vm381, %v805
      %870 = vst.msk [vmem:[#allocation2 + $0xb8] sm:$0xff] %vm381, %v806
      %871 = vst.msk [vmem:[#allocation2 + $0xc0] sm:$0xff] %vm381, %v807
      %872 = vst.msk [vmem:[#allocation2 + $0xc8] sm:$0xff] %vm381, %v808
      %873 = vst.msk [vmem:[#allocation2 + $0xd0] sm:$0xff] %vm381, %v809
      %874 = vst.msk [vmem:[#allocation2 + $0xd8] sm:$0xff] %vm381, %v810
      %875 = vst.msk [vmem:[#allocation2 + $0xe0] sm:$0xff] %vm381, %v811
      %876 = vst.msk [vmem:[#allocation2 + $0xe8] sm:$0xff] %vm381, %v812
      %877 = vst.msk [vmem:[#allocation2 + $0xf0] sm:$0xff] %vm381, %v813
      %878 = vst.msk [vmem:[#allocation2 + $0xf8] sm:$0xff] %vm381, %v814
      %879 = vst.msk [vmem:[#allocation2 + $0x100] sm:$0xff] %vm381, %v815
      %880 = vst.msk [vmem:[#allocation2 + $0x108] sm:$0xff] %vm381, %v816
      %881 = vst.msk [vmem:[#allocation2 + $0x110] sm:$0xff] %vm381, %v817
      %882 = vst.msk [vmem:[#allocation2 + $0x118] sm:$0xff] %vm381, %v818
      %883 = vst.msk [vmem:[#allocation2 + $0x120] sm:$0xff] %vm381, %v819
      %884 = vst.msk [vmem:[#allocation2 + $0x128] sm:$0xff] %vm381, %v820
      %885 = vst.msk [vmem:[#allocation2 + $0x130] sm:$0xff] %vm381, %v821
      %886 = vst.msk [vmem:[#allocation2 + $0x138] sm:$0xff] %vm381, %v822
      %887 = vst.msk [vmem:[#allocation2 + $0x140] sm:$0xff] %vm381, %v823
      %888 = vst.msk [vmem:[#allocation2 + $0x148] sm:$0xff] %vm381, %v824
      %889 = vst.msk [vmem:[#allocation2 + $0x150] sm:$0xff] %vm381, %v825
      %890 = vst.msk [vmem:[#allocation2 + $0x158] sm:$0xff] %vm381, %v826
      %891 = vst.msk [vmem:[#allocation2 + $0x160] sm:$0xff] %vm381, %v827
      %892 = vst.msk [vmem:[#allocation2 + $0x168] sm:$0xff] %vm381, %v828
      %893 = vst.msk [vmem:[#allocation2 + $0x170] sm:$0xff] %vm381, %v829
      %894 = vst.msk [vmem:[#allocation2 + $0x178] sm:$0xff] %vm381, %v830
      %895 = vst.msk [vmem:[#allocation2 + $0x180] sm:$0xff] %vm381, %v831
      %896 = vst.msk [vmem:[#allocation2 + $0x188] sm:$0xff] %vm381, %v832
      %897 = vst.msk [vmem:[#allocation2 + $0x190] sm:$0xff] %vm381, %v833
      %898 = vst.msk [vmem:[#allocation2 + $0x198] sm:$0xff] %vm381, %v834
      %899 = vst.msk [vmem:[#allocation2 + $0x1a0] sm:$0xff] %vm381, %v835
      %900 = vst.msk [vmem:[#allocation2 + $0x1a8] sm:$0xff] %vm381, %v836
      %901 = vst.msk [vmem:[#allocation2 + $0x1b0] sm:$0xff] %vm381, %v837
      %902 = vst.msk [vmem:[#allocation2 + $0x1b8] sm:$0xff] %vm381, %v838
      %903 = vst.msk [vmem:[#allocation2 + $0x1c0] sm:$0xff] %vm381, %v839
      %904 = vst.msk [vmem:[#allocation2 + $0x1c8] sm:$0xff] %vm381, %v840
      %905 = vst.msk [vmem:[#allocation2 + $0x1d0] sm:$0xff] %vm381, %v841
      %906 = vst.msk [vmem:[#allocation2 + $0x1d8] sm:$0xff] %vm381, %v842
      %907 = vst.msk [vmem:[#allocation2 + $0x1e0] sm:$0xff] %vm381, %v843
      %908 = vst.msk [vmem:[#allocation2 + $0x1e8] sm:$0xff] %vm381, %v844
      %909 = vst.msk [vmem:[#allocation2 + $0x1f0] sm:$0xff] %vm381, %v845
      %910 = vst.msk [vmem:[#allocation2 + $0x1f8] sm:$0xff] %vm381, %v846
      %p911 = scmp.eq.s32.totalorder %s14, 8
      // Predicated region
      $region37: #{_lambda_.9} parent=31 // pred_check
        %p912 = pneg %p911
      $region38: #{_lambda_.9} parent=31 // pred_check_branch
        %914 = sbr.rel (%p912) target = $region40
      $region39: #{_lambda_.9} parent=31 // pred_region
        %v915 = vld [vmem:[#allocation2] sm:$0xff]
        %v916 = vld [vmem:[#allocation2 + $0x8] sm:$0xff]
        %v917 = vld [vmem:[#allocation2 + $0x10] sm:$0xff]
        %v918 = vld [vmem:[#allocation2 + $0x18] sm:$0xff]
        %v919 = vld [vmem:[#allocation2 + $0x20] sm:$0xff]
        %v920 = vld [vmem:[#allocation2 + $0x28] sm:$0xff]
        %v921 = vld [vmem:[#allocation2 + $0x30] sm:$0xff]
        %v922 = vld [vmem:[#allocation2 + $0x38] sm:$0xff]
        %v923 = vld [vmem:[#allocation2 + $0x40] sm:$0xff]
        %v924 = vld [vmem:[#allocation2 + $0x48] sm:$0xff]
        %v925 = vld [vmem:[#allocation2 + $0x50] sm:$0xff]
        %v926 = vld [vmem:[#allocation2 + $0x58] sm:$0xff]
        %v927 = vld [vmem:[#allocation2 + $0x60] sm:$0xff]
        %v928 = vld [vmem:[#allocation2 + $0x68] sm:$0xff]
        %v929 = vld [vmem:[#allocation2 + $0x70] sm:$0xff]
        %v930 = vld [vmem:[#allocation2 + $0x78] sm:$0xff]
        %v931 = vld [vmem:[#allocation2 + $0x80] sm:$0xff]
        %v932 = vld [vmem:[#allocation2 + $0x88] sm:$0xff]
        %v933 = vld [vmem:[#allocation2 + $0x90] sm:$0xff]
        %v934 = vld [vmem:[#allocation2 + $0x98] sm:$0xff]
        %v935 = vld [vmem:[#allocation2 + $0xa0] sm:$0xff]
        %v936 = vld [vmem:[#allocation2 + $0xa8] sm:$0xff]
        %v937 = vld [vmem:[#allocation2 + $0xb0] sm:$0xff]
        %v938 = vld [vmem:[#allocation2 + $0xb8] sm:$0xff]
        %v939 = vld [vmem:[#allocation2 + $0xc0] sm:$0xff]
        %v940 = vld [vmem:[#allocation2 + $0xc8] sm:$0xff]
        %v941 = vld [vmem:[#allocation2 + $0xd0] sm:$0xff]
        %v942 = vld [vmem:[#allocation2 + $0xd8] sm:$0xff]
        %v943 = vld [vmem:[#allocation2 + $0xe0] sm:$0xff]
        %v944 = vld [vmem:[#allocation2 + $0xe8] sm:$0xff]
        %v945 = vld [vmem:[#allocation2 + $0xf0] sm:$0xff]
        %v946 = vld [vmem:[#allocation2 + $0xf8] sm:$0xff]
        %v947 = vld [vmem:[#allocation2 + $0x100] sm:$0xff]
        %v948 = vld [vmem:[#allocation2 + $0x108] sm:$0xff]
        %v949 = vld [vmem:[#allocation2 + $0x110] sm:$0xff]
        %v950 = vld [vmem:[#allocation2 + $0x118] sm:$0xff]
        %v951 = vld [vmem:[#allocation2 + $0x120] sm:$0xff]
        %v952 = vld [vmem:[#allocation2 + $0x128] sm:$0xff]
        %v953 = vld [vmem:[#allocation2 + $0x130] sm:$0xff]
        %v954 = vld [vmem:[#allocation2 + $0x138] sm:$0xff]
        %v955 = vld [vmem:[#allocation2 + $0x140] sm:$0xff]
        %v956 = vld [vmem:[#allocation2 + $0x148] sm:$0xff]
        %v957 = vld [vmem:[#allocation2 + $0x150] sm:$0xff]
        %v958 = vld [vmem:[#allocation2 + $0x158] sm:$0xff]
        %v959 = vld [vmem:[#allocation2 + $0x160] sm:$0xff]
        %v960 = vld [vmem:[#allocation2 + $0x168] sm:$0xff]
        %v961 = vld [vmem:[#allocation2 + $0x170] sm:$0xff]
        %v962 = vld [vmem:[#allocation2 + $0x178] sm:$0xff]
        %v963 = vld [vmem:[#allocation2 + $0x180] sm:$0xff]
        %v964 = vld [vmem:[#allocation2 + $0x188] sm:$0xff]
        %v965 = vld [vmem:[#allocation2 + $0x190] sm:$0xff]
        %v966 = vld [vmem:[#allocation2 + $0x198] sm:$0xff]
        %v967 = vld [vmem:[#allocation2 + $0x1a0] sm:$0xff]
        %v968 = vld [vmem:[#allocation2 + $0x1a8] sm:$0xff]
        %v969 = vld [vmem:[#allocation2 + $0x1b0] sm:$0xff]
        %v970 = vld [vmem:[#allocation2 + $0x1b8] sm:$0xff]
        %v971 = vld [vmem:[#allocation2 + $0x1c0] sm:$0xff]
        %v972 = vld [vmem:[#allocation2 + $0x1c8] sm:$0xff]
        %v973 = vld [vmem:[#allocation2 + $0x1d0] sm:$0xff]
        %v974 = vld [vmem:[#allocation2 + $0x1d8] sm:$0xff]
        %v975 = vld [vmem:[#allocation2 + $0x1e0] sm:$0xff]
        %v976 = vld [vmem:[#allocation2 + $0x1e8] sm:$0xff]
        %v977 = vld [vmem:[#allocation2 + $0x1f0] sm:$0xff]
        %v978 = vld [vmem:[#allocation2 + $0x1f8] sm:$0xff]
        %v979 = vld [vmem:[%s2] sm:$0x1]
        %v981 = vperm.slane %v979, 0
        %v983 = vadd.f32 %v915, %v981
        %v984 = vadd.f32 %v916, %v981
        %v985 = vadd.f32 %v917, %v981
        %v986 = vadd.f32 %v918, %v981
        %v987 = vadd.f32 %v919, %v981
        %v988 = vadd.f32 %v920, %v981
        %v989 = vadd.f32 %v921, %v981
        %v990 = vadd.f32 %v922, %v981
        %v991 = vadd.f32 %v923, %v981
        %v992 = vadd.f32 %v924, %v981
        %v993 = vadd.f32 %v925, %v981
        %v994 = vadd.f32 %v926, %v981
        %v995 = vadd.f32 %v927, %v981
        %v996 = vadd.f32 %v928, %v981
        %v997 = vadd.f32 %v929, %v981
        %v998 = vadd.f32 %v930, %v981
        %v999 = vadd.f32 %v931, %v981
        %v1000 = vadd.f32 %v932, %v981
        %v1001 = vadd.f32 %v933, %v981
        %v1002 = vadd.f32 %v934, %v981
        %v1003 = vadd.f32 %v935, %v981
        %v1004 = vadd.f32 %v936, %v981
        %v1005 = vadd.f32 %v937, %v981
        %v1006 = vadd.f32 %v938, %v981
        %v1007 = vadd.f32 %v939, %v981
        %v1008 = vadd.f32 %v940, %v981
        %v1009 = vadd.f32 %v941, %v981
        %v1010 = vadd.f32 %v942, %v981
        %v1011 = vadd.f32 %v943, %v981
        %v1012 = vadd.f32 %v944, %v981
        %v1013 = vadd.f32 %v945, %v981
        %v1014 = vadd.f32 %v946, %v981
        %v1015 = vadd.f32 %v947, %v981
        %v1016 = vadd.f32 %v948, %v981
        %v1017 = vadd.f32 %v949, %v981
        %v1018 = vadd.f32 %v950, %v981
        %v1019 = vadd.f32 %v951, %v981
        %v1020 = vadd.f32 %v952, %v981
        %v1021 = vadd.f32 %v953, %v981
        %v1022 = vadd.f32 %v954, %v981
        %v1023 = vadd.f32 %v955, %v981
        %v1024 = vadd.f32 %v956, %v981
        %v1025 = vadd.f32 %v957, %v981
        %v1026 = vadd.f32 %v958, %v981
        %v1027 = vadd.f32 %v959, %v981
        %v1028 = vadd.f32 %v960, %v981
        %v1029 = vadd.f32 %v961, %v981
        %v1030 = vadd.f32 %v962, %v981
        %v1031 = vadd.f32 %v963, %v981
        %v1032 = vadd.f32 %v964, %v981
        %v1033 = vadd.f32 %v965, %v981
        %v1034 = vadd.f32 %v966, %v981
        %v1035 = vadd.f32 %v967, %v981
        %v1036 = vadd.f32 %v968, %v981
        %v1037 = vadd.f32 %v969, %v981
        %v1038 = vadd.f32 %v970, %v981
        %v1039 = vadd.f32 %v971, %v981
        %v1040 = vadd.f32 %v972, %v981
        %v1041 = vadd.f32 %v973, %v981
        %v1042 = vadd.f32 %v974, %v981
        %v1043 = vadd.f32 %v975, %v981
        %v1044 = vadd.f32 %v976, %v981
        %v1045 = vadd.f32 %v977, %v981
        %v1046 = vadd.f32 %v978, %v981
        %1047 = vst.msk [vmem:[%s3] sm:$0xff] %vm381, %v983
        %1048 = vst.msk [vmem:[%s3 + $0x8] sm:$0xff] %vm381, %v984
        %1049 = vst.msk [vmem:[%s3 + $0x10] sm:$0xff] %vm381, %v985
        %1050 = vst.msk [vmem:[%s3 + $0x18] sm:$0xff] %vm381, %v986
        %1051 = vst.msk [vmem:[%s3 + $0x20] sm:$0xff] %vm381, %v987
        %1052 = vst.msk [vmem:[%s3 + $0x28] sm:$0xff] %vm381, %v988
        %1053 = vst.msk [vmem:[%s3 + $0x30] sm:$0xff] %vm381, %v989
        %1054 = vst.msk [vmem:[%s3 + $0x38] sm:$0xff] %vm381, %v990
        %1055 = vst.msk [vmem:[%s3 + $0x40] sm:$0xff] %vm381, %v991
        %1056 = vst.msk [vmem:[%s3 + $0x48] sm:$0xff] %vm381, %v992
        %1057 = vst.msk [vmem:[%s3 + $0x50] sm:$0xff] %vm381, %v993
        %1058 = vst.msk [vmem:[%s3 + $0x58] sm:$0xff] %vm381, %v994
        %1059 = vst.msk [vmem:[%s3 + $0x60] sm:$0xff] %vm381, %v995
        %1060 = vst.msk [vmem:[%s3 + $0x68] sm:$0xff] %vm381, %v996
        %1061 = vst.msk [vmem:[%s3 + $0x70] sm:$0xff] %vm381, %v997
        %1062 = vst.msk [vmem:[%s3 + $0x78] sm:$0xff] %vm381, %v998
        %1063 = vst.msk [vmem:[%s3 + $0x80] sm:$0xff] %vm381, %v999
        %1064 = vst.msk [vmem:[%s3 + $0x88] sm:$0xff] %vm381, %v1000
        %1065 = vst.msk [vmem:[%s3 + $0x90] sm:$0xff] %vm381, %v1001
        %1066 = vst.msk [vmem:[%s3 + $0x98] sm:$0xff] %vm381, %v1002
        %1067 = vst.msk [vmem:[%s3 + $0xa0] sm:$0xff] %vm381, %v1003
        %1068 = vst.msk [vmem:[%s3 + $0xa8] sm:$0xff] %vm381, %v1004
        %1069 = vst.msk [vmem:[%s3 + $0xb0] sm:$0xff] %vm381, %v1005
        %1070 = vst.msk [vmem:[%s3 + $0xb8] sm:$0xff] %vm381, %v1006
        %1071 = vst.msk [vmem:[%s3 + $0xc0] sm:$0xff] %vm381, %v1007
        %1072 = vst.msk [vmem:[%s3 + $0xc8] sm:$0xff] %vm381, %v1008
        %1073 = vst.msk [vmem:[%s3 + $0xd0] sm:$0xff] %vm381, %v1009
        %1074 = vst.msk [vmem:[%s3 + $0xd8] sm:$0xff] %vm381, %v1010
        %1075 = vst.msk [vmem:[%s3 + $0xe0] sm:$0xff] %vm381, %v1011
        %1076 = vst.msk [vmem:[%s3 + $0xe8] sm:$0xff] %vm381, %v1012
        %1077 = vst.msk [vmem:[%s3 + $0xf0] sm:$0xff] %vm381, %v1013
        %1078 = vst.msk [vmem:[%s3 + $0xf8] sm:$0xff] %vm381, %v1014
        %1079 = vst.msk [vmem:[%s3 + $0x100] sm:$0xff] %vm381, %v1015
        %1080 = vst.msk [vmem:[%s3 + $0x108] sm:$0xff] %vm381, %v1016
        %1081 = vst.msk [vmem:[%s3 + $0x110] sm:$0xff] %vm381, %v1017
        %1082 = vst.msk [vmem:[%s3 + $0x118] sm:$0xff] %vm381, %v1018
        %1083 = vst.msk [vmem:[%s3 + $0x120] sm:$0xff] %vm381, %v1019
        %1084 = vst.msk [vmem:[%s3 + $0x128] sm:$0xff] %vm381, %v1020
        %1085 = vst.msk [vmem:[%s3 + $0x130] sm:$0xff] %vm381, %v1021
        %1086 = vst.msk [vmem:[%s3 + $0x138] sm:$0xff] %vm381, %v1022
        %1087 = vst.msk [vmem:[%s3 + $0x140] sm:$0xff] %vm381, %v1023
        %1088 = vst.msk [vmem:[%s3 + $0x148] sm:$0xff] %vm381, %v1024
        %1089 = vst.msk [vmem:[%s3 + $0x150] sm:$0xff] %vm381, %v1025
        %1090 = vst.msk [vmem:[%s3 + $0x158] sm:$0xff] %vm381, %v1026
        %1091 = vst.msk [vmem:[%s3 + $0x160] sm:$0xff] %vm381, %v1027
        %1092 = vst.msk [vmem:[%s3 + $0x168] sm:$0xff] %vm381, %v1028
        %1093 = vst.msk [vmem:[%s3 + $0x170] sm:$0xff] %vm381, %v1029
        %1094 = vst.msk [vmem:[%s3 + $0x178] sm:$0xff] %vm381, %v1030
        %1095 = vst.msk [vmem:[%s3 + $0x180] sm:$0xff] %vm381, %v1031
        %1096 = vst.msk [vmem:[%s3 + $0x188] sm:$0xff] %vm381, %v1032
        %1097 = vst.msk [vmem:[%s3 + $0x190] sm:$0xff] %vm381, %v1033
        %1098 = vst.msk [vmem:[%s3 + $0x198] sm:$0xff] %vm381, %v1034
        %1099 = vst.msk [vmem:[%s3 + $0x1a0] sm:$0xff] %vm381, %v1035
        %1100 = vst.msk [vmem:[%s3 + $0x1a8] sm:$0xff] %vm381, %v1036
        %1101 = vst.msk [vmem:[%s3 + $0x1b0] sm:$0xff] %vm381, %v1037
        %1102 = vst.msk [vmem:[%s3 + $0x1b8] sm:$0xff] %vm381, %v1038
        %1103 = vst.msk [vmem:[%s3 + $0x1c0] sm:$0xff] %vm381, %v1039
        %1104 = vst.msk [vmem:[%s3 + $0x1c8] sm:$0xff] %vm381, %v1040
        %1105 = vst.msk [vmem:[%s3 + $0x1d0] sm:$0xff] %vm381, %v1041
        %1106 = vst.msk [vmem:[%s3 + $0x1d8] sm:$0xff] %vm381, %v1042
        %1107 = vst.msk [vmem:[%s3 + $0x1e0] sm:$0xff] %vm381, %v1043
        %1108 = vst.msk [vmem:[%s3 + $0x1e8] sm:$0xff] %vm381, %v1044
        %1109 = vst.msk [vmem:[%s3 + $0x1f0] sm:$0xff] %vm381, %v1045
        %1110 = vst.msk [vmem:[%s3 + $0x1f8] sm:$0xff] %vm381, %v1046
      $region40: #{_lambda_.9} parent=31 // pred_fallthru
        _
      // Predicated region
      $region41: #{_lambda_.9} parent=31 // pred_check
        %p1111 = pneg %p100
      $region42: #{_lambda_.9} parent=31 // pred_check_branch
        %1113 = sbr.rel (%p1111) target = $region44
      $region43: #{_lambda_.9} parent=31 // pred_region
        _
      $region44: #{_lambda_.9} parent=31 // pred_fallthru
        _
      // Predicated region
      $region45: #{_lambda_.9} parent=31 // pred_check
        %p1114 = pneg %p100
      $region46: #{_lambda_.9} parent=31 // pred_check_branch
        %1116 = sbr.rel (%p1114) target = $region48
      $region47: #{_lambda_.9} parent=31 // pred_region
        _
      $region48: #{_lambda_.9} parent=31 // pred_fallthru
        _
    $region32: #{_lambda_.9} parent=5 // pred_fallthru
      _
    %p1117 = scmp.le.s32.totalorder 2, %s9
    // Predicated region
    $region49: #{_lambda_.9} parent=5 // pred_check
      %p1118 = pneg %p1117
    $region50: #{_lambda_.9} parent=5 // pred_check_branch
      %1120 = sbr.rel (%p1118) target = $region52
    $region51: #{_lambda_.9} parent=5 // pred_region
      %s1121 = ssub.s32 %s9, 2
    $region52: #{_lambda_.9} parent=5 // pred_fallthru
      _
  $region6: #{_lambda_.9} parent=0 // loop_footer
    %s13 = sadd.s32 1, %s9
  $region7: #{_lambda_.9} parent=0 // loop_footer_branch
    %8 = sbr.rel target = $region3
  $region8: #{_lambda_.9} parent=0 // loop_exit
    _

// kernel: _lambda_.11
$region0: #{_lambda_.11}
  #allocation0 [shape = 'u32[]', space=smem, size = 0x4, offset = 0x4, fixed_abs, tag = 'smem constant byte address 0x4 - core index']
  #allocation1 [shape = 'u32[72,128]{1,0:T(1,128)}', space=vmem, size = 0x9000, scoped, tag = 'internal scratch']
  #allocation2 [shape = 'f32[128,128]{1,0:T(8,128)}', space=vmem, size = 0x10000, scoped, tag = 'scratch operand']
  %s0 = inlined_call_operand.vmem [shape: f32[9,128,64], index: 0, kind: input, shape index: {}]
  %s1 = inlined_call_operand.vmem [shape: f32[9,64,128], index: 1, kind: input, shape index: {}]
  %s2 = inlined_call_operand.vmem [shape: f32[1,128], index: 2, kind: input, shape index: {}]
  %s3 = inlined_call_operand.vmem [shape: f32[128,128], index: 3, kind: output, shape index: {}]
  %s4 = sld [smem:[#allocation0]]
  $region53: #{_lambda_.11} parent=0
    _
  %s6 = ssub.s32 1, %s4
  %s7 = scalar_select 0, %s6, %s4
  loop: start=0, step=1, limit=11
  $region2: #{_lambda_.11} parent=0 // loop_pre_header
    _
  $region3: #{_lambda_.11} parent=0 // loop_header
    %s9 = sphi 0, %s13
    %p10 = scmp.ge.s32.totalorder %s9, 11
    %s19 = sphi 0, %s21
    %s22 = sphi 0, %s19
    %s23 = sphi 0, %s22
    %s39 = sphi 0, %s23
    %s45 = sphi 0, %s47
    %s48 = sphi 0, %s45
    %s49 = sphi 0, %s48
    %s65 = sphi 0, %s49
    %s69 = sphi 0, %s69
    %s71 = sphi 0, %s69
    %s72 = sphi 0, %s71
    %s86 = sphi 0, %s72
    %s90 = sphi 0, %s90
    %s92 = sphi 0, %s90
    %s93 = sphi 0, %s92
    %s107 = sphi 0, %s93
  $region4: #{_lambda_.11} parent=0 // loop_header_branch
    %12 = sbr.rel (%p10) target = $region8
  $region5: #{_lambda_.11} parent=0 // loop_body
    %s14 = ssub.s32 %s9, 1
    %s15 = ssub.s32 %s9, 2
    %s16 = sadd.s32 %s9, 1
    %s17 = ssub.s32 %s9, %s16
    %p18 = scmp.eq.s32.totalorder %s17, 0
    %s20 = sadd.s32 %s19, 1
    %s21 = scalar_select %p18, %s19, %s20
    %p24 = pneg %p18
    %p25 = scmp.eq.s32.totalorder %s9, 8
    %p26 = por %p24, %p25
    %p27 = scmp.ne.s32.totalorder %s19, %s22
    %p28 = scmp.eq.s32.totalorder %s9, 0
    %p29 = por %p27, %p28
    %p30 = scmp.ne.s32.totalorder %s19, %s22
    %p31 = scmp.eq.s32.totalorder %s14, 8
    %p32 = por %p30, %p31
    %p33 = scmp.ne.s32.totalorder %s22, %s23
    %p34 = scmp.eq.s32.totalorder %s14, 0
    %p35 = por %p33, %p34
    %p36 = scmp.ne.s32.totalorder %s22, %s23
    %p37 = scmp.eq.s32.totalorder %s15, 8
    %p38 = por %p36, %p37
    %p40 = scmp.ne.s32.totalorder %s23, %s39
    %p41 = scmp.eq.s32.totalorder %s15, 0
    %p42 = por %p40, %p41
    %s43 = ssub.s32 %s9, %s16
    %p44 = scmp.eq.s32.totalorder %s43, 0
    %s46 = sadd.s32 %s45, 1
    %s47 = scalar_select %p44, %s45, %s46
    %p50 = pneg %p44
    %p51 = scmp.eq.s32.totalorder %s9, 8
    %p52 = por %p50, %p51
    %p53 = scmp.ne.s32.totalorder %s45, %s48
    %p54 = scmp.eq.s32.totalorder %s9, 0
    %p55 = por %p53, %p54
    %p56 = scmp.ne.s32.totalorder %s45, %s48
    %p57 = scmp.eq.s32.totalorder %s14, 8
    %p58 = por %p56, %p57
    %p59 = scmp.ne.s32.totalorder %s48, %s49
    %p60 = scmp.eq.s32.totalorder %s14, 0
    %p61 = por %p59, %p60
    %p62 = scmp.ne.s32.totalorder %s48, %s49
    %p63 = scmp.eq.s32.totalorder %s15, 8
    %p64 = por %p62, %p63
    %p66 = scmp.ne.s32.totalorder %s49, %s65
    %p67 = scmp.eq.s32.totalorder %s15, 0
    %p68 = por %p66, %p67
    %s70 = sadd.s32 %s69, 1
    %p73 = scmp.eq.s32.totalorder %s9, 8
    %p74 = scmp.ne.s32.totalorder %s69, %s71
    %p75 = scmp.eq.s32.totalorder %s9, 0
    %p76 = por %p74, %p75
    %p77 = scmp.ne.s32.totalorder %s69, %s71
    %p78 = scmp.eq.s32.totalorder %s14, 8
    %p79 = por %p77, %p78
    %p80 = scmp.ne.s32.totalorder %s71, %s72
    %p81 = scmp.eq.s32.totalorder %s14, 0
    %p82 = por %p80, %p81
    %p83 = scmp.ne.s32.totalorder %s71, %s72
    %p84 = scmp.eq.s32.totalorder %s15, 8
    %p85 = por %p83, %p84
    %p87 = scmp.ne.s32.totalorder %s72, %s86
    %p88 = scmp.eq.s32.totalorder %s15, 0
    %p89 = por %p87, %p88
    %s91 = sadd.s32 %s90, 1
    %p94 = scmp.eq.s32.totalorder %s9, 8
    %p95 = scmp.ne.s32.totalorder %s90, %s92
    %p96 = scmp.eq.s32.totalorder %s9, 0
    %p97 = por %p95, %p96
    %p98 = scmp.ne.s32.totalorder %s90, %s92
    %p99 = scmp.eq.s32.totalorder %s14, 8
    %p100 = por %p98, %p99
    %p101 = scmp.ne.s32.totalorder %s92, %s93
    %p102 = scmp.eq.s32.totalorder %s14, 0
    %p103 = por %p101, %p102
    %p104 = scmp.ne.s32.totalorder %s92, %s93
    %p105 = scmp.eq.s32.totalorder %s15, 8
    %p106 = por %p104, %p105
    %p108 = scmp.ne.s32.totalorder %s93, %s107
    %p109 = scmp.eq.s32.totalorder %s15, 0
    %p110 = por %p108, %p109
    %p111 = scmp.le.s32.totalorder 1, %s9
    %p112 = scmp.lt.s32.totalorder %s9, 10
    %p113 = pnand %p111, %p112
    %p114 = pneg %p113
    // Predicated region
    $region9: #{_lambda_.11} parent=5 // pred_check
      _
    $region10: #{_lambda_.11} parent=5 // pred_check_branch
      %116 = sbr.rel (%p113) target = $region12
    $region11: #{_lambda_.11} parent=5 // pred_region
      %s117 = ssub.s32 %s9, 1
      // Predicated region
      $region13: #{_lambda_.11} parent=11 // pred_check
        %p118 = pneg %p82
      $region14: #{_lambda_.11} parent=11 // pred_check_branch
        %120 = sbr.rel (%p118) target = $region16
      $region15: #{_lambda_.11} parent=11 // pred_region
        _
      $region16: #{_lambda_.11} parent=11 // pred_fallthru
        _
    $region12: #{_lambda_.11} parent=5 // pred_fallthru
      _
    %p121 = scmp.lt.s32.totalorder %s9, 9
    // Predicated region
    $region17: #{_lambda_.11} parent=5 // pred_check
      %p122 = pneg %p121
    $region18: #{_lambda_.11} parent=5 // pred_check_branch
      %124 = sbr.rel (%p122) target = $region20
    $region19: #{_lambda_.11} parent=5 // pred_region
      // Predicated region
      $region21: #{_lambda_.11} parent=19 // pred_check
        %p125 = pneg %p29
      $region22: #{_lambda_.11} parent=19 // pred_check_branch
        %127 = sbr.rel (%p125) target = $region24
      $region23: #{_lambda_.11} parent=19 // pred_region
        %p128 = scmp.lt.s32.totalorder %s9, 8
        %s129 = scalar_select %p128, %s9, 8
        %s130 = smul.addr %s129, 16
        %s131 = smul.addr %s130, 8
        %s132 = scalar_lea.vmem %s0, %s131
      $region24: #{_lambda_.11} parent=19 // pred_fallthru
        _
      // Predicated region
      $region25: #{_lambda_.11} parent=19 // pred_check
        %p133 = pneg %p55
      $region26: #{_lambda_.11} parent=19 // pred_check_branch
        %135 = sbr.rel (%p133) target = $region28
      $region27: #{_lambda_.11} parent=19 // pred_region
        %p136 = scmp.lt.s32.totalorder %s9, 8
        %s137 = scalar_select %p136, %s9, 8
        %s138 = smul.addr %s137, 8
        %s139 = smul.addr %s138, 8
        %s140 = scalar_lea.vmem %s1, %s139
      $region28: #{_lambda_.11} parent=19 // pred_fallthru
        _
    $region20: #{_lambda_.11} parent=5 // pred_fallthru
      _
    %p141 = scmp.le.s32.totalorder 1, %s9
    %p142 = scmp.lt.s32.totalorder %s9, 10
    %p143 = pnand %p141, %p142
    %p144 = pneg %p143
    // Predicated region
    $region29: #{_lambda_.11} parent=5 // pred_check
      _
    $region30: #{_lambda_.11} parent=5 // pred_check_branch
      %146 = sbr.rel (%p143) target = $region32
    $region31: #{_lambda_.11} parent=5 // pred_region
      %s147 = ssub.s32 %s9, 1
      %p148 = scmp.lt.s32.totalorder %s14, 8
      %s149 = scalar_select %p148, %s14, 8
      %s150 = smul.addr %s149, 16
      %s151 = smul.addr %s150, 8
      %s152 = scalar_lea.vmem %s0, %s151
      %p153 = pneg %p35
      %p154 = pneg %p32
      %p155 = scmp.lt.s32.totalorder %s14, 8
      %s156 = scalar_select %p155, %s14, 8
      %s157 = smul.addr %s156, 8
      %s158 = smul.addr %s157, 8
      %s159 = scalar_lea.vmem %s1, %s158
      %p160 = pneg %p61
      %p161 = pneg %p58
      %p162 = pneg %p82
      %p163 = pneg %p79
      %p164 = pneg %p103
      %p165 = pneg %p100
      %p166 = scmp.lt.s32.totalorder %s14, 8
      %s167 = scalar_select %p166, %s14, 8
      %s168 = smul.addr %s167, 16
      %s169 = smul.addr %s168, 8
      %s170 = scalar_lea.vmem %s0, %s169
      %p171 = scmp.lt.s32.totalorder %s14, 8
      %s172 = scalar_select %p171, %s14, 8
      %s173 = smul.addr %s172, 8
      %s174 = smul.addr %s173, 8
      %s175 = scalar_lea.vmem %s1, %s174
      %p176 = scmp.eq.s32.totalorder %s14, 0
      // Predicated region
      $region33: #{_lambda_.11} parent=31 // pred_check
        %p177 = pneg %p176
      $region34: #{_lambda_.11} parent=31 // pred_check_branch
        %179 = sbr.rel (%p177) target = $region36
      $region35: #{_lambda_.11} parent=31 // pred_region
        %180 = vst [vmem:[#allocation2] sm:$0xff] 0.0
        %181 = vst [vmem:[#allocation2 + $0x8] sm:$0xff] 0.0
        %182 = vst [vmem:[#allocation2 + $0x10] sm:$0xff] 0.0
        %183 = vst [vmem:[#allocation2 + $0x18] sm:$0xff] 0.0
        %184 = vst [vmem:[#allocation2 + $0x20] sm:$0xff] 0.0
        %185 = vst [vmem:[#allocation2 + $0x28] sm:$0xff] 0.0
        %186 = vst [vmem:[#allocation2 + $0x30] sm:$0xff] 0.0
        %187 = vst [vmem:[#allocation2 + $0x38] sm:$0xff] 0.0
        %188 = vst [vmem:[#allocation2 + $0x40] sm:$0xff] 0.0
        %189 = vst [vmem:[#allocation2 + $0x48] sm:$0xff] 0.0
        %190 = vst [vmem:[#allocation2 + $0x50] sm:$0xff] 0.0
        %191 = vst [vmem:[#allocation2 + $0x58] sm:$0xff] 0.0
        %192 = vst [vmem:[#allocation2 + $0x60] sm:$0xff] 0.0
        %193 = vst [vmem:[#allocation2 + $0x68] sm:$0xff] 0.0
        %194 = vst [vmem:[#allocation2 + $0x70] sm:$0xff] 0.0
        %195 = vst [vmem:[#allocation2 + $0x78] sm:$0xff] 0.0
      $region36: #{_lambda_.11} parent=31 // pred_fallthru
        _
      %v196 = vld [vmem:[#allocation2] sm:$0xff]
      %v197 = vld [vmem:[#allocation2 + $0x8] sm:$0xff]
      %v198 = vld [vmem:[#allocation2 + $0x10] sm:$0xff]
      %v199 = vld [vmem:[#allocation2 + $0x18] sm:$0xff]
      %v200 = vld [vmem:[#allocation2 + $0x20] sm:$0xff]
      %v201 = vld [vmem:[#allocation2 + $0x28] sm:$0xff]
      %v202 = vld [vmem:[#allocation2 + $0x30] sm:$0xff]
      %v203 = vld [vmem:[#allocation2 + $0x38] sm:$0xff]
      %v204 = vld [vmem:[#allocation2 + $0x40] sm:$0xff]
      %v205 = vld [vmem:[#allocation2 + $0x48] sm:$0xff]
      %v206 = vld [vmem:[#allocation2 + $0x50] sm:$0xff]
      %v207 = vld [vmem:[#allocation2 + $0x58] sm:$0xff]
      %v208 = vld [vmem:[#allocation2 + $0x60] sm:$0xff]
      %v209 = vld [vmem:[#allocation2 + $0x68] sm:$0xff]
      %v210 = vld [vmem:[#allocation2 + $0x70] sm:$0xff]
      %v211 = vld [vmem:[#allocation2 + $0x78] sm:$0xff]
      %v212 = vld [vmem:[%s170] sm:$0xff]
      %v213 = vld [vmem:[%s170 + $0x8] sm:$0xff]
      %v214 = vld [vmem:[%s170 + $0x10] sm:$0xff]
      %v215 = vld [vmem:[%s170 + $0x18] sm:$0xff]
      %v216 = vld [vmem:[%s170 + $0x20] sm:$0xff]
      %v217 = vld [vmem:[%s170 + $0x28] sm:$0xff]
      %v218 = vld [vmem:[%s170 + $0x30] sm:$0xff]
      %v219 = vld [vmem:[%s170 + $0x38] sm:$0xff]
      %v220 = vld [vmem:[%s170 + $0x40] sm:$0xff]
      %v221 = vld [vmem:[%s170 + $0x48] sm:$0xff]
      %v222 = vld [vmem:[%s170 + $0x50] sm:$0xff]
      %v223 = vld [vmem:[%s170 + $0x58] sm:$0xff]
      %v224 = vld [vmem:[%s170 + $0x60] sm:$0xff]
      %v225 = vld [vmem:[%s170 + $0x68] sm:$0xff]
      %v226 = vld [vmem:[%s170 + $0x70] sm:$0xff]
      %v227 = vld [vmem:[%s170 + $0x78] sm:$0xff]
      %v228 = vld [vmem:[%s175] sm:$0xff]
      %v229 = vld [vmem:[%s175 + $0x8] sm:$0xff]
      %v230 = vld [vmem:[%s175 + $0x10] sm:$0xff]
      %v231 = vld [vmem:[%s175 + $0x18] sm:$0xff]
      %v232 = vld [vmem:[%s175 + $0x20] sm:$0xff]
      %v233 = vld [vmem:[%s175 + $0x28] sm:$0xff]
      %v234 = vld [vmem:[%s175 + $0x30] sm:$0xff]
      %v235 = vld [vmem:[%s175 + $0x38] sm:$0xff]
      %vm236 = vcmask 523264
      %v238 = vsel %vm236, %v212, 0
      %v241 = vsel %vm236, %v213, 0
      %v244 = vsel %vm236, %v214, 0
      %v247 = vsel %vm236, %v215, 0
      %v250 = vsel %vm236, %v216, 0
      %v253 = vsel %vm236, %v217, 0
      %v256 = vsel %vm236, %v218, 0
      %v259 = vsel %vm236, %v219, 0
      %v262 = vsel %vm236, %v220, 0
      %v265 = vsel %vm236, %v221, 0
      %v268 = vsel %vm236, %v222, 0
      %v271 = vsel %vm236, %v223, 0
      %v274 = vsel %vm236, %v224, 0
      %v277 = vsel %vm236, %v225, 0
      %v280 = vsel %vm236, %v226, 0
      %v283 = vsel %vm236, %v227, 0
      %285 = vmatpush.msra.mxu0 0.0
      %286 = vmatpush.msra.mxu0 0.0
      %287 = vmatpush.msra.mxu0 0.0
      %288 = vmatpush.msra.mxu0 0.0
      %289 = vmatpush.msra.mxu0 0.0
      %290 = vmatpush.msra.mxu0 0.0
      %291 = vmatpush.msra.mxu0 0.0
      %292 = vmatpush.msra.mxu0 0.0
      %293 = vmatpush.msra.mxu0 %v235
      %294 = vmatpush.msra.mxu0 %v234
      %295 = vmatpush.msra.mxu0 %v233
      %296 = vmatpush.msra.mxu0 %v232
      %297 = vmatpush.msra.mxu0 %v231
      %298 = vmatpush.msra.mxu0 %v230
      %299 = vmatpush.msra.mxu0 %v229
      %300 = vmatpush.msra.mxu0 %v228
      %301 = vmatmul.f32.gmra.mxu0 %v238
      %v302 = vpop.f32.mrf.mxu0
      %v303 = vadd.f32 0.0, %v302
      %304 = vmatmul.f32.gmra.mxu0 %v241
      %v305 = vpop.f32.mrf.mxu0
      %v306 = vadd.f32 0.0, %v305
      %307 = vmatmul.f32.gmra.mxu0 %v244
      %v308 = vpop.f32.mrf.mxu0
      %v309 = vadd.f32 0.0, %v308
      %310 = vmatmul.f32.gmra.mxu0 %v247
      %v311 = vpop.f32.mrf.mxu0
      %v312 = vadd.f32 0.0, %v311
      %313 = vmatmul.f32.gmra.mxu0 %v250
      %v314 = vpop.f32.mrf.mxu0
      %v315 = vadd.f32 0.0, %v314
      %316 = vmatmul.f32.gmra.mxu0 %v253
      %v317 = vpop.f32.mrf.mxu0
      %v318 = vadd.f32 0.0, %v317
      %319 = vmatmul.f32.gmra.mxu0 %v256
      %v320 = vpop.f32.mrf.mxu0
      %v321 = vadd.f32 0.0, %v320
      %322 = vmatmul.f32.gmra.mxu0 %v259
      %v323 = vpop.f32.mrf.mxu0
      %v324 = vadd.f32 0.0, %v323
      %325 = vmatmul.f32.gmra.mxu0 %v262
      %v326 = vpop.f32.mrf.mxu0
      %v327 = vadd.f32 0.0, %v326
      %328 = vmatmul.f32.gmra.mxu0 %v265
      %v329 = vpop.f32.mrf.mxu0
      %v330 = vadd.f32 0.0, %v329
      %331 = vmatmul.f32.gmra.mxu0 %v268
      %v332 = vpop.f32.mrf.mxu0
      %v333 = vadd.f32 0.0, %v332
      %334 = vmatmul.f32.gmra.mxu0 %v271
      %v335 = vpop.f32.mrf.mxu0
      %v336 = vadd.f32 0.0, %v335
      %337 = vmatmul.f32.gmra.mxu0 %v274
      %v338 = vpop.f32.mrf.mxu0
      %v339 = vadd.f32 0.0, %v338
      %340 = vmatmul.f32.gmra.mxu0 %v277
      %v341 = vpop.f32.mrf.mxu0
      %v342 = vadd.f32 0.0, %v341
      %343 = vmatmul.f32.gmra.mxu0 %v280
      %v344 = vpop.f32.mrf.mxu0
      %v345 = vadd.f32 0.0, %v344
      %346 = vmatmul.f32.gmra.mxu0 %v283
      %v347 = vpop.f32.mrf.mxu0
      %v348 = vadd.f32 0.0, %v347
      %349 = vdwg.mxu0
      %v350 = vadd.f32 %v196, %v303
      %v351 = vadd.f32 %v197, %v306
      %v352 = vadd.f32 %v198, %v309
      %v353 = vadd.f32 %v199, %v312
      %v354 = vadd.f32 %v200, %v315
      %v355 = vadd.f32 %v201, %v318
      %v356 = vadd.f32 %v202, %v321
      %v357 = vadd.f32 %v203, %v324
      %v358 = vadd.f32 %v204, %v327
      %v359 = vadd.f32 %v205, %v330
      %v360 = vadd.f32 %v206, %v333
      %v361 = vadd.f32 %v207, %v336
      %v362 = vadd.f32 %v208, %v339
      %v363 = vadd.f32 %v209, %v342
      %v364 = vadd.f32 %v210, %v345
      %v365 = vadd.f32 %v211, %v348
      %366 = vst [vmem:[#allocation2] sm:$0xff] %v350
      %367 = vst [vmem:[#allocation2 + $0x8] sm:$0xff] %v351
      %368 = vst [vmem:[#allocation2 + $0x10] sm:$0xff] %v352
      %369 = vst [vmem:[#allocation2 + $0x18] sm:$0xff] %v353
      %370 = vst [vmem:[#allocation2 + $0x20] sm:$0xff] %v354
      %371 = vst [vmem:[#allocation2 + $0x28] sm:$0xff] %v355
      %372 = vst [vmem:[#allocation2 + $0x30] sm:$0xff] %v356
      %373 = vst [vmem:[#allocation2 + $0x38] sm:$0xff] %v357
      %374 = vst [vmem:[#allocation2 + $0x40] sm:$0xff] %v358
      %375 = vst [vmem:[#allocation2 + $0x48] sm:$0xff] %v359
      %376 = vst [vmem:[#allocation2 + $0x50] sm:$0xff] %v360
      %377 = vst [vmem:[#allocation2 + $0x58] sm:$0xff] %v361
      %378 = vst [vmem:[#allocation2 + $0x60] sm:$0xff] %v362
      %379 = vst [vmem:[#allocation2 + $0x68] sm:$0xff] %v363
      %380 = vst [vmem:[#allocation2 + $0x70] sm:$0xff] %v364
      %381 = vst [vmem:[#allocation2 + $0x78] sm:$0xff] %v365
      %p382 = scmp.eq.s32.totalorder %s14, 8
      // Predicated region
      $region37: #{_lambda_.11} parent=31 // pred_check
        %p383 = pneg %p382
      $region38: #{_lambda_.11} parent=31 // pred_check_branch
        %385 = sbr.rel (%p383) target = $region40
      $region39: #{_lambda_.11} parent=31 // pred_region
        %v386 = vld [vmem:[#allocation2] sm:$0xff]
        %v387 = vld [vmem:[#allocation2 + $0x8] sm:$0xff]
        %v388 = vld [vmem:[#allocation2 + $0x10] sm:$0xff]
        %v389 = vld [vmem:[#allocation2 + $0x18] sm:$0xff]
        %v390 = vld [vmem:[#allocation2 + $0x20] sm:$0xff]
        %v391 = vld [vmem:[#allocation2 + $0x28] sm:$0xff]
        %v392 = vld [vmem:[#allocation2 + $0x30] sm:$0xff]
        %v393 = vld [vmem:[#allocation2 + $0x38] sm:$0xff]
        %v394 = vld [vmem:[#allocation2 + $0x40] sm:$0xff]
        %v395 = vld [vmem:[#allocation2 + $0x48] sm:$0xff]
        %v396 = vld [vmem:[#allocation2 + $0x50] sm:$0xff]
        %v397 = vld [vmem:[#allocation2 + $0x58] sm:$0xff]
        %v398 = vld [vmem:[#allocation2 + $0x60] sm:$0xff]
        %v399 = vld [vmem:[#allocation2 + $0x68] sm:$0xff]
        %v400 = vld [vmem:[#allocation2 + $0x70] sm:$0xff]
        %v401 = vld [vmem:[#allocation2 + $0x78] sm:$0xff]
        %v402 = vld [vmem:[%s2] sm:$0x1]
        %v404 = vperm.slane %v402, 0
        %v406 = vadd.f32 %v386, %v404
        %v407 = vadd.f32 %v387, %v404
        %v408 = vadd.f32 %v388, %v404
        %v409 = vadd.f32 %v389, %v404
        %v410 = vadd.f32 %v390, %v404
        %v411 = vadd.f32 %v391, %v404
        %v412 = vadd.f32 %v392, %v404
        %v413 = vadd.f32 %v393, %v404
        %v414 = vadd.f32 %v394, %v404
        %v415 = vadd.f32 %v395, %v404
        %v416 = vadd.f32 %v396, %v404
        %v417 = vadd.f32 %v397, %v404
        %v418 = vadd.f32 %v398, %v404
        %v419 = vadd.f32 %v399, %v404
        %v420 = vadd.f32 %v400, %v404
        %v421 = vadd.f32 %v401, %v404
        %v422 = vmax.f32 %v406, 0.0
        %v423 = vmax.f32 %v407, 0.0
        %v424 = vmax.f32 %v408, 0.0
        %v425 = vmax.f32 %v409, 0.0
        %v426 = vmax.f32 %v410, 0.0
        %v427 = vmax.f32 %v411, 0.0
        %v428 = vmax.f32 %v412, 0.0
        %v429 = vmax.f32 %v413, 0.0
        %v430 = vmax.f32 %v414, 0.0
        %v431 = vmax.f32 %v415, 0.0
        %v432 = vmax.f32 %v416, 0.0
        %v433 = vmax.f32 %v417, 0.0
        %v434 = vmax.f32 %v418, 0.0
        %v435 = vmax.f32 %v419, 0.0
        %v436 = vmax.f32 %v420, 0.0
        %v437 = vmax.f32 %v421, 0.0
        %438 = vst [vmem:[%s3] sm:$0xff] %v422
        %439 = vst [vmem:[%s3 + $0x8] sm:$0xff] %v423
        %440 = vst [vmem:[%s3 + $0x10] sm:$0xff] %v424
        %441 = vst [vmem:[%s3 + $0x18] sm:$0xff] %v425
        %442 = vst [vmem:[%s3 + $0x20] sm:$0xff] %v426
        %443 = vst [vmem:[%s3 + $0x28] sm:$0xff] %v427
        %444 = vst [vmem:[%s3 + $0x30] sm:$0xff] %v428
        %445 = vst [vmem:[%s3 + $0x38] sm:$0xff] %v429
        %446 = vst [vmem:[%s3 + $0x40] sm:$0xff] %v430
        %447 = vst [vmem:[%s3 + $0x48] sm:$0xff] %v431
        %448 = vst [vmem:[%s3 + $0x50] sm:$0xff] %v432
        %449 = vst [vmem:[%s3 + $0x58] sm:$0xff] %v433
        %450 = vst [vmem:[%s3 + $0x60] sm:$0xff] %v434
        %451 = vst [vmem:[%s3 + $0x68] sm:$0xff] %v435
        %452 = vst [vmem:[%s3 + $0x70] sm:$0xff] %v436
        %453 = vst [vmem:[%s3 + $0x78] sm:$0xff] %v437
      $region40: #{_lambda_.11} parent=31 // pred_fallthru
        _
      // Predicated region
      $region41: #{_lambda_.11} parent=31 // pred_check
        %p454 = pneg %p100
      $region42: #{_lambda_.11} parent=31 // pred_check_branch
        %456 = sbr.rel (%p454) target = $region44
      $region43: #{_lambda_.11} parent=31 // pred_region
        _
      $region44: #{_lambda_.11} parent=31 // pred_fallthru
        _
      // Predicated region
      $region45: #{_lambda_.11} parent=31 // pred_check
        %p457 = pneg %p100
      $region46: #{_lambda_.11} parent=31 // pred_check_branch
        %459 = sbr.rel (%p457) target = $region48
      $region47: #{_lambda_.11} parent=31 // pred_region
        _
      $region48: #{_lambda_.11} parent=31 // pred_fallthru
        _
    $region32: #{_lambda_.11} parent=5 // pred_fallthru
      _
    %p460 = scmp.le.s32.totalorder 2, %s9
    // Predicated region
    $region49: #{_lambda_.11} parent=5 // pred_check
      %p461 = pneg %p460
    $region50: #{_lambda_.11} parent=5 // pred_check_branch
      %463 = sbr.rel (%p461) target = $region52
    $region51: #{_lambda_.11} parent=5 // pred_region
      %s464 = ssub.s32 %s9, 2
    $region52: #{_lambda_.11} parent=5 // pred_fallthru
      _
  $region6: #{_lambda_.11} parent=0 // loop_footer
    %s13 = sadd.s32 1, %s9
  $region7: #{_lambda_.11} parent=0 // loop_footer_branch
    %8 = sbr.rel target = $region3
  $region8: #{_lambda_.11} parent=0 // loop_exit
    _

// kernel: _lambda_.12
$region0: #{_lambda_.12}
  #allocation0 [shape = 'u32[]', space=smem, size = 0x4, offset = 0x4, fixed_abs, tag = 'smem constant byte address 0x4 - core index']
  #allocation1 [shape = 'u32[72,128]{1,0:T(1,128)}', space=vmem, size = 0x9000, scoped, tag = 'internal scratch']
  #allocation2 [shape = 'f32[128,128]{1,0:T(8,128)}', space=vmem, size = 0x10000, scoped, tag = 'scratch operand']
  %s0 = inlined_call_operand.vmem [shape: f32[9,128,128], index: 0, kind: input, shape index: {}]
  %s1 = inlined_call_operand.vmem [shape: f32[9,128,128], index: 1, kind: input, shape index: {}]
  %s2 = inlined_call_operand.vmem [shape: f32[1,128], index: 2, kind: input, shape index: {}]
  %s3 = inlined_call_operand.vmem [shape: f32[128,128], index: 3, kind: output, shape index: {}]
  %s4 = sld [smem:[#allocation0]]
  $region53: #{_lambda_.12} parent=0
    _
  %s6 = ssub.s32 1, %s4
  %s7 = scalar_select 0, %s6, %s4
  loop: start=0, step=1, limit=11
  $region2: #{_lambda_.12} parent=0 // loop_pre_header
    _
  $region3: #{_lambda_.12} parent=0 // loop_header
    %s9 = sphi 0, %s13
    %p10 = scmp.ge.s32.totalorder %s9, 11
    %s19 = sphi 0, %s21
    %s22 = sphi 0, %s19
    %s23 = sphi 0, %s22
    %s39 = sphi 0, %s23
    %s45 = sphi 0, %s47
    %s48 = sphi 0, %s45
    %s49 = sphi 0, %s48
    %s65 = sphi 0, %s49
    %s69 = sphi 0, %s69
    %s71 = sphi 0, %s69
    %s72 = sphi 0, %s71
    %s86 = sphi 0, %s72
    %s90 = sphi 0, %s90
    %s92 = sphi 0, %s90
    %s93 = sphi 0, %s92
    %s107 = sphi 0, %s93
  $region4: #{_lambda_.12} parent=0 // loop_header_branch
    %12 = sbr.rel (%p10) target = $region8
  $region5: #{_lambda_.12} parent=0 // loop_body
    %s14 = ssub.s32 %s9, 1
    %s15 = ssub.s32 %s9, 2
    %s16 = sadd.s32 %s9, 1
    %s17 = ssub.s32 %s9, %s16
    %p18 = scmp.eq.s32.totalorder %s17, 0
    %s20 = sadd.s32 %s19, 1
    %s21 = scalar_select %p18, %s19, %s20
    %p24 = pneg %p18
    %p25 = scmp.eq.s32.totalorder %s9, 8
    %p26 = por %p24, %p25
    %p27 = scmp.ne.s32.totalorder %s19, %s22
    %p28 = scmp.eq.s32.totalorder %s9, 0
    %p29 = por %p27, %p28
    %p30 = scmp.ne.s32.totalorder %s19, %s22
    %p31 = scmp.eq.s32.totalorder %s14, 8
    %p32 = por %p30, %p31
    %p33 = scmp.ne.s32.totalorder %s22, %s23
    %p34 = scmp.eq.s32.totalorder %s14, 0
    %p35 = por %p33, %p34
    %p36 = scmp.ne.s32.totalorder %s22, %s23
    %p37 = scmp.eq.s32.totalorder %s15, 8
    %p38 = por %p36, %p37
    %p40 = scmp.ne.s32.totalorder %s23, %s39
    %p41 = scmp.eq.s32.totalorder %s15, 0
    %p42 = por %p40, %p41
    %s43 = ssub.s32 %s9, %s16
    %p44 = scmp.eq.s32.totalorder %s43, 0
    %s46 = sadd.s32 %s45, 1
    %s47 = scalar_select %p44, %s45, %s46
    %p50 = pneg %p44
    %p51 = scmp.eq.s32.totalorder %s9, 8
    %p52 = por %p50, %p51
    %p53 = scmp.ne.s32.totalorder %s45, %s48
    %p54 = scmp.eq.s32.totalorder %s9, 0
    %p55 = por %p53, %p54
    %p56 = scmp.ne.s32.totalorder %s45, %s48
    %p57 = scmp.eq.s32.totalorder %s14, 8
    %p58 = por %p56, %p57
    %p59 = scmp.ne.s32.totalorder %s48, %s49
    %p60 = scmp.eq.s32.totalorder %s14, 0
    %p61 = por %p59, %p60
    %p62 = scmp.ne.s32.totalorder %s48, %s49
    %p63 = scmp.eq.s32.totalorder %s15, 8
    %p64 = por %p62, %p63
    %p66 = scmp.ne.s32.totalorder %s49, %s65
    %p67 = scmp.eq.s32.totalorder %s15, 0
    %p68 = por %p66, %p67
    %s70 = sadd.s32 %s69, 1
    %p73 = scmp.eq.s32.totalorder %s9, 8
    %p74 = scmp.ne.s32.totalorder %s69, %s71
    %p75 = scmp.eq.s32.totalorder %s9, 0
    %p76 = por %p74, %p75
    %p77 = scmp.ne.s32.totalorder %s69, %s71
    %p78 = scmp.eq.s32.totalorder %s14, 8
    %p79 = por %p77, %p78
    %p80 = scmp.ne.s32.totalorder %s71, %s72
    %p81 = scmp.eq.s32.totalorder %s14, 0
    %p82 = por %p80, %p81
    %p83 = scmp.ne.s32.totalorder %s71, %s72
    %p84 = scmp.eq.s32.totalorder %s15, 8
    %p85 = por %p83, %p84
    %p87 = scmp.ne.s32.totalorder %s72, %s86
    %p88 = scmp.eq.s32.totalorder %s15, 0
    %p89 = por %p87, %p88
    %s91 = sadd.s32 %s90, 1
    %p94 = scmp.eq.s32.totalorder %s9, 8
    %p95 = scmp.ne.s32.totalorder %s90, %s92
    %p96 = scmp.eq.s32.totalorder %s9, 0
    %p97 = por %p95, %p96
    %p98 = scmp.ne.s32.totalorder %s90, %s92
    %p99 = scmp.eq.s32.totalorder %s14, 8
    %p100 = por %p98, %p99
    %p101 = scmp.ne.s32.totalorder %s92, %s93
    %p102 = scmp.eq.s32.totalorder %s14, 0
    %p103 = por %p101, %p102
    %p104 = scmp.ne.s32.totalorder %s92, %s93
    %p105 = scmp.eq.s32.totalorder %s15, 8
    %p106 = por %p104, %p105
    %p108 = scmp.ne.s32.totalorder %s93, %s107
    %p109 = scmp.eq.s32.totalorder %s15, 0
    %p110 = por %p108, %p109
    %p111 = scmp.le.s32.totalorder 1, %s9
    %p112 = scmp.lt.s32.totalorder %s9, 10
    %p113 = pnand %p111, %p112
    %p114 = pneg %p113
    // Predicated region
    $region9: #{_lambda_.12} parent=5 // pred_check
      _
    $region10: #{_lambda_.12} parent=5 // pred_check_branch
      %116 = sbr.rel (%p113) target = $region12
    $region11: #{_lambda_.12} parent=5 // pred_region
      %s117 = ssub.s32 %s9, 1
      // Predicated region
      $region13: #{_lambda_.12} parent=11 // pred_check
        %p118 = pneg %p82
      $region14: #{_lambda_.12} parent=11 // pred_check_branch
        %120 = sbr.rel (%p118) target = $region16
      $region15: #{_lambda_.12} parent=11 // pred_region
        _
      $region16: #{_lambda_.12} parent=11 // pred_fallthru
        _
    $region12: #{_lambda_.12} parent=5 // pred_fallthru
      _
    %p121 = scmp.lt.s32.totalorder %s9, 9
    // Predicated region
    $region17: #{_lambda_.12} parent=5 // pred_check
      %p122 = pneg %p121
    $region18: #{_lambda_.12} parent=5 // pred_check_branch
      %124 = sbr.rel (%p122) target = $region20
    $region19: #{_lambda_.12} parent=5 // pred_region
      // Predicated region
      $region21: #{_lambda_.12} parent=19 // pred_check
        %p125 = pneg %p29
      $region22: #{_lambda_.12} parent=19 // pred_check_branch
        %127 = sbr.rel (%p125) target = $region24
      $region23: #{_lambda_.12} parent=19 // pred_region
        %p128 = scmp.lt.s32.totalorder %s9, 8
        %s129 = scalar_select %p128, %s9, 8
        %s130 = smul.addr %s129, 16
        %s131 = smul.addr %s130, 8
        %s132 = scalar_lea.vmem %s0, %s131
      $region24: #{_lambda_.12} parent=19 // pred_fallthru
        _
      // Predicated region
      $region25: #{_lambda_.12} parent=19 // pred_check
        %p133 = pneg %p55
      $region26: #{_lambda_.12} parent=19 // pred_check_branch
        %135 = sbr.rel (%p133) target = $region28
      $region27: #{_lambda_.12} parent=19 // pred_region
        %p136 = scmp.lt.s32.totalorder %s9, 8
        %s137 = scalar_select %p136, %s9, 8
        %s138 = smul.addr %s137, 16
        %s139 = smul.addr %s138, 8
        %s140 = scalar_lea.vmem %s1, %s139
      $region28: #{_lambda_.12} parent=19 // pred_fallthru
        _
    $region20: #{_lambda_.12} parent=5 // pred_fallthru
      _
    %p141 = scmp.le.s32.totalorder 1, %s9
    %p142 = scmp.lt.s32.totalorder %s9, 10
    %p143 = pnand %p141, %p142
    %p144 = pneg %p143
    // Predicated region
    $region29: #{_lambda_.12} parent=5 // pred_check
      _
    $region30: #{_lambda_.12} parent=5 // pred_check_branch
      %146 = sbr.rel (%p143) target = $region32
    $region31: #{_lambda_.12} parent=5 // pred_region
      %s147 = ssub.s32 %s9, 1
      %p148 = scmp.lt.s32.totalorder %s14, 8
      %s149 = scalar_select %p148, %s14, 8
      %s150 = smul.addr %s149, 16
      %s151 = smul.addr %s150, 8
      %s152 = scalar_lea.vmem %s0, %s151
      %p153 = pneg %p35
      %p154 = pneg %p32
      %p155 = scmp.lt.s32.totalorder %s14, 8
      %s156 = scalar_select %p155, %s14, 8
      %s157 = smul.addr %s156, 16
      %s158 = smul.addr %s157, 8
      %s159 = scalar_lea.vmem %s1, %s158
      %p160 = pneg %p61
      %p161 = pneg %p58
      %p162 = pneg %p82
      %p163 = pneg %p79
      %p164 = pneg %p103
      %p165 = pneg %p100
      %p166 = scmp.lt.s32.totalorder %s14, 8
      %s167 = scalar_select %p166, %s14, 8
      %s168 = smul.addr %s167, 16
      %s169 = smul.addr %s168, 8
      %s170 = scalar_lea.vmem %s0, %s169
      %p171 = scmp.lt.s32.totalorder %s14, 8
      %s172 = scalar_select %p171, %s14, 8
      %s173 = smul.addr %s172, 16
      %s174 = smul.addr %s173, 8
      %s175 = scalar_lea.vmem %s1, %s174
      %p176 = scmp.eq.s32.totalorder %s14, 0
      // Predicated region
      $region33: #{_lambda_.12} parent=31 // pred_check
        %p177 = pneg %p176
      $region34: #{_lambda_.12} parent=31 // pred_check_branch
        %179 = sbr.rel (%p177) target = $region36
      $region35: #{_lambda_.12} parent=31 // pred_region
        %180 = vst [vmem:[#allocation2] sm:$0xff] 0.0
        %181 = vst [vmem:[#allocation2 + $0x8] sm:$0xff] 0.0
        %182 = vst [vmem:[#allocation2 + $0x10] sm:$0xff] 0.0
        %183 = vst [vmem:[#allocation2 + $0x18] sm:$0xff] 0.0
        %184 = vst [vmem:[#allocation2 + $0x20] sm:$0xff] 0.0
        %185 = vst [vmem:[#allocation2 + $0x28] sm:$0xff] 0.0
        %186 = vst [vmem:[#allocation2 + $0x30] sm:$0xff] 0.0
        %187 = vst [vmem:[#allocation2 + $0x38] sm:$0xff] 0.0
        %188 = vst [vmem:[#allocation2 + $0x40] sm:$0xff] 0.0
        %189 = vst [vmem:[#allocation2 + $0x48] sm:$0xff] 0.0
        %190 = vst [vmem:[#allocation2 + $0x50] sm:$0xff] 0.0
        %191 = vst [vmem:[#allocation2 + $0x58] sm:$0xff] 0.0
        %192 = vst [vmem:[#allocation2 + $0x60] sm:$0xff] 0.0
        %193 = vst [vmem:[#allocation2 + $0x68] sm:$0xff] 0.0
        %194 = vst [vmem:[#allocation2 + $0x70] sm:$0xff] 0.0
        %195 = vst [vmem:[#allocation2 + $0x78] sm:$0xff] 0.0
      $region36: #{_lambda_.12} parent=31 // pred_fallthru
        _
      %v196 = vld [vmem:[#allocation2] sm:$0xff]
      %v197 = vld [vmem:[#allocation2 + $0x8] sm:$0xff]
      %v198 = vld [vmem:[#allocation2 + $0x10] sm:$0xff]
      %v199 = vld [vmem:[#allocation2 + $0x18] sm:$0xff]
      %v200 = vld [vmem:[#allocation2 + $0x20] sm:$0xff]
      %v201 = vld [vmem:[#allocation2 + $0x28] sm:$0xff]
      %v202 = vld [vmem:[#allocation2 + $0x30] sm:$0xff]
      %v203 = vld [vmem:[#allocation2 + $0x38] sm:$0xff]
      %v204 = vld [vmem:[#allocation2 + $0x40] sm:$0xff]
      %v205 = vld [vmem:[#allocation2 + $0x48] sm:$0xff]
      %v206 = vld [vmem:[#allocation2 + $0x50] sm:$0xff]
      %v207 = vld [vmem:[#allocation2 + $0x58] sm:$0xff]
      %v208 = vld [vmem:[#allocation2 + $0x60] sm:$0xff]
      %v209 = vld [vmem:[#allocation2 + $0x68] sm:$0xff]
      %v210 = vld [vmem:[#allocation2 + $0x70] sm:$0xff]
      %v211 = vld [vmem:[#allocation2 + $0x78] sm:$0xff]
      %v212 = vld [vmem:[%s170] sm:$0xff]
      %v213 = vld [vmem:[%s170 + $0x8] sm:$0xff]
      %v214 = vld [vmem:[%s170 + $0x10] sm:$0xff]
      %v215 = vld [vmem:[%s170 + $0x18] sm:$0xff]
      %v216 = vld [vmem:[%s170 + $0x20] sm:$0xff]
      %v217 = vld [vmem:[%s170 + $0x28] sm:$0xff]
      %v218 = vld [vmem:[%s170 + $0x30] sm:$0xff]
      %v219 = vld [vmem:[%s170 + $0x38] sm:$0xff]
      %v220 = vld [vmem:[%s170 + $0x40] sm:$0xff]
      %v221 = vld [vmem:[%s170 + $0x48] sm:$0xff]
      %v222 = vld [vmem:[%s170 + $0x50] sm:$0xff]
      %v223 = vld [vmem:[%s170 + $0x58] sm:$0xff]
      %v224 = vld [vmem:[%s170 + $0x60] sm:$0xff]
      %v225 = vld [vmem:[%s170 + $0x68] sm:$0xff]
      %v226 = vld [vmem:[%s170 + $0x70] sm:$0xff]
      %v227 = vld [vmem:[%s170 + $0x78] sm:$0xff]
      %v228 = vld [vmem:[%s175] sm:$0xff]
      %v229 = vld [vmem:[%s175 + $0x8] sm:$0xff]
      %v230 = vld [vmem:[%s175 + $0x10] sm:$0xff]
      %v231 = vld [vmem:[%s175 + $0x18] sm:$0xff]
      %v232 = vld [vmem:[%s175 + $0x20] sm:$0xff]
      %v233 = vld [vmem:[%s175 + $0x28] sm:$0xff]
      %v234 = vld [vmem:[%s175 + $0x30] sm:$0xff]
      %v235 = vld [vmem:[%s175 + $0x38] sm:$0xff]
      %v236 = vld [vmem:[%s175 + $0x40] sm:$0xff]
      %v237 = vld [vmem:[%s175 + $0x48] sm:$0xff]
      %v238 = vld [vmem:[%s175 + $0x50] sm:$0xff]
      %v239 = vld [vmem:[%s175 + $0x58] sm:$0xff]
      %v240 = vld [vmem:[%s175 + $0x60] sm:$0xff]
      %v241 = vld [vmem:[%s175 + $0x68] sm:$0xff]
      %v242 = vld [vmem:[%s175 + $0x70] sm:$0xff]
      %v243 = vld [vmem:[%s175 + $0x78] sm:$0xff]
      %244 = vmatpush.msra.mxu0 %v243
      %245 = vmatpush.msra.mxu0 %v242
      %246 = vmatpush.msra.mxu0 %v241
      %247 = vmatpush.msra.mxu0 %v240
      %248 = vmatpush.msra.mxu0 %v239
      %249 = vmatpush.msra.mxu0 %v238
      %250 = vmatpush.msra.mxu0 %v237
      %251 = vmatpush.msra.mxu0 %v236
      %252 = vmatpush.msra.mxu0 %v235
      %253 = vmatpush.msra.mxu0 %v234
      %254 = vmatpush.msra.mxu0 %v233
      %255 = vmatpush.msra.mxu0 %v232
      %256 = vmatpush.msra.mxu0 %v231
      %257 = vmatpush.msra.mxu0 %v230
      %258 = vmatpush.msra.mxu0 %v229
      %259 = vmatpush.msra.mxu0 %v228
      %260 = vmatmul.f32.gmra.mxu0 %v212
      %v261 = vpop.f32.mrf.mxu0
      %v262 = vadd.f32 0.0, %v261
      %263 = vmatmul.f32.gmra.mxu0 %v213
      %v264 = vpop.f32.mrf.mxu0
      %v265 = vadd.f32 0.0, %v264
      %266 = vmatmul.f32.gmra.mxu0 %v214
      %v267 = vpop.f32.mrf.mxu0
      %v268 = vadd.f32 0.0, %v267
      %269 = vmatmul.f32.gmra.mxu0 %v215
      %v270 = vpop.f32.mrf.mxu0
      %v271 = vadd.f32 0.0, %v270
      %272 = vmatmul.f32.gmra.mxu0 %v216
      %v273 = vpop.f32.mrf.mxu0
      %v274 = vadd.f32 0.0, %v273
      %275 = vmatmul.f32.gmra.mxu0 %v217
      %v276 = vpop.f32.mrf.mxu0
      %v277 = vadd.f32 0.0, %v276
      %278 = vmatmul.f32.gmra.mxu0 %v218
      %v279 = vpop.f32.mrf.mxu0
      %v280 = vadd.f32 0.0, %v279
      %281 = vmatmul.f32.gmra.mxu0 %v219
      %v282 = vpop.f32.mrf.mxu0
      %v283 = vadd.f32 0.0, %v282
      %284 = vmatmul.f32.gmra.mxu0 %v220
      %v285 = vpop.f32.mrf.mxu0
      %v286 = vadd.f32 0.0, %v285
      %287 = vmatmul.f32.gmra.mxu0 %v221
      %v288 = vpop.f32.mrf.mxu0
      %v289 = vadd.f32 0.0, %v288
      %290 = vmatmul.f32.gmra.mxu0 %v222
      %v291 = vpop.f32.mrf.mxu0
      %v292 = vadd.f32 0.0, %v291
      %293 = vmatmul.f32.gmra.mxu0 %v223
      %v294 = vpop.f32.mrf.mxu0
      %v295 = vadd.f32 0.0, %v294
      %296 = vmatmul.f32.gmra.mxu0 %v224
      %v297 = vpop.f32.mrf.mxu0
      %v298 = vadd.f32 0.0, %v297
      %299 = vmatmul.f32.gmra.mxu0 %v225
      %v300 = vpop.f32.mrf.mxu0
      %v301 = vadd.f32 0.0, %v300
      %302 = vmatmul.f32.gmra.mxu0 %v226
      %v303 = vpop.f32.mrf.mxu0
      %v304 = vadd.f32 0.0, %v303
      %305 = vmatmul.f32.gmra.mxu0 %v227
      %v306 = vpop.f32.mrf.mxu0
      %v307 = vadd.f32 0.0, %v306
      %308 = vdwg.mxu0
      %v309 = vadd.f32 %v196, %v262
      %v310 = vadd.f32 %v197, %v265
      %v311 = vadd.f32 %v198, %v268
      %v312 = vadd.f32 %v199, %v271
      %v313 = vadd.f32 %v200, %v274
      %v314 = vadd.f32 %v201, %v277
      %v315 = vadd.f32 %v202, %v280
      %v316 = vadd.f32 %v203, %v283
      %v317 = vadd.f32 %v204, %v286
      %v318 = vadd.f32 %v205, %v289
      %v319 = vadd.f32 %v206, %v292
      %v320 = vadd.f32 %v207, %v295
      %v321 = vadd.f32 %v208, %v298
      %v322 = vadd.f32 %v209, %v301
      %v323 = vadd.f32 %v210, %v304
      %v324 = vadd.f32 %v211, %v307
      %325 = vst [vmem:[#allocation2] sm:$0xff] %v309
      %326 = vst [vmem:[#allocation2 + $0x8] sm:$0xff] %v310
      %327 = vst [vmem:[#allocation2 + $0x10] sm:$0xff] %v311
      %328 = vst [vmem:[#allocation2 + $0x18] sm:$0xff] %v312
      %329 = vst [vmem:[#allocation2 + $0x20] sm:$0xff] %v313
      %330 = vst [vmem:[#allocation2 + $0x28] sm:$0xff] %v314
      %331 = vst [vmem:[#allocation2 + $0x30] sm:$0xff] %v315
      %332 = vst [vmem:[#allocation2 + $0x38] sm:$0xff] %v316
      %333 = vst [vmem:[#allocation2 + $0x40] sm:$0xff] %v317
      %334 = vst [vmem:[#allocation2 + $0x48] sm:$0xff] %v318
      %335 = vst [vmem:[#allocation2 + $0x50] sm:$0xff] %v319
      %336 = vst [vmem:[#allocation2 + $0x58] sm:$0xff] %v320
      %337 = vst [vmem:[#allocation2 + $0x60] sm:$0xff] %v321
      %338 = vst [vmem:[#allocation2 + $0x68] sm:$0xff] %v322
      %339 = vst [vmem:[#allocation2 + $0x70] sm:$0xff] %v323
      %340 = vst [vmem:[#allocation2 + $0x78] sm:$0xff] %v324
      %p341 = scmp.eq.s32.totalorder %s14, 8
      // Predicated region
      $region37: #{_lambda_.12} parent=31 // pred_check
        %p342 = pneg %p341
      $region38: #{_lambda_.12} parent=31 // pred_check_branch
        %344 = sbr.rel (%p342) target = $region40
      $region39: #{_lambda_.12} parent=31 // pred_region
        %v345 = vld [vmem:[#allocation2] sm:$0xff]
        %v346 = vld [vmem:[#allocation2 + $0x8] sm:$0xff]
        %v347 = vld [vmem:[#allocation2 + $0x10] sm:$0xff]
        %v348 = vld [vmem:[#allocation2 + $0x18] sm:$0xff]
        %v349 = vld [vmem:[#allocation2 + $0x20] sm:$0xff]
        %v350 = vld [vmem:[#allocation2 + $0x28] sm:$0xff]
        %v351 = vld [vmem:[#allocation2 + $0x30] sm:$0xff]
        %v352 = vld [vmem:[#allocation2 + $0x38] sm:$0xff]
        %v353 = vld [vmem:[#allocation2 + $0x40] sm:$0xff]
        %v354 = vld [vmem:[#allocation2 + $0x48] sm:$0xff]
        %v355 = vld [vmem:[#allocation2 + $0x50] sm:$0xff]
        %v356 = vld [vmem:[#allocation2 + $0x58] sm:$0xff]
        %v357 = vld [vmem:[#allocation2 + $0x60] sm:$0xff]
        %v358 = vld [vmem:[#allocation2 + $0x68] sm:$0xff]
        %v359 = vld [vmem:[#allocation2 + $0x70] sm:$0xff]
        %v360 = vld [vmem:[#allocation2 + $0x78] sm:$0xff]
        %v361 = vld [vmem:[%s2] sm:$0x1]
        %v363 = vperm.slane %v361, 0
        %v365 = vadd.f32 %v345, %v363
        %v366 = vadd.f32 %v346, %v363
        %v367 = vadd.f32 %v347, %v363
        %v368 = vadd.f32 %v348, %v363
        %v369 = vadd.f32 %v349, %v363
        %v370 = vadd.f32 %v350, %v363
        %v371 = vadd.f32 %v351, %v363
        %v372 = vadd.f32 %v352, %v363
        %v373 = vadd.f32 %v353, %v363
        %v374 = vadd.f32 %v354, %v363
        %v375 = vadd.f32 %v355, %v363
        %v376 = vadd.f32 %v356, %v363
        %v377 = vadd.f32 %v357, %v363
        %v378 = vadd.f32 %v358, %v363
        %v379 = vadd.f32 %v359, %v363
        %v380 = vadd.f32 %v360, %v363
        %381 = vst [vmem:[%s3] sm:$0xff] %v365
        %382 = vst [vmem:[%s3 + $0x8] sm:$0xff] %v366
        %383 = vst [vmem:[%s3 + $0x10] sm:$0xff] %v367
        %384 = vst [vmem:[%s3 + $0x18] sm:$0xff] %v368
        %385 = vst [vmem:[%s3 + $0x20] sm:$0xff] %v369
        %386 = vst [vmem:[%s3 + $0x28] sm:$0xff] %v370
        %387 = vst [vmem:[%s3 + $0x30] sm:$0xff] %v371
        %388 = vst [vmem:[%s3 + $0x38] sm:$0xff] %v372
        %389 = vst [vmem:[%s3 + $0x40] sm:$0xff] %v373
        %390 = vst [vmem:[%s3 + $0x48] sm:$0xff] %v374
        %391 = vst [vmem:[%s3 + $0x50] sm:$0xff] %v375
        %392 = vst [vmem:[%s3 + $0x58] sm:$0xff] %v376
        %393 = vst [vmem:[%s3 + $0x60] sm:$0xff] %v377
        %394 = vst [vmem:[%s3 + $0x68] sm:$0xff] %v378
        %395 = vst [vmem:[%s3 + $0x70] sm:$0xff] %v379
        %396 = vst [vmem:[%s3 + $0x78] sm:$0xff] %v380
      $region40: #{_lambda_.12} parent=31 // pred_fallthru
        _
      // Predicated region
      $region41: #{_lambda_.12} parent=31 // pred_check
        %p397 = pneg %p100
      $region42: #{_lambda_.12} parent=31 // pred_check_branch
        %399 = sbr.rel (%p397) target = $region44
      $region43: #{_lambda_.12} parent=31 // pred_region
        _
      $region44: #{_lambda_.12} parent=31 // pred_fallthru
        _
      // Predicated region
      $region45: #{_lambda_.12} parent=31 // pred_check
        %p400 = pneg %p100
      $region46: #{_lambda_.12} parent=31 // pred_check_branch
        %402 = sbr.rel (%p400) target = $region48
      $region47: #{_lambda_.12} parent=31 // pred_region
        _
      $region48: #{_lambda_.12} parent=31 // pred_fallthru
        _
    $region32: #{_lambda_.12} parent=5 // pred_fallthru
      _
    %p403 = scmp.le.s32.totalorder 2, %s9
    // Predicated region
    $region49: #{_lambda_.12} parent=5 // pred_check
      %p404 = pneg %p403
    $region50: #{_lambda_.12} parent=5 // pred_check_branch
      %406 = sbr.rel (%p404) target = $region52
    $region51: #{_lambda_.12} parent=5 // pred_region
      %s407 = ssub.s32 %s9, 2
    $region52: #{_lambda_.12} parent=5 // pred_fallthru
      _
  $region6: #{_lambda_.12} parent=0 // loop_footer
    %s13 = sadd.s32 1, %s9
  $region7: #{_lambda_.12} parent=0 // loop_footer_branch
    %8 = sbr.rel target = $region3
  $region8: #{_lambda_.12} parent=0 // loop_exit
    _

// kernel: _lambda_.13
$region0: #{_lambda_.13}
  #allocation0 [shape = 'u32[]', space=smem, size = 0x4, offset = 0x4, fixed_abs, tag = 'smem constant byte address 0x4 - core index']
  #allocation1 [shape = 'u32[72,128]{1,0:T(1,128)}', space=vmem, size = 0x9000, scoped, tag = 'internal scratch']
  %s0 = inlined_call_operand.vmem [shape: f32[4,32,128], index: 0, kind: input, shape index: {}]
  %s1 = inlined_call_operand.vmem [shape: f32[32,128], index: 1, kind: output, shape index: {}]
  %s2 = sld [smem:[#allocation0]]
  $region14: #{_lambda_.13} parent=0
    _
  %s4 = ssub.s32 1, %s2
  %s5 = scalar_select 0, %s4, %s2
  // Predicated region
  $region2: #{_lambda_.13} parent=0 // pred_check
    _
  $region3: #{_lambda_.13} parent=0 // pred_check_branch
    %7 = sbr.rel (0) target = $region5
  $region4: #{_lambda_.13} parent=0 // pred_region
    _
  $region5: #{_lambda_.13} parent=0 // pred_fallthru
    _
  %v8 = vld [vmem:[%s0] sm:$0xff]
  %v9 = vld [vmem:[%s0 + $0x8] sm:$0xff]
  %v10 = vld [vmem:[%s0 + $0x10] sm:$0xff]
  %v11 = vld [vmem:[%s0 + $0x18] sm:$0xff]
  %s12 = scalar_lea.vmem %s0, 32
  %v13 = vld [vmem:[%s12] sm:$0xff]
  %v14 = vld [vmem:[%s12 + $0x8] sm:$0xff]
  %v15 = vld [vmem:[%s12 + $0x10] sm:$0xff]
  %v16 = vld [vmem:[%s12 + $0x18] sm:$0xff]
  %v17 = vmax.f32 %v8, %v13
  %v18 = vmax.f32 %v9, %v14
  %v19 = vmax.f32 %v10, %v15
  %v20 = vmax.f32 %v11, %v16
  %s21 = scalar_lea.vmem %s0, 64
  %v22 = vld [vmem:[%s21] sm:$0xff]
  %v23 = vld [vmem:[%s21 + $0x8] sm:$0xff]
  %v24 = vld [vmem:[%s21 + $0x10] sm:$0xff]
  %v25 = vld [vmem:[%s21 + $0x18] sm:$0xff]
  %s26 = scalar_lea.vmem %s0, 96
  %v27 = vld [vmem:[%s26] sm:$0xff]
  %v28 = vld [vmem:[%s26 + $0x8] sm:$0xff]
  %v29 = vld [vmem:[%s26 + $0x10] sm:$0xff]
  %v30 = vld [vmem:[%s26 + $0x18] sm:$0xff]
  %v31 = vmax.f32 %v22, %v27
  %v32 = vmax.f32 %v23, %v28
  %v33 = vmax.f32 %v24, %v29
  %v34 = vmax.f32 %v25, %v30
  %v35 = vmax.f32 %v17, %v31
  %v36 = vmax.f32 %v18, %v32
  %v37 = vmax.f32 %v19, %v33
  %v38 = vmax.f32 %v20, %v34
  %v39 = vmax.f32 %v35, 0.0
  %v40 = vmax.f32 %v36, 0.0
  %v41 = vmax.f32 %v37, 0.0
  %v42 = vmax.f32 %v38, 0.0
  %43 = vst [vmem:[%s1] sm:$0xff] %v39
  %44 = vst [vmem:[%s1 + $0x8] sm:$0xff] %v40
  %45 = vst [vmem:[%s1 + $0x10] sm:$0xff] %v41
  %46 = vst [vmem:[%s1 + $0x18] sm:$0xff] %v42
  // Predicated region
  $region6: #{_lambda_.13} parent=0 // pred_check
    _
  $region7: #{_lambda_.13} parent=0 // pred_check_branch
    %48 = sbr.rel (0) target = $region9
  $region8: #{_lambda_.13} parent=0 // pred_region
    _
  $region9: #{_lambda_.13} parent=0 // pred_fallthru
    _
  // Predicated region
  $region10: #{_lambda_.13} parent=0 // pred_check
    _
  $region11: #{_lambda_.13} parent=0 // pred_check_branch
    %50 = sbr.rel (0) target = $region13
  $region12: #{_lambda_.13} parent=0 // pred_region
    _
  $region13: #{_lambda_.13} parent=0 // pred_fallthru
    _

// kernel: _lambda_.14
$region0: #{_lambda_.14}
  #allocation0 [shape = 'u32[]', space=smem, size = 0x4, offset = 0x4, fixed_abs, tag = 'smem constant byte address 0x4 - core index']
  #allocation1 [shape = 'u32[72,128]{1,0:T(1,128)}', space=vmem, size = 0x9000, scoped, tag = 'internal scratch']
  #allocation2 [shape = 'f32[32,256]{1,0:T(8,128)}', space=vmem, size = 0x8000, scoped, tag = 'scratch operand']
  %s0 = inlined_call_operand.vmem [shape: f32[9,32,128], index: 0, kind: input, shape index: {}]
  %s1 = inlined_call_operand.vmem [shape: f32[9,128,256], index: 1, kind: input, shape index: {}]
  %s2 = inlined_call_operand.vmem [shape: f32[1,256], index: 2, kind: input, shape index: {}]
  %s3 = inlined_call_operand.vmem [shape: f32[32,256], index: 3, kind: output, shape index: {}]
  %s4 = sld [smem:[#allocation0]]
  $region53: #{_lambda_.14} parent=0
    _
  %s6 = ssub.s32 1, %s4
  %s7 = scalar_select 0, %s6, %s4
  loop: start=0, step=1, limit=11
  $region2: #{_lambda_.14} parent=0 // loop_pre_header
    _
  $region3: #{_lambda_.14} parent=0 // loop_header
    %s9 = sphi 0, %s13
    %p10 = scmp.ge.s32.totalorder %s9, 11
    %s19 = sphi 0, %s21
    %s22 = sphi 0, %s19
    %s23 = sphi 0, %s22
    %s39 = sphi 0, %s23
    %s45 = sphi 0, %s47
    %s48 = sphi 0, %s45
    %s49 = sphi 0, %s48
    %s65 = sphi 0, %s49
    %s69 = sphi 0, %s69
    %s71 = sphi 0, %s69
    %s72 = sphi 0, %s71
    %s86 = sphi 0, %s72
    %s90 = sphi 0, %s90
    %s92 = sphi 0, %s90
    %s93 = sphi 0, %s92
    %s107 = sphi 0, %s93
  $region4: #{_lambda_.14} parent=0 // loop_header_branch
    %12 = sbr.rel (%p10) target = $region8
  $region5: #{_lambda_.14} parent=0 // loop_body
    %s14 = ssub.s32 %s9, 1
    %s15 = ssub.s32 %s9, 2
    %s16 = sadd.s32 %s9, 1
    %s17 = ssub.s32 %s9, %s16
    %p18 = scmp.eq.s32.totalorder %s17, 0
    %s20 = sadd.s32 %s19, 1
    %s21 = scalar_select %p18, %s19, %s20
    %p24 = pneg %p18
    %p25 = scmp.eq.s32.totalorder %s9, 8
    %p26 = por %p24, %p25
    %p27 = scmp.ne.s32.totalorder %s19, %s22
    %p28 = scmp.eq.s32.totalorder %s9, 0
    %p29 = por %p27, %p28
    %p30 = scmp.ne.s32.totalorder %s19, %s22
    %p31 = scmp.eq.s32.totalorder %s14, 8
    %p32 = por %p30, %p31
    %p33 = scmp.ne.s32.totalorder %s22, %s23
    %p34 = scmp.eq.s32.totalorder %s14, 0
    %p35 = por %p33, %p34
    %p36 = scmp.ne.s32.totalorder %s22, %s23
    %p37 = scmp.eq.s32.totalorder %s15, 8
    %p38 = por %p36, %p37
    %p40 = scmp.ne.s32.totalorder %s23, %s39
    %p41 = scmp.eq.s32.totalorder %s15, 0
    %p42 = por %p40, %p41
    %s43 = ssub.s32 %s9, %s16
    %p44 = scmp.eq.s32.totalorder %s43, 0
    %s46 = sadd.s32 %s45, 1
    %s47 = scalar_select %p44, %s45, %s46
    %p50 = pneg %p44
    %p51 = scmp.eq.s32.totalorder %s9, 8
    %p52 = por %p50, %p51
    %p53 = scmp.ne.s32.totalorder %s45, %s48
    %p54 = scmp.eq.s32.totalorder %s9, 0
    %p55 = por %p53, %p54
    %p56 = scmp.ne.s32.totalorder %s45, %s48
    %p57 = scmp.eq.s32.totalorder %s14, 8
    %p58 = por %p56, %p57
    %p59 = scmp.ne.s32.totalorder %s48, %s49
    %p60 = scmp.eq.s32.totalorder %s14, 0
    %p61 = por %p59, %p60
    %p62 = scmp.ne.s32.totalorder %s48, %s49
    %p63 = scmp.eq.s32.totalorder %s15, 8
    %p64 = por %p62, %p63
    %p66 = scmp.ne.s32.totalorder %s49, %s65
    %p67 = scmp.eq.s32.totalorder %s15, 0
    %p68 = por %p66, %p67
    %s70 = sadd.s32 %s69, 1
    %p73 = scmp.eq.s32.totalorder %s9, 8
    %p74 = scmp.ne.s32.totalorder %s69, %s71
    %p75 = scmp.eq.s32.totalorder %s9, 0
    %p76 = por %p74, %p75
    %p77 = scmp.ne.s32.totalorder %s69, %s71
    %p78 = scmp.eq.s32.totalorder %s14, 8
    %p79 = por %p77, %p78
    %p80 = scmp.ne.s32.totalorder %s71, %s72
    %p81 = scmp.eq.s32.totalorder %s14, 0
    %p82 = por %p80, %p81
    %p83 = scmp.ne.s32.totalorder %s71, %s72
    %p84 = scmp.eq.s32.totalorder %s15, 8
    %p85 = por %p83, %p84
    %p87 = scmp.ne.s32.totalorder %s72, %s86
    %p88 = scmp.eq.s32.totalorder %s15, 0
    %p89 = por %p87, %p88
    %s91 = sadd.s32 %s90, 1
    %p94 = scmp.eq.s32.totalorder %s9, 8
    %p95 = scmp.ne.s32.totalorder %s90, %s92
    %p96 = scmp.eq.s32.totalorder %s9, 0
    %p97 = por %p95, %p96
    %p98 = scmp.ne.s32.totalorder %s90, %s92
    %p99 = scmp.eq.s32.totalorder %s14, 8
    %p100 = por %p98, %p99
    %p101 = scmp.ne.s32.totalorder %s92, %s93
    %p102 = scmp.eq.s32.totalorder %s14, 0
    %p103 = por %p101, %p102
    %p104 = scmp.ne.s32.totalorder %s92, %s93
    %p105 = scmp.eq.s32.totalorder %s15, 8
    %p106 = por %p104, %p105
    %p108 = scmp.ne.s32.totalorder %s93, %s107
    %p109 = scmp.eq.s32.totalorder %s15, 0
    %p110 = por %p108, %p109
    %p111 = scmp.le.s32.totalorder 1, %s9
    %p112 = scmp.lt.s32.totalorder %s9, 10
    %p113 = pnand %p111, %p112
    %p114 = pneg %p113
    // Predicated region
    $region9: #{_lambda_.14} parent=5 // pred_check
      _
    $region10: #{_lambda_.14} parent=5 // pred_check_branch
      %116 = sbr.rel (%p113) target = $region12
    $region11: #{_lambda_.14} parent=5 // pred_region
      %s117 = ssub.s32 %s9, 1
      // Predicated region
      $region13: #{_lambda_.14} parent=11 // pred_check
        %p118 = pneg %p82
      $region14: #{_lambda_.14} parent=11 // pred_check_branch
        %120 = sbr.rel (%p118) target = $region16
      $region15: #{_lambda_.14} parent=11 // pred_region
        _
      $region16: #{_lambda_.14} parent=11 // pred_fallthru
        _
    $region12: #{_lambda_.14} parent=5 // pred_fallthru
      _
    %p121 = scmp.lt.s32.totalorder %s9, 9
    // Predicated region
    $region17: #{_lambda_.14} parent=5 // pred_check
      %p122 = pneg %p121
    $region18: #{_lambda_.14} parent=5 // pred_check_branch
      %124 = sbr.rel (%p122) target = $region20
    $region19: #{_lambda_.14} parent=5 // pred_region
      // Predicated region
      $region21: #{_lambda_.14} parent=19 // pred_check
        %p125 = pneg %p29
      $region22: #{_lambda_.14} parent=19 // pred_check_branch
        %127 = sbr.rel (%p125) target = $region24
      $region23: #{_lambda_.14} parent=19 // pred_region
        %p128 = scmp.lt.s32.totalorder %s9, 8
        %s129 = scalar_select %p128, %s9, 8
        %s130 = smul.addr %s129, 4
        %s131 = smul.addr %s130, 8
        %s132 = scalar_lea.vmem %s0, %s131
      $region24: #{_lambda_.14} parent=19 // pred_fallthru
        _
      // Predicated region
      $region25: #{_lambda_.14} parent=19 // pred_check
        %p133 = pneg %p55
      $region26: #{_lambda_.14} parent=19 // pred_check_branch
        %135 = sbr.rel (%p133) target = $region28
      $region27: #{_lambda_.14} parent=19 // pred_region
        %p136 = scmp.lt.s32.totalorder %s9, 8
        %s137 = scalar_select %p136, %s9, 8
        %s138 = smul.addr %s137, 32
        %s139 = smul.addr %s138, 8
        %s140 = scalar_lea.vmem %s1, %s139
      $region28: #{_lambda_.14} parent=19 // pred_fallthru
        _
    $region20: #{_lambda_.14} parent=5 // pred_fallthru
      _
    %p141 = scmp.le.s32.totalorder 1, %s9
    %p142 = scmp.lt.s32.totalorder %s9, 10
    %p143 = pnand %p141, %p142
    %p144 = pneg %p143
    // Predicated region
    $region29: #{_lambda_.14} parent=5 // pred_check
      _
    $region30: #{_lambda_.14} parent=5 // pred_check_branch
      %146 = sbr.rel (%p143) target = $region32
    $region31: #{_lambda_.14} parent=5 // pred_region
      %s147 = ssub.s32 %s9, 1
      %p148 = scmp.lt.s32.totalorder %s14, 8
      %s149 = scalar_select %p148, %s14, 8
      %s150 = smul.addr %s149, 4
      %s151 = smul.addr %s150, 8
      %s152 = scalar_lea.vmem %s0, %s151
      %p153 = pneg %p35
      %p154 = pneg %p32
      %p155 = scmp.lt.s32.totalorder %s14, 8
      %s156 = scalar_select %p155, %s14, 8
      %s157 = smul.addr %s156, 32
      %s158 = smul.addr %s157, 8
      %s159 = scalar_lea.vmem %s1, %s158
      %p160 = pneg %p61
      %p161 = pneg %p58
      %p162 = pneg %p82
      %p163 = pneg %p79
      %p164 = pneg %p103
      %p165 = pneg %p100
      %p166 = scmp.lt.s32.totalorder %s14, 8
      %s167 = scalar_select %p166, %s14, 8
      %s168 = smul.addr %s167, 4
      %s169 = smul.addr %s168, 8
      %s170 = scalar_lea.vmem %s0, %s169
      %p171 = scmp.lt.s32.totalorder %s14, 8
      %s172 = scalar_select %p171, %s14, 8
      %s173 = smul.addr %s172, 32
      %s174 = smul.addr %s173, 8
      %s175 = scalar_lea.vmem %s1, %s174
      %p176 = scmp.eq.s32.totalorder %s14, 0
      // Predicated region
      $region33: #{_lambda_.14} parent=31 // pred_check
        %p177 = pneg %p176
      $region34: #{_lambda_.14} parent=31 // pred_check_branch
        %179 = sbr.rel (%p177) target = $region36
      $region35: #{_lambda_.14} parent=31 // pred_region
        %180 = vst [vmem:[#allocation2] sm:$0xff] 0.0
        %181 = vst [vmem:[#allocation2 + $0x8] sm:$0xff] 0.0
        %182 = vst [vmem:[#allocation2 + $0x10] sm:$0xff] 0.0
        %183 = vst [vmem:[#allocation2 + $0x18] sm:$0xff] 0.0
        %184 = vst [vmem:[#allocation2 + $0x20] sm:$0xff] 0.0
        %185 = vst [vmem:[#allocation2 + $0x28] sm:$0xff] 0.0
        %186 = vst [vmem:[#allocation2 + $0x30] sm:$0xff] 0.0
        %187 = vst [vmem:[#allocation2 + $0x38] sm:$0xff] 0.0
      $region36: #{_lambda_.14} parent=31 // pred_fallthru
        _
      %v188 = vld [vmem:[#allocation2] sm:$0xff]
      %v189 = vld [vmem:[#allocation2 + $0x8] sm:$0xff]
      %v190 = vld [vmem:[#allocation2 + $0x10] sm:$0xff]
      %v191 = vld [vmem:[#allocation2 + $0x18] sm:$0xff]
      %v192 = vld [vmem:[#allocation2 + $0x20] sm:$0xff]
      %v193 = vld [vmem:[#allocation2 + $0x28] sm:$0xff]
      %v194 = vld [vmem:[#allocation2 + $0x30] sm:$0xff]
      %v195 = vld [vmem:[#allocation2 + $0x38] sm:$0xff]
      %v196 = vld [vmem:[%s170] sm:$0xff]
      %v197 = vld [vmem:[%s170 + $0x8] sm:$0xff]
      %v198 = vld [vmem:[%s170 + $0x10] sm:$0xff]
      %v199 = vld [vmem:[%s170 + $0x18] sm:$0xff]
      %v200 = vld [vmem:[%s175] sm:$0xff]
      %v201 = vld [vmem:[%s175 + $0x8] sm:$0xff]
      %v202 = vld [vmem:[%s175 + $0x10] sm:$0xff]
      %v203 = vld [vmem:[%s175 + $0x18] sm:$0xff]
      %v204 = vld [vmem:[%s175 + $0x20] sm:$0xff]
      %v205 = vld [vmem:[%s175 + $0x28] sm:$0xff]
      %v206 = vld [vmem:[%s175 + $0x30] sm:$0xff]
      %v207 = vld [vmem:[%s175 + $0x38] sm:$0xff]
      %v208 = vld [vmem:[%s175 + $0x40] sm:$0xff]
      %v209 = vld [vmem:[%s175 + $0x48] sm:$0xff]
      %v210 = vld [vmem:[%s175 + $0x50] sm:$0xff]
      %v211 = vld [vmem:[%s175 + $0x58] sm:$0xff]
      %v212 = vld [vmem:[%s175 + $0x60] sm:$0xff]
      %v213 = vld [vmem:[%s175 + $0x68] sm:$0xff]
      %v214 = vld [vmem:[%s175 + $0x70] sm:$0xff]
      %v215 = vld [vmem:[%s175 + $0x78] sm:$0xff]
      %v216 = vld [vmem:[%s175 + $0x80] sm:$0xff]
      %v217 = vld [vmem:[%s175 + $0x88] sm:$0xff]
      %v218 = vld [vmem:[%s175 + $0x90] sm:$0xff]
      %v219 = vld [vmem:[%s175 + $0x98] sm:$0xff]
      %v220 = vld [vmem:[%s175 + $0xa0] sm:$0xff]
      %v221 = vld [vmem:[%s175 + $0xa8] sm:$0xff]
      %v222 = vld [vmem:[%s175 + $0xb0] sm:$0xff]
      %v223 = vld [vmem:[%s175 + $0xb8] sm:$0xff]
      %v224 = vld [vmem:[%s175 + $0xc0] sm:$0xff]
      %v225 = vld [vmem:[%s175 + $0xc8] sm:$0xff]
      %v226 = vld [vmem:[%s175 + $0xd0] sm:$0xff]
      %v227 = vld [vmem:[%s175 + $0xd8] sm:$0xff]
      %v228 = vld [vmem:[%s175 + $0xe0] sm:$0xff]
      %v229 = vld [vmem:[%s175 + $0xe8] sm:$0xff]
      %v230 = vld [vmem:[%s175 + $0xf0] sm:$0xff]
      %v231 = vld [vmem:[%s175 + $0xf8] sm:$0xff]
      %232 = vmatpush.msra.mxu0 %v230
      %233 = vmatpush.msra.mxu0 %v228
      %234 = vmatpush.msra.mxu0 %v226
      %235 = vmatpush.msra.mxu0 %v224
      %236 = vmatpush.msra.mxu0 %v222
      %237 = vmatpush.msra.mxu0 %v220
      %238 = vmatpush.msra.mxu0 %v218
      %239 = vmatpush.msra.mxu0 %v216
      %240 = vmatpush.msra.mxu0 %v214
      %241 = vmatpush.msra.mxu0 %v212
      %242 = vmatpush.msra.mxu0 %v210
      %243 = vmatpush.msra.mxu0 %v208
      %244 = vmatpush.msra.mxu0 %v206
      %245 = vmatpush.msra.mxu0 %v204
      %246 = vmatpush.msra.mxu0 %v202
      %247 = vmatpush.msra.mxu0 %v200
      %248 = vmatmul.f32.gmra.mxu0 %v196
      %v249 = vpop.f32.mrf.mxu0
      %v250 = vadd.f32 0.0, %v249
      %251 = vmatmul.f32.gmra.mxu0 %v197
      %v252 = vpop.f32.mrf.mxu0
      %v253 = vadd.f32 0.0, %v252
      %254 = vmatmul.f32.gmra.mxu0 %v198
      %v255 = vpop.f32.mrf.mxu0
      %v256 = vadd.f32 0.0, %v255
      %257 = vmatmul.f32.gmra.mxu0 %v199
      %v258 = vpop.f32.mrf.mxu0
      %v259 = vadd.f32 0.0, %v258
      %260 = vdwg.mxu0
      %261 = vmatpush.msra.mxu0 %v231
      %262 = vmatpush.msra.mxu0 %v229
      %263 = vmatpush.msra.mxu0 %v227
      %264 = vmatpush.msra.mxu0 %v225
      %265 = vmatpush.msra.mxu0 %v223
      %266 = vmatpush.msra.mxu0 %v221
      %267 = vmatpush.msra.mxu0 %v219
      %268 = vmatpush.msra.mxu0 %v217
      %269 = vmatpush.msra.mxu0 %v215
      %270 = vmatpush.msra.mxu0 %v213
      %271 = vmatpush.msra.mxu0 %v211
      %272 = vmatpush.msra.mxu0 %v209
      %273 = vmatpush.msra.mxu0 %v207
      %274 = vmatpush.msra.mxu0 %v205
      %275 = vmatpush.msra.mxu0 %v203
      %276 = vmatpush.msra.mxu0 %v201
      %277 = vmatmul.f32.gmra.mxu0 %v196
      %v278 = vpop.f32.mrf.mxu0
      %v279 = vadd.f32 0.0, %v278
      %280 = vmatmul.f32.gmra.mxu0 %v197
      %v281 = vpop.f32.mrf.mxu0
      %v282 = vadd.f32 0.0, %v281
      %283 = vmatmul.f32.gmra.mxu0 %v198
      %v284 = vpop.f32.mrf.mxu0
      %v285 = vadd.f32 0.0, %v284
      %286 = vmatmul.f32.gmra.mxu0 %v199
      %v287 = vpop.f32.mrf.mxu0
      %v288 = vadd.f32 0.0, %v287
      %289 = vdwg.mxu0
      %v290 = vadd.f32 %v188, %v250
      %v291 = vadd.f32 %v189, %v279
      %v292 = vadd.f32 %v190, %v253
      %v293 = vadd.f32 %v191, %v282
      %v294 = vadd.f32 %v192, %v256
      %v295 = vadd.f32 %v193, %v285
      %v296 = vadd.f32 %v194, %v259
      %v297 = vadd.f32 %v195, %v288
      %298 = vst [vmem:[#allocation2] sm:$0xff] %v290
      %299 = vst [vmem:[#allocation2 + $0x8] sm:$0xff] %v291
      %300 = vst [vmem:[#allocation2 + $0x10] sm:$0xff] %v292
      %301 = vst [vmem:[#allocation2 + $0x18] sm:$0xff] %v293
      %302 = vst [vmem:[#allocation2 + $0x20] sm:$0xff] %v294
      %303 = vst [vmem:[#allocation2 + $0x28] sm:$0xff] %v295
      %304 = vst [vmem:[#allocation2 + $0x30] sm:$0xff] %v296
      %305 = vst [vmem:[#allocation2 + $0x38] sm:$0xff] %v297
      %p306 = scmp.eq.s32.totalorder %s14, 8
      // Predicated region
      $region37: #{_lambda_.14} parent=31 // pred_check
        %p307 = pneg %p306
      $region38: #{_lambda_.14} parent=31 // pred_check_branch
        %309 = sbr.rel (%p307) target = $region40
      $region39: #{_lambda_.14} parent=31 // pred_region
        %v310 = vld [vmem:[#allocation2] sm:$0xff]
        %v311 = vld [vmem:[#allocation2 + $0x8] sm:$0xff]
        %v312 = vld [vmem:[#allocation2 + $0x10] sm:$0xff]
        %v313 = vld [vmem:[#allocation2 + $0x18] sm:$0xff]
        %v314 = vld [vmem:[#allocation2 + $0x20] sm:$0xff]
        %v315 = vld [vmem:[#allocation2 + $0x28] sm:$0xff]
        %v316 = vld [vmem:[#allocation2 + $0x30] sm:$0xff]
        %v317 = vld [vmem:[#allocation2 + $0x38] sm:$0xff]
        %v318 = vld [vmem:[%s2] sm:$0x3]
        %v320 = vperm.slane %v318, 0
        %v321 = vperm.slane %v318, 1
        %v324 = vadd.f32 %v310, %v320
        %v325 = vadd.f32 %v311, %v321
        %v326 = vadd.f32 %v312, %v320
        %v327 = vadd.f32 %v313, %v321
        %v328 = vadd.f32 %v314, %v320
        %v329 = vadd.f32 %v315, %v321
        %v330 = vadd.f32 %v316, %v320
        %v331 = vadd.f32 %v317, %v321
        %v332 = vmax.f32 %v324, 0.0
        %v333 = vmax.f32 %v325, 0.0
        %v334 = vmax.f32 %v326, 0.0
        %v335 = vmax.f32 %v327, 0.0
        %v336 = vmax.f32 %v328, 0.0
        %v337 = vmax.f32 %v329, 0.0
        %v338 = vmax.f32 %v330, 0.0
        %v339 = vmax.f32 %v331, 0.0
        %340 = vst [vmem:[%s3] sm:$0xff] %v332
        %341 = vst [vmem:[%s3 + $0x8] sm:$0xff] %v333
        %342 = vst [vmem:[%s3 + $0x10] sm:$0xff] %v334
        %343 = vst [vmem:[%s3 + $0x18] sm:$0xff] %v335
        %344 = vst [vmem:[%s3 + $0x20] sm:$0xff] %v336
        %345 = vst [vmem:[%s3 + $0x28] sm:$0xff] %v337
        %346 = vst [vmem:[%s3 + $0x30] sm:$0xff] %v338
        %347 = vst [vmem:[%s3 + $0x38] sm:$0xff] %v339
      $region40: #{_lambda_.14} parent=31 // pred_fallthru
        _
      // Predicated region
      $region41: #{_lambda_.14} parent=31 // pred_check
        %p348 = pneg %p100
      $region42: #{_lambda_.14} parent=31 // pred_check_branch
        %350 = sbr.rel (%p348) target = $region44
      $region43: #{_lambda_.14} parent=31 // pred_region
        _
      $region44: #{_lambda_.14} parent=31 // pred_fallthru
        _
      // Predicated region
      $region45: #{_lambda_.14} parent=31 // pred_check
        %p351 = pneg %p100
      $region46: #{_lambda_.14} parent=31 // pred_check_branch
        %353 = sbr.rel (%p351) target = $region48
      $region47: #{_lambda_.14} parent=31 // pred_region
        _
      $region48: #{_lambda_.14} parent=31 // pred_fallthru
        _
    $region32: #{_lambda_.14} parent=5 // pred_fallthru
      _
    %p354 = scmp.le.s32.totalorder 2, %s9
    // Predicated region
    $region49: #{_lambda_.14} parent=5 // pred_check
      %p355 = pneg %p354
    $region50: #{_lambda_.14} parent=5 // pred_check_branch
      %357 = sbr.rel (%p355) target = $region52
    $region51: #{_lambda_.14} parent=5 // pred_region
      %s358 = ssub.s32 %s9, 2
    $region52: #{_lambda_.14} parent=5 // pred_fallthru
      _
  $region6: #{_lambda_.14} parent=0 // loop_footer
    %s13 = sadd.s32 1, %s9
  $region7: #{_lambda_.14} parent=0 // loop_footer_branch
    %8 = sbr.rel target = $region3
  $region8: #{_lambda_.14} parent=0 // loop_exit
    _

// kernel: _lambda_.15
$region0: #{_lambda_.15}
  #allocation0 [shape = 'u32[]', space=smem, size = 0x4, offset = 0x4, fixed_abs, tag = 'smem constant byte address 0x4 - core index']
  #allocation1 [shape = 'u32[72,128]{1,0:T(1,128)}', space=vmem, size = 0x9000, scoped, tag = 'internal scratch']
  #allocation2 [shape = 'f32[32,256]{1,0:T(8,128)}', space=vmem, size = 0x8000, scoped, tag = 'scratch operand']
  %s0 = inlined_call_operand.vmem [shape: f32[9,32,256], index: 0, kind: input, shape index: {}]
  %s1 = inlined_call_operand.vmem [shape: f32[9,256,256], index: 1, kind: input, shape index: {}]
  %s2 = inlined_call_operand.vmem [shape: f32[1,256], index: 2, kind: input, shape index: {}]
  %s3 = inlined_call_operand.vmem [shape: f32[32,256], index: 3, kind: output, shape index: {}]
  %s4 = sld [smem:[#allocation0]]
  $region53: #{_lambda_.15} parent=0
    _
  %s6 = ssub.s32 1, %s4
  %s7 = scalar_select 0, %s6, %s4
  loop: start=0, step=1, limit=11
  $region2: #{_lambda_.15} parent=0 // loop_pre_header
    _
  $region3: #{_lambda_.15} parent=0 // loop_header
    %s9 = sphi 0, %s13
    %p10 = scmp.ge.s32.totalorder %s9, 11
    %s19 = sphi 0, %s21
    %s22 = sphi 0, %s19
    %s23 = sphi 0, %s22
    %s39 = sphi 0, %s23
    %s45 = sphi 0, %s47
    %s48 = sphi 0, %s45
    %s49 = sphi 0, %s48
    %s65 = sphi 0, %s49
    %s69 = sphi 0, %s69
    %s71 = sphi 0, %s69
    %s72 = sphi 0, %s71
    %s86 = sphi 0, %s72
    %s90 = sphi 0, %s90
    %s92 = sphi 0, %s90
    %s93 = sphi 0, %s92
    %s107 = sphi 0, %s93
  $region4: #{_lambda_.15} parent=0 // loop_header_branch
    %12 = sbr.rel (%p10) target = $region8
  $region5: #{_lambda_.15} parent=0 // loop_body
    %s14 = ssub.s32 %s9, 1
    %s15 = ssub.s32 %s9, 2
    %s16 = sadd.s32 %s9, 1
    %s17 = ssub.s32 %s9, %s16
    %p18 = scmp.eq.s32.totalorder %s17, 0
    %s20 = sadd.s32 %s19, 1
    %s21 = scalar_select %p18, %s19, %s20
    %p24 = pneg %p18
    %p25 = scmp.eq.s32.totalorder %s9, 8
    %p26 = por %p24, %p25
    %p27 = scmp.ne.s32.totalorder %s19, %s22
    %p28 = scmp.eq.s32.totalorder %s9, 0
    %p29 = por %p27, %p28
    %p30 = scmp.ne.s32.totalorder %s19, %s22
    %p31 = scmp.eq.s32.totalorder %s14, 8
    %p32 = por %p30, %p31
    %p33 = scmp.ne.s32.totalorder %s22, %s23
    %p34 = scmp.eq.s32.totalorder %s14, 0
    %p35 = por %p33, %p34
    %p36 = scmp.ne.s32.totalorder %s22, %s23
    %p37 = scmp.eq.s32.totalorder %s15, 8
    %p38 = por %p36, %p37
    %p40 = scmp.ne.s32.totalorder %s23, %s39
    %p41 = scmp.eq.s32.totalorder %s15, 0
    %p42 = por %p40, %p41
    %s43 = ssub.s32 %s9, %s16
    %p44 = scmp.eq.s32.totalorder %s43, 0
    %s46 = sadd.s32 %s45, 1
    %s47 = scalar_select %p44, %s45, %s46
    %p50 = pneg %p44
    %p51 = scmp.eq.s32.totalorder %s9, 8
    %p52 = por %p50, %p51
    %p53 = scmp.ne.s32.totalorder %s45, %s48
    %p54 = scmp.eq.s32.totalorder %s9, 0
    %p55 = por %p53, %p54
    %p56 = scmp.ne.s32.totalorder %s45, %s48
    %p57 = scmp.eq.s32.totalorder %s14, 8
    %p58 = por %p56, %p57
    %p59 = scmp.ne.s32.totalorder %s48, %s49
    %p60 = scmp.eq.s32.totalorder %s14, 0
    %p61 = por %p59, %p60
    %p62 = scmp.ne.s32.totalorder %s48, %s49
    %p63 = scmp.eq.s32.totalorder %s15, 8
    %p64 = por %p62, %p63
    %p66 = scmp.ne.s32.totalorder %s49, %s65
    %p67 = scmp.eq.s32.totalorder %s15, 0
    %p68 = por %p66, %p67
    %s70 = sadd.s32 %s69, 1
    %p73 = scmp.eq.s32.totalorder %s9, 8
    %p74 = scmp.ne.s32.totalorder %s69, %s71
    %p75 = scmp.eq.s32.totalorder %s9, 0
    %p76 = por %p74, %p75
    %p77 = scmp.ne.s32.totalorder %s69, %s71
    %p78 = scmp.eq.s32.totalorder %s14, 8
    %p79 = por %p77, %p78
    %p80 = scmp.ne.s32.totalorder %s71, %s72
    %p81 = scmp.eq.s32.totalorder %s14, 0
    %p82 = por %p80, %p81
    %p83 = scmp.ne.s32.totalorder %s71, %s72
    %p84 = scmp.eq.s32.totalorder %s15, 8
    %p85 = por %p83, %p84
    %p87 = scmp.ne.s32.totalorder %s72, %s86
    %p88 = scmp.eq.s32.totalorder %s15, 0
    %p89 = por %p87, %p88
    %s91 = sadd.s32 %s90, 1
    %p94 = scmp.eq.s32.totalorder %s9, 8
    %p95 = scmp.ne.s32.totalorder %s90, %s92
    %p96 = scmp.eq.s32.totalorder %s9, 0
    %p97 = por %p95, %p96
    %p98 = scmp.ne.s32.totalorder %s90, %s92
    %p99 = scmp.eq.s32.totalorder %s14, 8
    %p100 = por %p98, %p99
    %p101 = scmp.ne.s32.totalorder %s92, %s93
    %p102 = scmp.eq.s32.totalorder %s14, 0
    %p103 = por %p101, %p102
    %p104 = scmp.ne.s32.totalorder %s92, %s93
    %p105 = scmp.eq.s32.totalorder %s15, 8
    %p106 = por %p104, %p105
    %p108 = scmp.ne.s32.totalorder %s93, %s107
    %p109 = scmp.eq.s32.totalorder %s15, 0
    %p110 = por %p108, %p109
    %p111 = scmp.le.s32.totalorder 1, %s9
    %p112 = scmp.lt.s32.totalorder %s9, 10
    %p113 = pnand %p111, %p112
    %p114 = pneg %p113
    // Predicated region
    $region9: #{_lambda_.15} parent=5 // pred_check
      _
    $region10: #{_lambda_.15} parent=5 // pred_check_branch
      %116 = sbr.rel (%p113) target = $region12
    $region11: #{_lambda_.15} parent=5 // pred_region
      %s117 = ssub.s32 %s9, 1
      // Predicated region
      $region13: #{_lambda_.15} parent=11 // pred_check
        %p118 = pneg %p82
      $region14: #{_lambda_.15} parent=11 // pred_check_branch
        %120 = sbr.rel (%p118) target = $region16
      $region15: #{_lambda_.15} parent=11 // pred_region
        _
      $region16: #{_lambda_.15} parent=11 // pred_fallthru
        _
    $region12: #{_lambda_.15} parent=5 // pred_fallthru
      _
    %p121 = scmp.lt.s32.totalorder %s9, 9
    // Predicated region
    $region17: #{_lambda_.15} parent=5 // pred_check
      %p122 = pneg %p121
    $region18: #{_lambda_.15} parent=5 // pred_check_branch
      %124 = sbr.rel (%p122) target = $region20
    $region19: #{_lambda_.15} parent=5 // pred_region
      // Predicated region
      $region21: #{_lambda_.15} parent=19 // pred_check
        %p125 = pneg %p29
      $region22: #{_lambda_.15} parent=19 // pred_check_branch
        %127 = sbr.rel (%p125) target = $region24
      $region23: #{_lambda_.15} parent=19 // pred_region
        %p128 = scmp.lt.s32.totalorder %s9, 8
        %s129 = scalar_select %p128, %s9, 8
        %s130 = smul.addr %s129, 8
        %s131 = smul.addr %s130, 8
        %s132 = scalar_lea.vmem %s0, %s131
      $region24: #{_lambda_.15} parent=19 // pred_fallthru
        _
      // Predicated region
      $region25: #{_lambda_.15} parent=19 // pred_check
        %p133 = pneg %p55
      $region26: #{_lambda_.15} parent=19 // pred_check_branch
        %135 = sbr.rel (%p133) target = $region28
      $region27: #{_lambda_.15} parent=19 // pred_region
        %p136 = scmp.lt.s32.totalorder %s9, 8
        %s137 = scalar_select %p136, %s9, 8
        %s138 = smul.addr %s137, 64
        %s139 = smul.addr %s138, 8
        %s140 = scalar_lea.vmem %s1, %s139
      $region28: #{_lambda_.15} parent=19 // pred_fallthru
        _
    $region20: #{_lambda_.15} parent=5 // pred_fallthru
      _
    %p141 = scmp.le.s32.totalorder 1, %s9
    %p142 = scmp.lt.s32.totalorder %s9, 10
    %p143 = pnand %p141, %p142
    %p144 = pneg %p143
    // Predicated region
    $region29: #{_lambda_.15} parent=5 // pred_check
      _
    $region30: #{_lambda_.15} parent=5 // pred_check_branch
      %146 = sbr.rel (%p143) target = $region32
    $region31: #{_lambda_.15} parent=5 // pred_region
      %s147 = ssub.s32 %s9, 1
      %p148 = scmp.lt.s32.totalorder %s14, 8
      %s149 = scalar_select %p148, %s14, 8
      %s150 = smul.addr %s149, 8
      %s151 = smul.addr %s150, 8
      %s152 = scalar_lea.vmem %s0, %s151
      %p153 = pneg %p35
      %p154 = pneg %p32
      %p155 = scmp.lt.s32.totalorder %s14, 8
      %s156 = scalar_select %p155, %s14, 8
      %s157 = smul.addr %s156, 64
      %s158 = smul.addr %s157, 8
      %s159 = scalar_lea.vmem %s1, %s158
      %p160 = pneg %p61
      %p161 = pneg %p58
      %p162 = pneg %p82
      %p163 = pneg %p79
      %p164 = pneg %p103
      %p165 = pneg %p100
      %p166 = scmp.lt.s32.totalorder %s14, 8
      %s167 = scalar_select %p166, %s14, 8
      %s168 = smul.addr %s167, 8
      %s169 = smul.addr %s168, 8
      %s170 = scalar_lea.vmem %s0, %s169
      %p171 = scmp.lt.s32.totalorder %s14, 8
      %s172 = scalar_select %p171, %s14, 8
      %s173 = smul.addr %s172, 64
      %s174 = smul.addr %s173, 8
      %s175 = scalar_lea.vmem %s1, %s174
      %p176 = scmp.eq.s32.totalorder %s14, 0
      // Predicated region
      $region33: #{_lambda_.15} parent=31 // pred_check
        %p177 = pneg %p176
      $region34: #{_lambda_.15} parent=31 // pred_check_branch
        %179 = sbr.rel (%p177) target = $region36
      $region35: #{_lambda_.15} parent=31 // pred_region
        %180 = vst [vmem:[#allocation2] sm:$0xff] 0.0
        %181 = vst [vmem:[#allocation2 + $0x8] sm:$0xff] 0.0
        %182 = vst [vmem:[#allocation2 + $0x10] sm:$0xff] 0.0
        %183 = vst [vmem:[#allocation2 + $0x18] sm:$0xff] 0.0
        %184 = vst [vmem:[#allocation2 + $0x20] sm:$0xff] 0.0
        %185 = vst [vmem:[#allocation2 + $0x28] sm:$0xff] 0.0
        %186 = vst [vmem:[#allocation2 + $0x30] sm:$0xff] 0.0
        %187 = vst [vmem:[#allocation2 + $0x38] sm:$0xff] 0.0
      $region36: #{_lambda_.15} parent=31 // pred_fallthru
        _
      %v188 = vld [vmem:[#allocation2] sm:$0xff]
      %v189 = vld [vmem:[#allocation2 + $0x8] sm:$0xff]
      %v190 = vld [vmem:[#allocation2 + $0x10] sm:$0xff]
      %v191 = vld [vmem:[#allocation2 + $0x18] sm:$0xff]
      %v192 = vld [vmem:[#allocation2 + $0x20] sm:$0xff]
      %v193 = vld [vmem:[#allocation2 + $0x28] sm:$0xff]
      %v194 = vld [vmem:[#allocation2 + $0x30] sm:$0xff]
      %v195 = vld [vmem:[#allocation2 + $0x38] sm:$0xff]
      %v196 = vld [vmem:[%s170] sm:$0xff]
      %v197 = vld [vmem:[%s170 + $0x8] sm:$0xff]
      %v198 = vld [vmem:[%s170 + $0x10] sm:$0xff]
      %v199 = vld [vmem:[%s170 + $0x18] sm:$0xff]
      %v200 = vld [vmem:[%s170 + $0x20] sm:$0xff]
      %v201 = vld [vmem:[%s170 + $0x28] sm:$0xff]
      %v202 = vld [vmem:[%s170 + $0x30] sm:$0xff]
      %v203 = vld [vmem:[%s170 + $0x38] sm:$0xff]
      %v204 = vld [vmem:[%s175] sm:$0xff]
      %v205 = vld [vmem:[%s175 + $0x8] sm:$0xff]
      %v206 = vld [vmem:[%s175 + $0x10] sm:$0xff]
      %v207 = vld [vmem:[%s175 + $0x18] sm:$0xff]
      %v208 = vld [vmem:[%s175 + $0x20] sm:$0xff]
      %v209 = vld [vmem:[%s175 + $0x28] sm:$0xff]
      %v210 = vld [vmem:[%s175 + $0x30] sm:$0xff]
      %v211 = vld [vmem:[%s175 + $0x38] sm:$0xff]
      %v212 = vld [vmem:[%s175 + $0x40] sm:$0xff]
      %v213 = vld [vmem:[%s175 + $0x48] sm:$0xff]
      %v214 = vld [vmem:[%s175 + $0x50] sm:$0xff]
      %v215 = vld [vmem:[%s175 + $0x58] sm:$0xff]
      %v216 = vld [vmem:[%s175 + $0x60] sm:$0xff]
      %v217 = vld [vmem:[%s175 + $0x68] sm:$0xff]
      %v218 = vld [vmem:[%s175 + $0x70] sm:$0xff]
      %v219 = vld [vmem:[%s175 + $0x78] sm:$0xff]
      %v220 = vld [vmem:[%s175 + $0x80] sm:$0xff]
      %v221 = vld [vmem:[%s175 + $0x88] sm:$0xff]
      %v222 = vld [vmem:[%s175 + $0x90] sm:$0xff]
      %v223 = vld [vmem:[%s175 + $0x98] sm:$0xff]
      %v224 = vld [vmem:[%s175 + $0xa0] sm:$0xff]
      %v225 = vld [vmem:[%s175 + $0xa8] sm:$0xff]
      %v226 = vld [vmem:[%s175 + $0xb0] sm:$0xff]
      %v227 = vld [vmem:[%s175 + $0xb8] sm:$0xff]
      %v228 = vld [vmem:[%s175 + $0xc0] sm:$0xff]
      %v229 = vld [vmem:[%s175 + $0xc8] sm:$0xff]
      %v230 = vld [vmem:[%s175 + $0xd0] sm:$0xff]
      %v231 = vld [vmem:[%s175 + $0xd8] sm:$0xff]
      %v232 = vld [vmem:[%s175 + $0xe0] sm:$0xff]
      %v233 = vld [vmem:[%s175 + $0xe8] sm:$0xff]
      %v234 = vld [vmem:[%s175 + $0xf0] sm:$0xff]
      %v235 = vld [vmem:[%s175 + $0xf8] sm:$0xff]
      %v236 = vld [vmem:[%s175 + $0x100] sm:$0xff]
      %v237 = vld [vmem:[%s175 + $0x108] sm:$0xff]
      %v238 = vld [vmem:[%s175 + $0x110] sm:$0xff]
      %v239 = vld [vmem:[%s175 + $0x118] sm:$0xff]
      %v240 = vld [vmem:[%s175 + $0x120] sm:$0xff]
      %v241 = vld [vmem:[%s175 + $0x128] sm:$0xff]
      %v242 = vld [vmem:[%s175 + $0x130] sm:$0xff]
      %v243 = vld [vmem:[%s175 + $0x138] sm:$0xff]
      %v244 = vld [vmem:[%s175 + $0x140] sm:$0xff]
      %v245 = vld [vmem:[%s175 + $0x148] sm:$0xff]
      %v246 = vld [vmem:[%s175 + $0x150] sm:$0xff]
      %v247 = vld [vmem:[%s175 + $0x158] sm:$0xff]
      %v248 = vld [vmem:[%s175 + $0x160] sm:$0xff]
      %v249 = vld [vmem:[%s175 + $0x168] sm:$0xff]
      %v250 = vld [vmem:[%s175 + $0x170] sm:$0xff]
      %v251 = vld [vmem:[%s175 + $0x178] sm:$0xff]
      %v252 = vld [vmem:[%s175 + $0x180] sm:$0xff]
      %v253 = vld [vmem:[%s175 + $0x188] sm:$0xff]
      %v254 = vld [vmem:[%s175 + $0x190] sm:$0xff]
      %v255 = vld [vmem:[%s175 + $0x198] sm:$0xff]
      %v256 = vld [vmem:[%s175 + $0x1a0] sm:$0xff]
      %v257 = vld [vmem:[%s175 + $0x1a8] sm:$0xff]
      %v258 = vld [vmem:[%s175 + $0x1b0] sm:$0xff]
      %v259 = vld [vmem:[%s175 + $0x1b8] sm:$0xff]
      %v260 = vld [vmem:[%s175 + $0x1c0] sm:$0xff]
      %v261 = vld [vmem:[%s175 + $0x1c8] sm:$0xff]
      %v262 = vld [vmem:[%s175 + $0x1d0] sm:$0xff]
      %v263 = vld [vmem:[%s175 + $0x1d8] sm:$0xff]
      %v264 = vld [vmem:[%s175 + $0x1e0] sm:$0xff]
      %v265 = vld [vmem:[%s175 + $0x1e8] sm:$0xff]
      %v266 = vld [vmem:[%s175 + $0x1f0] sm:$0xff]
      %v267 = vld [vmem:[%s175 + $0x1f8] sm:$0xff]
      %268 = vmatpush.msra.mxu0 %v234
      %269 = vmatpush.msra.mxu0 %v232
      %270 = vmatpush.msra.mxu0 %v230
      %271 = vmatpush.msra.mxu0 %v228
      %272 = vmatpush.msra.mxu0 %v226
      %273 = vmatpush.msra.mxu0 %v224
      %274 = vmatpush.msra.mxu0 %v222
      %275 = vmatpush.msra.mxu0 %v220
      %276 = vmatpush.msra.mxu0 %v218
      %277 = vmatpush.msra.mxu0 %v216
      %278 = vmatpush.msra.mxu0 %v214
      %279 = vmatpush.msra.mxu0 %v212
      %280 = vmatpush.msra.mxu0 %v210
      %281 = vmatpush.msra.mxu0 %v208
      %282 = vmatpush.msra.mxu0 %v206
      %283 = vmatpush.msra.mxu0 %v204
      %284 = vmatmul.f32.gmra.mxu0 %v196
      %v285 = vpop.f32.mrf.mxu0
      %v286 = vadd.f32 0.0, %v285
      %287 = vmatmul.f32.gmra.mxu0 %v198
      %v288 = vpop.f32.mrf.mxu0
      %v289 = vadd.f32 0.0, %v288
      %290 = vmatmul.f32.gmra.mxu0 %v200
      %v291 = vpop.f32.mrf.mxu0
      %v292 = vadd.f32 0.0, %v291
      %293 = vmatmul.f32.gmra.mxu0 %v202
      %v294 = vpop.f32.mrf.mxu0
      %v295 = vadd.f32 0.0, %v294
      %296 = vdwg.mxu0
      %297 = vmatpush.msra.mxu0 %v266
      %298 = vmatpush.msra.mxu0 %v264
      %299 = vmatpush.msra.mxu0 %v262
      %300 = vmatpush.msra.mxu0 %v260
      %301 = vmatpush.msra.mxu0 %v258
      %302 = vmatpush.msra.mxu0 %v256
      %303 = vmatpush.msra.mxu0 %v254
      %304 = vmatpush.msra.mxu0 %v252
      %305 = vmatpush.msra.mxu0 %v250
      %306 = vmatpush.msra.mxu0 %v248
      %307 = vmatpush.msra.mxu0 %v246
      %308 = vmatpush.msra.mxu0 %v244
      %309 = vmatpush.msra.mxu0 %v242
      %310 = vmatpush.msra.mxu0 %v240
      %311 = vmatpush.msra.mxu0 %v238
      %312 = vmatpush.msra.mxu0 %v236
      %313 = vmatmul.f32.gmra.mxu0 %v197
      %v314 = vpop.f32.mrf.mxu0
      %v315 = vadd.f32 %v286, %v314
      %316 = vmatmul.f32.gmra.mxu0 %v199
      %v317 = vpop.f32.mrf.mxu0
      %v318 = vadd.f32 %v289, %v317
      %319 = vmatmul.f32.gmra.mxu0 %v201
      %v320 = vpop.f32.mrf.mxu0
      %v321 = vadd.f32 %v292, %v320
      %322 = vmatmul.f32.gmra.mxu0 %v203
      %v323 = vpop.f32.mrf.mxu0
      %v324 = vadd.f32 %v295, %v323
      %325 = vdwg.mxu0
      %326 = vmatpush.msra.mxu0 %v235
      %327 = vmatpush.msra.mxu0 %v233
      %328 = vmatpush.msra.mxu0 %v231
      %329 = vmatpush.msra.mxu0 %v229
      %330 = vmatpush.msra.mxu0 %v227
      %331 = vmatpush.msra.mxu0 %v225
      %332 = vmatpush.msra.mxu0 %v223
      %333 = vmatpush.msra.mxu0 %v221
      %334 = vmatpush.msra.mxu0 %v219
      %335 = vmatpush.msra.mxu0 %v217
      %336 = vmatpush.msra.mxu0 %v215
      %337 = vmatpush.msra.mxu0 %v213
      %338 = vmatpush.msra.mxu0 %v211
      %339 = vmatpush.msra.mxu0 %v209
      %340 = vmatpush.msra.mxu0 %v207
      %341 = vmatpush.msra.mxu0 %v205
      %342 = vmatmul.f32.gmra.mxu0 %v196
      %v343 = vpop.f32.mrf.mxu0
      %v344 = vadd.f32 0.0, %v343
      %345 = vmatmul.f32.gmra.mxu0 %v198
      %v346 = vpop.f32.mrf.mxu0
      %v347 = vadd.f32 0.0, %v346
      %348 = vmatmul.f32.gmra.mxu0 %v200
      %v349 = vpop.f32.mrf.mxu0
      %v350 = vadd.f32 0.0, %v349
      %351 = vmatmul.f32.gmra.mxu0 %v202
      %v352 = vpop.f32.mrf.mxu0
      %v353 = vadd.f32 0.0, %v352
      %354 = vdwg.mxu0
      %355 = vmatpush.msra.mxu0 %v267
      %356 = vmatpush.msra.mxu0 %v265
      %357 = vmatpush.msra.mxu0 %v263
      %358 = vmatpush.msra.mxu0 %v261
      %359 = vmatpush.msra.mxu0 %v259
      %360 = vmatpush.msra.mxu0 %v257
      %361 = vmatpush.msra.mxu0 %v255
      %362 = vmatpush.msra.mxu0 %v253
      %363 = vmatpush.msra.mxu0 %v251
      %364 = vmatpush.msra.mxu0 %v249
      %365 = vmatpush.msra.mxu0 %v247
      %366 = vmatpush.msra.mxu0 %v245
      %367 = vmatpush.msra.mxu0 %v243
      %368 = vmatpush.msra.mxu0 %v241
      %369 = vmatpush.msra.mxu0 %v239
      %370 = vmatpush.msra.mxu0 %v237
      %371 = vmatmul.f32.gmra.mxu0 %v197
      %v372 = vpop.f32.mrf.mxu0
      %v373 = vadd.f32 %v344, %v372
      %374 = vmatmul.f32.gmra.mxu0 %v199
      %v375 = vpop.f32.mrf.mxu0
      %v376 = vadd.f32 %v347, %v375
      %377 = vmatmul.f32.gmra.mxu0 %v201
      %v378 = vpop.f32.mrf.mxu0
      %v379 = vadd.f32 %v350, %v378
      %380 = vmatmul.f32.gmra.mxu0 %v203
      %v381 = vpop.f32.mrf.mxu0
      %v382 = vadd.f32 %v353, %v381
      %383 = vdwg.mxu0
      %v384 = vadd.f32 %v188, %v315
      %v385 = vadd.f32 %v189, %v373
      %v386 = vadd.f32 %v190, %v318
      %v387 = vadd.f32 %v191, %v376
      %v388 = vadd.f32 %v192, %v321
      %v389 = vadd.f32 %v193, %v379
      %v390 = vadd.f32 %v194, %v324
      %v391 = vadd.f32 %v195, %v382
      %392 = vst [vmem:[#allocation2] sm:$0xff] %v384
      %393 = vst [vmem:[#allocation2 + $0x8] sm:$0xff] %v385
      %394 = vst [vmem:[#allocation2 + $0x10] sm:$0xff] %v386
      %395 = vst [vmem:[#allocation2 + $0x18] sm:$0xff] %v387
      %396 = vst [vmem:[#allocation2 + $0x20] sm:$0xff] %v388
      %397 = vst [vmem:[#allocation2 + $0x28] sm:$0xff] %v389
      %398 = vst [vmem:[#allocation2 + $0x30] sm:$0xff] %v390
      %399 = vst [vmem:[#allocation2 + $0x38] sm:$0xff] %v391
      %p400 = scmp.eq.s32.totalorder %s14, 8
      // Predicated region
      $region37: #{_lambda_.15} parent=31 // pred_check
        %p401 = pneg %p400
      $region38: #{_lambda_.15} parent=31 // pred_check_branch
        %403 = sbr.rel (%p401) target = $region40
      $region39: #{_lambda_.15} parent=31 // pred_region
        %v404 = vld [vmem:[#allocation2] sm:$0xff]
        %v405 = vld [vmem:[#allocation2 + $0x8] sm:$0xff]
        %v406 = vld [vmem:[#allocation2 + $0x10] sm:$0xff]
        %v407 = vld [vmem:[#allocation2 + $0x18] sm:$0xff]
        %v408 = vld [vmem:[#allocation2 + $0x20] sm:$0xff]
        %v409 = vld [vmem:[#allocation2 + $0x28] sm:$0xff]
        %v410 = vld [vmem:[#allocation2 + $0x30] sm:$0xff]
        %v411 = vld [vmem:[#allocation2 + $0x38] sm:$0xff]
        %v412 = vld [vmem:[%s2] sm:$0x3]
        %v414 = vperm.slane %v412, 0
        %v415 = vperm.slane %v412, 1
        %v418 = vadd.f32 %v404, %v414
        %v419 = vadd.f32 %v405, %v415
        %v420 = vadd.f32 %v406, %v414
        %v421 = vadd.f32 %v407, %v415
        %v422 = vadd.f32 %v408, %v414
        %v423 = vadd.f32 %v409, %v415
        %v424 = vadd.f32 %v410, %v414
        %v425 = vadd.f32 %v411, %v415
        %426 = vst [vmem:[%s3] sm:$0xff] %v418
        %427 = vst [vmem:[%s3 + $0x8] sm:$0xff] %v419
        %428 = vst [vmem:[%s3 + $0x10] sm:$0xff] %v420
        %429 = vst [vmem:[%s3 + $0x18] sm:$0xff] %v421
        %430 = vst [vmem:[%s3 + $0x20] sm:$0xff] %v422
        %431 = vst [vmem:[%s3 + $0x28] sm:$0xff] %v423
        %432 = vst [vmem:[%s3 + $0x30] sm:$0xff] %v424
        %433 = vst [vmem:[%s3 + $0x38] sm:$0xff] %v425
      $region40: #{_lambda_.15} parent=31 // pred_fallthru
        _
      // Predicated region
      $region41: #{_lambda_.15} parent=31 // pred_check
        %p434 = pneg %p100
      $region42: #{_lambda_.15} parent=31 // pred_check_branch
        %436 = sbr.rel (%p434) target = $region44
      $region43: #{_lambda_.15} parent=31 // pred_region
        _
      $region44: #{_lambda_.15} parent=31 // pred_fallthru
        _
      // Predicated region
      $region45: #{_lambda_.15} parent=31 // pred_check
        %p437 = pneg %p100
      $region46: #{_lambda_.15} parent=31 // pred_check_branch
        %439 = sbr.rel (%p437) target = $region48
      $region47: #{_lambda_.15} parent=31 // pred_region
        _
      $region48: #{_lambda_.15} parent=31 // pred_fallthru
        _
    $region32: #{_lambda_.15} parent=5 // pred_fallthru
      _
    %p440 = scmp.le.s32.totalorder 2, %s9
    // Predicated region
    $region49: #{_lambda_.15} parent=5 // pred_check
      %p441 = pneg %p440
    $region50: #{_lambda_.15} parent=5 // pred_check_branch
      %443 = sbr.rel (%p441) target = $region52
    $region51: #{_lambda_.15} parent=5 // pred_region
      %s444 = ssub.s32 %s9, 2
    $region52: #{_lambda_.15} parent=5 // pred_fallthru
      _
  $region6: #{_lambda_.15} parent=0 // loop_footer
    %s13 = sadd.s32 1, %s9
  $region7: #{_lambda_.15} parent=0 // loop_footer_branch
    %8 = sbr.rel target = $region3
  $region8: #{_lambda_.15} parent=0 // loop_exit
    _

</llo_original>
